<compile_context>
chip_gen: v7x
topology: tpu7x:2x2x1
jax: 0.10.0
libtpu: 0.0.40
codegen_flags: <defaults>
</compile_context>

<pallas_src>
import functools

import jax
import jax.numpy as jnp
from jax import lax
from jax.experimental import pallas as pl
from jax.experimental.pallas import tpu as pltpu


def _bridge_kernel(x_ref, idx_ref, wblt_ref, w1_ref, b1_ref, w2_ref, b2_ref,
                   out_ref, loss_ref, *, interest_num, n_iter):
    s_len, d, bt = x_ref.shape
    k = interest_num
    dd = d * d

    # ---- sequence length / validity mask (length-based; CapsuleLayer only gets seq_len) ----
    idx = idx_ref[...]                                                        # [sm, bt] int32
    seq_len = jnp.sum((idx != 0).astype(jnp.int32), axis=0, keepdims=True)    # [1, bt]
    pos = lax.broadcasted_iota(jnp.int32, (s_len, bt), 0)                     # [s_len, bt]
    valid = pos < seq_len                                                     # [s_len, bt]
    # max(.,1) only guards padded / empty lanes; real rows with seq_len==0 still give v==0
    # (and an inf/NaN loss) exactly like the torch reference would.
    inv_len = 1.0 / jnp.maximum(seq_len.astype(jnp.float32), 1.0)             # [1, bt]

    # ---- bilinear capsule map: u[s] = W_bl^T @ x[s]  (per-position [d,d]x[d,bt] dots) ----
    wblt = wblt_ref[...]
    u = jnp.stack(
        [jnp.dot(wblt, x_ref[s], preferred_element_type=jnp.float32)
         for s in range(s_len)], axis=0)                                      # [s_len, d, bt]

    valid3 = jnp.broadcast_to(valid[None, :, :], (k, s_len, bt))
    neg_big = jnp.float32(-1e9)

    # ---- dynamic routing (zero-initialised logits, n_iter iterations) ----
    logits = jnp.zeros((k, s_len, bt), jnp.float32)
    v = jnp.zeros((k, d, bt), jnp.float32)
    for it in range(n_iter):
        if it == 0:
            # logits == 0  =>  masked softmax is uniform over valid positions, same for all k.
            w0 = valid.astype(jnp.float32) * inv_len                          # [s_len, bt]
            z0 = jnp.sum(w0[:, None, :] * u, axis=0)                          # [d, bt]
            z = jnp.broadcast_to(z0[None, :, :], (k, d, bt))
        else:
            masked = jnp.where(valid3, logits, neg_big)                       # [k, s_len, bt]
            m = jnp.max(masked, axis=1, keepdims=True)                        # [k, 1, bt]
            e = jnp.exp(masked - m)                       # exp(-1e9 - m) underflows to exactly 0
            w = e * pl.reciprocal(jnp.sum(e, axis=1, keepdims=True), approx=True)
            # z[k,d,b] = sum_s w[k,s,b] * u[s,d,b]   (reduce over the leading/seq axis)
            z = jnp.sum(w[:, :, None, :] * u[None, :, :, :], axis=1)          # [k, d, bt]
        sq = jnp.sum(z * z, axis=1, keepdims=True)                            # [k, 1, bt]
        scale = sq * pl.reciprocal(1.0 + sq, approx=True) * lax.rsqrt(sq + 1e-9)
        v = scale * z                                                         # [k, d, bt]
        if it + 1 < n_iter:
            # logits[k,s,b] += sum_d v[k,d,b] * u[s,d,b]   (small sublane reduction over d)
            logits = logits + jnp.sum(v[:, None, :, :] * u[None, :, :, :], axis=2)

    # ---- disagreement loss, per example (lane-dense [1, bt] output row) ----
    # torch: bmm(v, v^T) / (||v_i|| * ||v_i||)  -> elem[i,j] = <v_i, v_j> / ||v_i||^2
    sim = jnp.sum(v[:, None, :, :] * v[None, :, :, :], axis=2)                # [k, k, bt]
    nrm2 = jnp.sum(v * v, axis=1)                                             # [k, bt]
    per_ex = jnp.mean(sim * (1.0 / nrm2)[:, None, :], axis=(0, 1), keepdims=True)
    loss_ref[...] = per_ex[0]                                                 # [1, bt]

    # ---- decoder MLP: Linear(d->m) -> ReLU -> Linear(m->d*d), lane-dense 256-wide output ----
    vt = jnp.concatenate([v[i].T for i in range(k)], axis=0)                  # [k*bt, d]
    h = jnp.maximum(
        jnp.dot(vt, w1_ref[...], preferred_element_type=jnp.float32) + b1_ref[...], 0.0)
    o = jnp.dot(h, w2_ref[...], preferred_element_type=jnp.float32) + b2_ref[...]
    for i in range(k):
        out_ref[:, i * dd:(i + 1) * dd] = o[i * bt:(i + 1) * bt].astype(out_ref.dtype)


def capsule_bridge_forward(rsc_inter_seq_emb, tgt_inter_seq_emb, seq_index, params,
                           *, interest_num, n_iter=3, block_b=512):
    """Pallas implementation of CapsuleBridge.forward (traing_mode=True, wo_capsule=0).

    tgt_inter_seq_emb is accepted for signature parity but unused (the target-attention
    branch in the original module is commented out).
    Returns (orgin_output, orgin_output, disagree_loss) like the torch module.
    """
    del tgt_inter_seq_emb
    x = rsc_inter_seq_emb.astype(jnp.float32)
    B, S, D = x.shape
    K = interest_num
    M = params["W1"].shape[1]
    DD = D * D

    idx = seq_index[:, :20].astype(jnp.int32)       # module slices seq_index[:, :20]
    Sm = idx.shape[1]

    # Layout plumbing (not compute hoisting): batch goes to the last (lane) axis.
    x_t = jnp.transpose(x, (1, 2, 0))               # [S, D, B]
    idx_t = jnp.transpose(idx, (1, 0))              # [Sm, B]

    # Pad the batch to a multiple of 128 lanes and pick the largest tile <= block_b that
    # divides it (block_b=512 keeps v7x VMEM headroom and >=2 grid steps at larger B).
    b_pad = max(128, ((B + 127) // 128) * 128)
    cap = min(block_b, b_pad)
    bt = 128
    for cand in range(128, cap + 1, 128):
        if b_pad % cand == 0:
            bt = cand
    if b_pad != B:
        x_t = jnp.pad(x_t, ((0, 0), (0, 0), (0, b_pad - B)))
        idx_t = jnp.pad(idx_t, ((0, 0), (0, b_pad - B)))
    grid = (b_pad // bt,)

    wbl_t = params["W_bl"].astype(jnp.float32).T    # [D, D]; u_s = W_bl^T @ x_s
    w1 = params["W1"].astype(jnp.float32)
    b1 = params["b1"].astype(jnp.float32).reshape(1, M)
    w2 = params["W2"].astype(jnp.float32)
    b2 = params["b2"].astype(jnp.float32).reshape(1, DD)

    kernel = functools.partial(_bridge_kernel, interest_num=K, n_iter=n_iter)

    out_flat, loss_row = pl.pallas_call(
        kernel,
        out_shape=(
            jax.ShapeDtypeStruct((b_pad, K * DD), jnp.float32),
            jax.ShapeDtypeStruct((1, b_pad), jnp.float32),
        ),
        grid_spec=pltpu.PrefetchScalarGridSpec(
            num_scalar_prefetch=0,
            grid=grid,
            in_specs=[
                # Batch-tiled activations / indices (batch on lanes).
                pl.BlockSpec((S, D, bt), lambda i: (0, 0, i)),
                pl.BlockSpec((Sm, bt), lambda i: (0, i)),
                # Small weights: whole-array blocks, VMEM-resident across all grid steps.
                pl.BlockSpec((D, D), lambda i: (0, 0)),
                pl.BlockSpec((D, M), lambda i: (0, 0)),
                pl.BlockSpec((1, M), lambda i: (0, 0)),
                pl.BlockSpec((M, DD), lambda i: (0, 0)),
                pl.BlockSpec((1, DD), lambda i: (0, 0)),
            ],
            out_specs=[
                pl.BlockSpec((bt, K * DD), lambda i: (i, 0)),   # lane-dense 768-wide stores
                pl.BlockSpec((1, bt), lambda i: (0, i)),        # lane-dense per-example loss
            ],
        ),
        compiler_params=pltpu.CompilerParams(
            dimension_semantics=("parallel",),
            vmem_limit_bytes=40 * 1024 * 1024,
        ),
    )(x_t, idx_t, wbl_t, w1, b1, w2, b2)

    out = out_flat[:B].reshape(B, K, DD)            # row-major contiguous -> free reshape
    disagree_loss = jnp.mean(loss_row[0, :B])
    return out, out, disagree_loss


def _reference(rsc, seq_index, params, *, interest_num, n_iter=3):
    """Pure-JAX reference of the same forward math."""
    B, S, D = rsc.shape
    K = interest_num
    idx = seq_index[:, :20]
    seq_len = jnp.sum((idx != 0).astype(jnp.float32), axis=1, keepdims=True)
    pos = jnp.arange(S, dtype=jnp.float32)[None, :]
    valid = pos < seq_len
    mask3 = jnp.broadcast_to(valid[:, None, :], (B, K, S))

    u = jnp.einsum("bsd,de->bse", rsc, params["W_bl"])
    logits = jnp.zeros((B, K, S), jnp.float32)
    v = jnp.zeros((B, K, D), jnp.float32)
    for it in range(n_iter):
        masked = jnp.where(mask3, logits, -1e9)
        m = jnp.max(masked, axis=-1, keepdims=True)
        e = jnp.exp(masked - m)
        w = e / jnp.sum(e, axis=-1, keepdims=True)
        z = jnp.einsum("bks,bsd->bkd", w, u)
        sq = jnp.sum(z * z, axis=-1, keepdims=True)
        v = (sq / (1.0 + sq)) * z * lax.rsqrt(sq + 1e-9)
        if it + 1 < n_iter:
            logits = logits + jnp.einsum("bkd,bsd->bks", v, u)

    sim = jnp.einsum("bkd,bjd->bkj", v, v)
    nrm2 = jnp.sum(v * v, axis=-1, keepdims=True)
    loss = jnp.mean(sim / nrm2)

    h = jax.nn.relu(jnp.einsum("bkd,dm->bkm", v, params["W1"]) + params["b1"])
    o = jnp.einsum("bkm,mo->bko", h, params["W2"]) + params["b2"]
    return o, o, loss


if __name__ == "__main__":
    # Small deterministic setup consistent with the module (seq length 20 matches the
    # seq_index[:, :20] slice; emb_dim=16, meta_dim=32, interest_num=3).
    B, S, D, M, K = 256, 20, 16, 32, 3

    key = jax.random.PRNGKey(0)
    k1, k2, k3, k4, k5, k6, k7, k8, k9 = jax.random.split(key, 9)

    rsc = jax.random.normal(k1, (B, S, D), dtype=jnp.float32)
    tgt = jax.random.normal(k2, (B, S, D), dtype=jnp.float32)   # unused by the active path

    lens = jax.random.randint(k3, (B,), 5, S + 1)
    ids = jax.random.randint(k4, (B, S), 1, 1000, dtype=jnp.int32)
    seq_index = jnp.where(jnp.arange(S)[None, :] < lens[:, None], ids, 0).astype(jnp.int32)

    # TODO(synk): torch's Kaiming-uniform Linear init is not reproduced; deterministic small
    #             normals are sufficient for a forward-pass check.
    params = {
        "W_bl": jax.random.normal(k5, (D, D), jnp.float32) * 0.1,
        "W1": jax.random.normal(k6, (D, M), jnp.float32) * 0.1,
        "b1": jax.random.normal(k7, (M,), jnp.float32) * 0.1,
        "W2": jax.random.normal(k8, (M, D * D), jnp.float32) * 0.1,
        "b2": jax.random.normal(k9, (D * D,), jnp.float32) * 0.1,
    }

    # block_b=128 -> two grid steps at B=256 (exercises multi-tile + "parallel" sharding).
    out1, out2, loss = capsule_bridge_forward(rsc, tgt, seq_index, params,
                                              interest_num=K, block_b=128)
    out1 = jax.block_until_ready(out1)
    loss = jax.block_until_ready(loss)

    ref1, _, ref_loss = _reference(rsc, seq_index, params, interest_num=K)

    assert out1.shape == (B, K, D * D), out1.shape
    assert out1.dtype == jnp.float32
    # Tolerances account for the approx (EUP) reciprocals used in the routing loop.
    assert jnp.allclose(out1, ref1, rtol=3e-3, atol=3e-3), "decoder output mismatch"
    assert jnp.allclose(out2, ref1, rtol=3e-3, atol=3e-3), "second output mismatch"
    assert jnp.allclose(loss, ref_loss, rtol=3e-3, atol=3e-3), "disagreement loss mismatch"
    print("KERNEL_OK")
</pallas_src>

<mosaic_0001>
module attributes {stable_mosaic.version = 11 : i64} {
  func.func @_bridge_kernel(%arg0: i32, %arg1: memref<20x16x128xf32, #tpu.memory_space<vmem>>, %arg2: memref<20x128xi32, #tpu.memory_space<vmem>>, %arg3: memref<16x16xf32, #tpu.memory_space<vmem>>, %arg4: memref<16x32xf32, #tpu.memory_space<vmem>>, %arg5: memref<1x32xf32, #tpu.memory_space<vmem>>, %arg6: memref<32x256xf32, #tpu.memory_space<vmem>>, %arg7: memref<1x256xf32, #tpu.memory_space<vmem>>, %arg8: memref<128x768xf32, #tpu.memory_space<vmem>>, %arg9: memref<1x128xf32, #tpu.memory_space<vmem>>) attributes {dimension_semantics = [#tpu.dimension_semantics<parallel>], iteration_bounds = array<i64: 2>, scalar_prefetch = 0 : i64, scratch_operands = 0 : i64, tpu.core_type = #tpu.core_type<tc>, window_params = [{transform_indices = @transform_0, window_bounds = array<i64: 20, 16, 128>}, {transform_indices = @transform_1, window_bounds = array<i64: 20, 128>}, {pipeline_mode = #tpu.pipeline_mode<synchronous>, transform_indices = @transform_2, window_bounds = array<i64: 16, 16>}, {pipeline_mode = #tpu.pipeline_mode<synchronous>, transform_indices = @transform_3, window_bounds = array<i64: 16, 32>}, {pipeline_mode = #tpu.pipeline_mode<synchronous>, transform_indices = @transform_4, window_bounds = array<i64: 1, 32>}, {pipeline_mode = #tpu.pipeline_mode<synchronous>, transform_indices = @transform_5, window_bounds = array<i64: 32, 256>}, {pipeline_mode = #tpu.pipeline_mode<synchronous>, transform_indices = @transform_6, window_bounds = array<i64: 1, 256>}, {transform_indices = @transform_7, window_bounds = array<i64: 128, 768>}, {transform_indices = @transform_8, window_bounds = array<i64: 1, 128>}]} {
    %c0 = arith.constant 0 : index
    %c0_0 = arith.constant 0 : index
    %0 = vector.load %arg2[%c0, %c0_0] : memref<20x128xi32, #tpu.memory_space<vmem>>, vector<20x128xi32>
    %c0_i32 = arith.constant 0 : i32
    %1 = vector.broadcast %c0_i32 : i32 to vector<20x128xi32>
    %2 = arith.cmpi ne, %0, %1 : vector<20x128xi32>
    %3 = arith.extui %2 : vector<20x128xi1> to vector<20x128xi32>
    %cst = arith.constant dense<0> : vector<128xi32>
    %4 = vector.multi_reduction <add>, %3, %cst [0] : vector<20x128xi32> to vector<128xi32>
    %5 = vector.shape_cast %4 : vector<128xi32> to vector<1x128xi32>
    %6 = tpu.iota {dimensions = array<i32: 0>} : vector<20x128xi32>
    %7 = vector.broadcast %5 : vector<1x128xi32> to vector<20x128xi32>
    %8 = arith.cmpi slt, %6, %7 : vector<20x128xi32>
    %9 = arith.sitofp %5 : vector<1x128xi32> to vector<1x128xf32>
    %cst_1 = arith.constant 1.000000e+00 : f32
    %10 = vector.broadcast %cst_1 : f32 to vector<1x128xf32>
    %11 = arith.maximumf %9, %10 : vector<1x128xf32>
    %cst_2 = arith.constant 1.000000e+00 : f32
    %12 = vector.broadcast %cst_2 : f32 to vector<1x128xf32>
    %13 = arith.divf %12, %11 : vector<1x128xf32>
    %c0_3 = arith.constant 0 : index
    %c0_4 = arith.constant 0 : index
    %14 = vector.load %arg3[%c0_3, %c0_4] : memref<16x16xf32, #tpu.memory_space<vmem>>, vector<16x16xf32>
    %c0_5 = arith.constant 0 : index
    %c0_6 = arith.constant 0 : index
    %c0_7 = arith.constant 0 : index
    %15 = vector.load %arg1[%c0_5, %c0_6, %c0_7] : memref<20x16x128xf32, #tpu.memory_space<vmem>>, vector<1x16x128xf32>
    %16 = vector.shape_cast %15 : vector<1x16x128xf32> to vector<16x128xf32>
    %cst_8 = arith.constant dense<0.000000e+00> : vector<16x128xf32>
    %17 = tpu.matmul %14, %16, %cst_8 {dimension_numbers = #tpu.dot_dimension_numbers<[1], [0], [0], [1], [0, 0, 1, 1], [], []>} : vector<16x16xf32>, vector<16x128xf32>, vector<16x128xf32> -> vector<16x128xf32>
    %c1 = arith.constant 1 : index
    %c0_9 = arith.constant 0 : index
    %c0_10 = arith.constant 0 : index
    %18 = vector.load %arg1[%c1, %c0_9, %c0_10] : memref<20x16x128xf32, #tpu.memory_space<vmem>>, vector<1x16x128xf32>
    %19 = vector.shape_cast %18 : vector<1x16x128xf32> to vector<16x128xf32>
    %cst_11 = arith.constant dense<0.000000e+00> : vector<16x128xf32>
    %20 = tpu.matmul %14, %19, %cst_11 {dimension_numbers = #tpu.dot_dimension_numbers<[1], [0], [0], [1], [0, 0, 1, 1], [], []>} : vector<16x16xf32>, vector<16x128xf32>, vector<16x128xf32> -> vector<16x128xf32>
    %c2 = arith.constant 2 : index
    %c0_12 = arith.constant 0 : index
    %c0_13 = arith.constant 0 : index
    %21 = vector.load %arg1[%c2, %c0_12, %c0_13] : memref<20x16x128xf32, #tpu.memory_space<vmem>>, vector<1x16x128xf32>
    %22 = vector.shape_cast %21 : vector<1x16x128xf32> to vector<16x128xf32>
    %cst_14 = arith.constant dense<0.000000e+00> : vector<16x128xf32>
    %23 = tpu.matmul %14, %22, %cst_14 {dimension_numbers = #tpu.dot_dimension_numbers<[1], [0], [0], [1], [0, 0, 1, 1], [], []>} : vector<16x16xf32>, vector<16x128xf32>, vector<16x128xf32> -> vector<16x128xf32>
    %c3 = arith.constant 3 : index
    %c0_15 = arith.constant 0 : index
    %c0_16 = arith.constant 0 : index
    %24 = vector.load %arg1[%c3, %c0_15, %c0_16] : memref<20x16x128xf32, #tpu.memory_space<vmem>>, vector<1x16x128xf32>
    %25 = vector.shape_cast %24 : vector<1x16x128xf32> to vector<16x128xf32>
    %cst_17 = arith.constant dense<0.000000e+00> : vector<16x128xf32>
    %26 = tpu.matmul %14, %25, %cst_17 {dimension_numbers = #tpu.dot_dimension_numbers<[1], [0], [0], [1], [0, 0, 1, 1], [], []>} : vector<16x16xf32>, vector<16x128xf32>, vector<16x128xf32> -> vector<16x128xf32>
    %c4 = arith.constant 4 : index
    %c0_18 = arith.constant 0 : index
    %c0_19 = arith.constant 0 : index
    %27 = vector.load %arg1[%c4, %c0_18, %c0_19] : memref<20x16x128xf32, #tpu.memory_space<vmem>>, vector<1x16x128xf32>
    %28 = vector.shape_cast %27 : vector<1x16x128xf32> to vector<16x128xf32>
    %cst_20 = arith.constant dense<0.000000e+00> : vector<16x128xf32>
    %29 = tpu.matmul %14, %28, %cst_20 {dimension_numbers = #tpu.dot_dimension_numbers<[1], [0], [0], [1], [0, 0, 1, 1], [], []>} : vector<16x16xf32>, vector<16x128xf32>, vector<16x128xf32> -> vector<16x128xf32>
    %c5 = arith.constant 5 : index
    %c0_21 = arith.constant 0 : index
    %c0_22 = arith.constant 0 : index
    %30 = vector.load %arg1[%c5, %c0_21, %c0_22] : memref<20x16x128xf32, #tpu.memory_space<vmem>>, vector<1x16x128xf32>
    %31 = vector.shape_cast %30 : vector<1x16x128xf32> to vector<16x128xf32>
    %cst_23 = arith.constant dense<0.000000e+00> : vector<16x128xf32>
    %32 = tpu.matmul %14, %31, %cst_23 {dimension_numbers = #tpu.dot_dimension_numbers<[1], [0], [0], [1], [0, 0, 1, 1], [], []>} : vector<16x16xf32>, vector<16x128xf32>, vector<16x128xf32> -> vector<16x128xf32>
    %c6 = arith.constant 6 : index
    %c0_24 = arith.constant 0 : index
    %c0_25 = arith.constant 0 : index
    %33 = vector.load %arg1[%c6, %c0_24, %c0_25] : memref<20x16x128xf32, #tpu.memory_space<vmem>>, vector<1x16x128xf32>
    %34 = vector.shape_cast %33 : vector<1x16x128xf32> to vector<16x128xf32>
    %cst_26 = arith.constant dense<0.000000e+00> : vector<16x128xf32>
    %35 = tpu.matmul %14, %34, %cst_26 {dimension_numbers = #tpu.dot_dimension_numbers<[1], [0], [0], [1], [0, 0, 1, 1], [], []>} : vector<16x16xf32>, vector<16x128xf32>, vector<16x128xf32> -> vector<16x128xf32>
    %c7 = arith.constant 7 : index
    %c0_27 = arith.constant 0 : index
    %c0_28 = arith.constant 0 : index
    %36 = vector.load %arg1[%c7, %c0_27, %c0_28] : memref<20x16x128xf32, #tpu.memory_space<vmem>>, vector<1x16x128xf32>
    %37 = vector.shape_cast %36 : vector<1x16x128xf32> to vector<16x128xf32>
    %cst_29 = arith.constant dense<0.000000e+00> : vector<16x128xf32>
    %38 = tpu.matmul %14, %37, %cst_29 {dimension_numbers = #tpu.dot_dimension_numbers<[1], [0], [0], [1], [0, 0, 1, 1], [], []>} : vector<16x16xf32>, vector<16x128xf32>, vector<16x128xf32> -> vector<16x128xf32>
    %c8 = arith.constant 8 : index
    %c0_30 = arith.constant 0 : index
    %c0_31 = arith.constant 0 : index
    %39 = vector.load %arg1[%c8, %c0_30, %c0_31] : memref<20x16x128xf32, #tpu.memory_space<vmem>>, vector<1x16x128xf32>
    %40 = vector.shape_cast %39 : vector<1x16x128xf32> to vector<16x128xf32>
    %cst_32 = arith.constant dense<0.000000e+00> : vector<16x128xf32>
    %41 = tpu.matmul %14, %40, %cst_32 {dimension_numbers = #tpu.dot_dimension_numbers<[1], [0], [0], [1], [0, 0, 1, 1], [], []>} : vector<16x16xf32>, vector<16x128xf32>, vector<16x128xf32> -> vector<16x128xf32>
    %c9 = arith.constant 9 : index
    %c0_33 = arith.constant 0 : index
    %c0_34 = arith.constant 0 : index
    %42 = vector.load %arg1[%c9, %c0_33, %c0_34] : memref<20x16x128xf32, #tpu.memory_space<vmem>>, vector<1x16x128xf32>
    %43 = vector.shape_cast %42 : vector<1x16x128xf32> to vector<16x128xf32>
    %cst_35 = arith.constant dense<0.000000e+00> : vector<16x128xf32>
    %44 = tpu.matmul %14, %43, %cst_35 {dimension_numbers = #tpu.dot_dimension_numbers<[1], [0], [0], [1], [0, 0, 1, 1], [], []>} : vector<16x16xf32>, vector<16x128xf32>, vector<16x128xf32> -> vector<16x128xf32>
    %c10 = arith.constant 10 : index
    %c0_36 = arith.constant 0 : index
    %c0_37 = arith.constant 0 : index
    %45 = vector.load %arg1[%c10, %c0_36, %c0_37] : memref<20x16x128xf32, #tpu.memory_space<vmem>>, vector<1x16x128xf32>
    %46 = vector.shape_cast %45 : vector<1x16x128xf32> to vector<16x128xf32>
    %cst_38 = arith.constant dense<0.000000e+00> : vector<16x128xf32>
    %47 = tpu.matmul %14, %46, %cst_38 {dimension_numbers = #tpu.dot_dimension_numbers<[1], [0], [0], [1], [0, 0, 1, 1], [], []>} : vector<16x16xf32>, vector<16x128xf32>, vector<16x128xf32> -> vector<16x128xf32>
    %c11 = arith.constant 11 : index
    %c0_39 = arith.constant 0 : index
    %c0_40 = arith.constant 0 : index
    %48 = vector.load %arg1[%c11, %c0_39, %c0_40] : memref<20x16x128xf32, #tpu.memory_space<vmem>>, vector<1x16x128xf32>
    %49 = vector.shape_cast %48 : vector<1x16x128xf32> to vector<16x128xf32>
    %cst_41 = arith.constant dense<0.000000e+00> : vector<16x128xf32>
    %50 = tpu.matmul %14, %49, %cst_41 {dimension_numbers = #tpu.dot_dimension_numbers<[1], [0], [0], [1], [0, 0, 1, 1], [], []>} : vector<16x16xf32>, vector<16x128xf32>, vector<16x128xf32> -> vector<16x128xf32>
    %c12 = arith.constant 12 : index
    %c0_42 = arith.constant 0 : index
    %c0_43 = arith.constant 0 : index
    %51 = vector.load %arg1[%c12, %c0_42, %c0_43] : memref<20x16x128xf32, #tpu.memory_space<vmem>>, vector<1x16x128xf32>
    %52 = vector.shape_cast %51 : vector<1x16x128xf32> to vector<16x128xf32>
    %cst_44 = arith.constant dense<0.000000e+00> : vector<16x128xf32>
    %53 = tpu.matmul %14, %52, %cst_44 {dimension_numbers = #tpu.dot_dimension_numbers<[1], [0], [0], [1], [0, 0, 1, 1], [], []>} : vector<16x16xf32>, vector<16x128xf32>, vector<16x128xf32> -> vector<16x128xf32>
    %c13 = arith.constant 13 : index
    %c0_45 = arith.constant 0 : index
    %c0_46 = arith.constant 0 : index
    %54 = vector.load %arg1[%c13, %c0_45, %c0_46] : memref<20x16x128xf32, #tpu.memory_space<vmem>>, vector<1x16x128xf32>
    %55 = vector.shape_cast %54 : vector<1x16x128xf32> to vector<16x128xf32>
    %cst_47 = arith.constant dense<0.000000e+00> : vector<16x128xf32>
    %56 = tpu.matmul %14, %55, %cst_47 {dimension_numbers = #tpu.dot_dimension_numbers<[1], [0], [0], [1], [0, 0, 1, 1], [], []>} : vector<16x16xf32>, vector<16x128xf32>, vector<16x128xf32> -> vector<16x128xf32>
    %c14 = arith.constant 14 : index
    %c0_48 = arith.constant 0 : index
    %c0_49 = arith.constant 0 : index
    %57 = vector.load %arg1[%c14, %c0_48, %c0_49] : memref<20x16x128xf32, #tpu.memory_space<vmem>>, vector<1x16x128xf32>
    %58 = vector.shape_cast %57 : vector<1x16x128xf32> to vector<16x128xf32>
    %cst_50 = arith.constant dense<0.000000e+00> : vector<16x128xf32>
    %59 = tpu.matmul %14, %58, %cst_50 {dimension_numbers = #tpu.dot_dimension_numbers<[1], [0], [0], [1], [0, 0, 1, 1], [], []>} : vector<16x16xf32>, vector<16x128xf32>, vector<16x128xf32> -> vector<16x128xf32>
    %c15 = arith.constant 15 : index
    %c0_51 = arith.constant 0 : index
    %c0_52 = arith.constant 0 : index
    %60 = vector.load %arg1[%c15, %c0_51, %c0_52] : memref<20x16x128xf32, #tpu.memory_space<vmem>>, vector<1x16x128xf32>
    %61 = vector.shape_cast %60 : vector<1x16x128xf32> to vector<16x128xf32>
    %cst_53 = arith.constant dense<0.000000e+00> : vector<16x128xf32>
    %62 = tpu.matmul %14, %61, %cst_53 {dimension_numbers = #tpu.dot_dimension_numbers<[1], [0], [0], [1], [0, 0, 1, 1], [], []>} : vector<16x16xf32>, vector<16x128xf32>, vector<16x128xf32> -> vector<16x128xf32>
    %c16 = arith.constant 16 : index
    %c0_54 = arith.constant 0 : index
    %c0_55 = arith.constant 0 : index
    %63 = vector.load %arg1[%c16, %c0_54, %c0_55] : memref<20x16x128xf32, #tpu.memory_space<vmem>>, vector<1x16x128xf32>
    %64 = vector.shape_cast %63 : vector<1x16x128xf32> to vector<16x128xf32>
    %cst_56 = arith.constant dense<0.000000e+00> : vector<16x128xf32>
    %65 = tpu.matmul %14, %64, %cst_56 {dimension_numbers = #tpu.dot_dimension_numbers<[1], [0], [0], [1], [0, 0, 1, 1], [], []>} : vector<16x16xf32>, vector<16x128xf32>, vector<16x128xf32> -> vector<16x128xf32>
    %c17 = arith.constant 17 : index
    %c0_57 = arith.constant 0 : index
    %c0_58 = arith.constant 0 : index
    %66 = vector.load %arg1[%c17, %c0_57, %c0_58] : memref<20x16x128xf32, #tpu.memory_space<vmem>>, vector<1x16x128xf32>
    %67 = vector.shape_cast %66 : vector<1x16x128xf32> to vector<16x128xf32>
    %cst_59 = arith.constant dense<0.000000e+00> : vector<16x128xf32>
    %68 = tpu.matmul %14, %67, %cst_59 {dimension_numbers = #tpu.dot_dimension_numbers<[1], [0], [0], [1], [0, 0, 1, 1], [], []>} : vector<16x16xf32>, vector<16x128xf32>, vector<16x128xf32> -> vector<16x128xf32>
    %c18 = arith.constant 18 : index
    %c0_60 = arith.constant 0 : index
    %c0_61 = arith.constant 0 : index
    %69 = vector.load %arg1[%c18, %c0_60, %c0_61] : memref<20x16x128xf32, #tpu.memory_space<vmem>>, vector<1x16x128xf32>
    %70 = vector.shape_cast %69 : vector<1x16x128xf32> to vector<16x128xf32>
    %cst_62 = arith.constant dense<0.000000e+00> : vector<16x128xf32>
    %71 = tpu.matmul %14, %70, %cst_62 {dimension_numbers = #tpu.dot_dimension_numbers<[1], [0], [0], [1], [0, 0, 1, 1], [], []>} : vector<16x16xf32>, vector<16x128xf32>, vector<16x128xf32> -> vector<16x128xf32>
    %c19 = arith.constant 19 : index
    %c0_63 = arith.constant 0 : index
    %c0_64 = arith.constant 0 : index
    %72 = vector.load %arg1[%c19, %c0_63, %c0_64] : memref<20x16x128xf32, #tpu.memory_space<vmem>>, vector<1x16x128xf32>
    %73 = vector.shape_cast %72 : vector<1x16x128xf32> to vector<16x128xf32>
    %cst_65 = arith.constant dense<0.000000e+00> : vector<16x128xf32>
    %74 = tpu.matmul %14, %73, %cst_65 {dimension_numbers = #tpu.dot_dimension_numbers<[1], [0], [0], [1], [0, 0, 1, 1], [], []>} : vector<16x16xf32>, vector<16x128xf32>, vector<16x128xf32> -> vector<16x128xf32>
    %75 = vector.shape_cast %17 : vector<16x128xf32> to vector<1x16x128xf32>
    %76 = vector.shape_cast %20 : vector<16x128xf32> to vector<1x16x128xf32>
    %77 = vector.shape_cast %23 : vector<16x128xf32> to vector<1x16x128xf32>
    %78 = vector.shape_cast %26 : vector<16x128xf32> to vector<1x16x128xf32>
    %79 = vector.shape_cast %29 : vector<16x128xf32> to vector<1x16x128xf32>
    %80 = vector.shape_cast %32 : vector<16x128xf32> to vector<1x16x128xf32>
    %81 = vector.shape_cast %35 : vector<16x128xf32> to vector<1x16x128xf32>
    %82 = vector.shape_cast %38 : vector<16x128xf32> to vector<1x16x128xf32>
    %83 = vector.shape_cast %41 : vector<16x128xf32> to vector<1x16x128xf32>
    %84 = vector.shape_cast %44 : vector<16x128xf32> to vector<1x16x128xf32>
    %85 = vector.shape_cast %47 : vector<16x128xf32> to vector<1x16x128xf32>
    %86 = vector.shape_cast %50 : vector<16x128xf32> to vector<1x16x128xf32>
    %87 = vector.shape_cast %53 : vector<16x128xf32> to vector<1x16x128xf32>
    %88 = vector.shape_cast %56 : vector<16x128xf32> to vector<1x16x128xf32>
    %89 = vector.shape_cast %59 : vector<16x128xf32> to vector<1x16x128xf32>
    %90 = vector.shape_cast %62 : vector<16x128xf32> to vector<1x16x128xf32>
    %91 = vector.shape_cast %65 : vector<16x128xf32> to vector<1x16x128xf32>
    %92 = vector.shape_cast %68 : vector<16x128xf32> to vector<1x16x128xf32>
    %93 = vector.shape_cast %71 : vector<16x128xf32> to vector<1x16x128xf32>
    %94 = vector.shape_cast %74 : vector<16x128xf32> to vector<1x16x128xf32>
    %95 = tpu.concatenate %75, %76, %77, %78, %79, %80, %81, %82, %83, %84, %85, %86, %87, %88, %89, %90 in 0 : vector<1x16x128xf32>, vector<1x16x128xf32>, vector<1x16x128xf32>, vector<1x16x128xf32>, vector<1x16x128xf32>, vector<1x16x128xf32>, vector<1x16x128xf32>, vector<1x16x128xf32>, vector<1x16x128xf32>, vector<1x16x128xf32>, vector<1x16x128xf32>, vector<1x16x128xf32>, vector<1x16x128xf32>, vector<1x16x128xf32>, vector<1x16x128xf32>, vector<1x16x128xf32> -> vector<16x16x128xf32>
    %96 = tpu.concatenate %91, %92, %93, %94 in 0 : vector<1x16x128xf32>, vector<1x16x128xf32>, vector<1x16x128xf32>, vector<1x16x128xf32> -> vector<4x16x128xf32>
    %97 = tpu.concatenate %95, %96 in 0 : vector<16x16x128xf32>, vector<4x16x128xf32> -> vector<20x16x128xf32>
    %98 = vector.shape_cast %8 : vector<20x128xi1> to vector<1x20x128xi1>
    %99 = vector.shape_cast %98 : vector<1x20x128xi1> to vector<1x20x128xi1>
    %100 = vector.broadcast %99 : vector<1x20x128xi1> to vector<3x20x128xi1>
    %cst_66 = arith.constant 0.000000e+00 : f32
    %101 = vector.broadcast %cst_66 : f32 to vector<3x20x128xf32>
    %102 = arith.extui %8 : vector<20x128xi1> to vector<20x128xi32>
    %103 = arith.sitofp %102 : vector<20x128xi32> to vector<20x128xf32>
    %104 = vector.broadcast %13 : vector<1x128xf32> to vector<20x128xf32>
    %105 = arith.mulf %103, %104 : vector<20x128xf32>
    %106 = vector.shape_cast %105 : vector<20x128xf32> to vector<20x1x128xf32>
    %107 = vector.broadcast %106 : vector<20x1x128xf32> to vector<20x16x128xf32>
    %108 = arith.mulf %107, %97 : vector<20x16x128xf32>
    %cst_67 = arith.constant dense<0.000000e+00> : vector<16x128xf32>
    %109 = vector.multi_reduction <add>, %108, %cst_67 [0] : vector<20x16x128xf32> to vector<16x128xf32>
    %110 = vector.shape_cast %109 : vector<16x128xf32> to vector<1x16x128xf32>
    %111 = vector.shape_cast %110 : vector<1x16x128xf32> to vector<1x16x128xf32>
    %112 = vector.broadcast %111 : vector<1x16x128xf32> to vector<3x16x128xf32>
    %113 = arith.mulf %112, %112 : vector<3x16x128xf32>
    %cst_68 = arith.constant dense<0.000000e+00> : vector<3x128xf32>
    %114 = vector.multi_reduction <add>, %113, %cst_68 [1] : vector<3x16x128xf32> to vector<3x128xf32>
    %115 = vector.shape_cast %114 : vector<3x128xf32> to vector<3x1x128xf32>
    %cst_69 = arith.constant 1.000000e+00 : f32
    %116 = vector.broadcast %cst_69 : f32 to vector<3x1x128xf32>
    %117 = arith.addf %116, %115 : vector<3x1x128xf32>
    %118 = tpu.reciprocal %117 {approx = true} : vector<3x1x128xf32> -> vector<3x1x128xf32>
    %119 = arith.mulf %115, %118 : vector<3x1x128xf32>
    %cst_70 = arith.constant 9.99999971E-10 : f32
    %120 = vector.broadcast %cst_70 : f32 to vector<3x1x128xf32>
    %121 = arith.addf %115, %120 : vector<3x1x128xf32>
    %122 = math.rsqrt %121 : vector<3x1x128xf32>
    %123 = arith.mulf %119, %122 : vector<3x1x128xf32>
    %124 = vector.broadcast %123 : vector<3x1x128xf32> to vector<3x16x128xf32>
    %125 = arith.mulf %124, %112 : vector<3x16x128xf32>
    %126 = vector.shape_cast %125 : vector<3x16x128xf32> to vector<3x1x16x128xf32>
    %127 = vector.shape_cast %97 : vector<20x16x128xf32> to vector<1x20x16x128xf32>
    %128 = vector.broadcast %126 : vector<3x1x16x128xf32> to vector<3x20x16x128xf32>
    %129 = vector.broadcast %127 : vector<1x20x16x128xf32> to vector<3x20x16x128xf32>
    %130 = arith.mulf %128, %129 : vector<3x20x16x128xf32>
    %cst_71 = arith.constant dense<0.000000e+00> : vector<3x20x128xf32>
    %131 = vector.multi_reduction <add>, %130, %cst_71 [2] : vector<3x20x16x128xf32> to vector<3x20x128xf32>
    %132 = arith.addf %101, %131 : vector<3x20x128xf32>
    %cst_72 = arith.constant -1.000000e+09 : f32
    %133 = vector.broadcast %cst_72 : f32 to vector<3x20x128xf32>
    %134 = arith.select %100, %132, %133 : vector<3x20x128xi1>, vector<3x20x128xf32>
    %cst_73 = arith.constant dense<0xFF800000> : vector<3x128xf32>
    %135 = vector.multi_reduction <maximumf>, %134, %cst_73 [1] : vector<3x20x128xf32> to vector<3x128xf32>
    %136 = vector.shape_cast %135 : vector<3x128xf32> to vector<3x1x128xf32>
    %137 = vector.broadcast %136 : vector<3x1x128xf32> to vector<3x20x128xf32>
    %138 = arith.subf %134, %137 : vector<3x20x128xf32>
    %139 = math.exp %138 : vector<3x20x128xf32>
    %cst_74 = arith.constant dense<0.000000e+00> : vector<3x128xf32>
    %140 = vector.multi_reduction <add>, %139, %cst_74 [1] : vector<3x20x128xf32> to vector<3x128xf32>
    %141 = vector.shape_cast %140 : vector<3x128xf32> to vector<3x1x128xf32>
    %142 = tpu.reciprocal %141 {approx = true} : vector<3x1x128xf32> -> vector<3x1x128xf32>
    %143 = vector.broadcast %142 : vector<3x1x128xf32> to vector<3x20x128xf32>
    %144 = arith.mulf %139, %143 : vector<3x20x128xf32>
    %145 = vector.shape_cast %144 : vector<3x20x128xf32> to vector<3x20x1x128xf32>
    %146 = vector.shape_cast %97 : vector<20x16x128xf32> to vector<1x20x16x128xf32>
    %147 = vector.broadcast %145 : vector<3x20x1x128xf32> to vector<3x20x16x128xf32>
    %148 = vector.broadcast %146 : vector<1x20x16x128xf32> to vector<3x20x16x128xf32>
    %149 = arith.mulf %147, %148 : vector<3x20x16x128xf32>
    %cst_75 = arith.constant dense<0.000000e+00> : vector<3x16x128xf32>
    %150 = vector.multi_reduction <add>, %149, %cst_75 [1] : vector<3x20x16x128xf32> to vector<3x16x128xf32>
    %151 = arith.mulf %150, %150 : vector<3x16x128xf32>
    %cst_76 = arith.constant dense<0.000000e+00> : vector<3x128xf32>
    %152 = vector.multi_reduction <add>, %151, %cst_76 [1] : vector<3x16x128xf32> to vector<3x128xf32>
    %153 = vector.shape_cast %152 : vector<3x128xf32> to vector<3x1x128xf32>
    %cst_77 = arith.constant 1.000000e+00 : f32
    %154 = vector.broadcast %cst_77 : f32 to vector<3x1x128xf32>
    %155 = arith.addf %154, %153 : vector<3x1x128xf32>
    %156 = tpu.reciprocal %155 {approx = true} : vector<3x1x128xf32> -> vector<3x1x128xf32>
    %157 = arith.mulf %153, %156 : vector<3x1x128xf32>
    %cst_78 = arith.constant 9.99999971E-10 : f32
    %158 = vector.broadcast %cst_78 : f32 to vector<3x1x128xf32>
    %159 = arith.addf %153, %158 : vector<3x1x128xf32>
    %160 = math.rsqrt %159 : vector<3x1x128xf32>
    %161 = arith.mulf %157, %160 : vector<3x1x128xf32>
    %162 = vector.broadcast %161 : vector<3x1x128xf32> to vector<3x16x128xf32>
    %163 = arith.mulf %162, %150 : vector<3x16x128xf32>
    %164 = vector.shape_cast %163 : vector<3x16x128xf32> to vector<3x1x16x128xf32>
    %165 = vector.shape_cast %97 : vector<20x16x128xf32> to vector<1x20x16x128xf32>
    %166 = vector.broadcast %164 : vector<3x1x16x128xf32> to vector<3x20x16x128xf32>
    %167 = vector.broadcast %165 : vector<1x20x16x128xf32> to vector<3x20x16x128xf32>
    %168 = arith.mulf %166, %167 : vector<3x20x16x128xf32>
    %cst_79 = arith.constant dense<0.000000e+00> : vector<3x20x128xf32>
    %169 = vector.multi_reduction <add>, %168, %cst_79 [2] : vector<3x20x16x128xf32> to vector<3x20x128xf32>
    %170 = arith.addf %132, %169 : vector<3x20x128xf32>
    %cst_80 = arith.constant -1.000000e+09 : f32
    %171 = vector.broadcast %cst_80 : f32 to vector<3x20x128xf32>
    %172 = arith.select %100, %170, %171 : vector<3x20x128xi1>, vector<3x20x128xf32>
    %cst_81 = arith.constant dense<0xFF800000> : vector<3x128xf32>
    %173 = vector.multi_reduction <maximumf>, %172, %cst_81 [1] : vector<3x20x128xf32> to vector<3x128xf32>
    %174 = vector.shape_cast %173 : vector<3x128xf32> to vector<3x1x128xf32>
    %175 = vector.broadcast %174 : vector<3x1x128xf32> to vector<3x20x128xf32>
    %176 = arith.subf %172, %175 : vector<3x20x128xf32>
    %177 = math.exp %176 : vector<3x20x128xf32>
    %cst_82 = arith.constant dense<0.000000e+00> : vector<3x128xf32>
    %178 = vector.multi_reduction <add>, %177, %cst_82 [1] : vector<3x20x128xf32> to vector<3x128xf32>
    %179 = vector.shape_cast %178 : vector<3x128xf32> to vector<3x1x128xf32>
    %180 = tpu.reciprocal %179 {approx = true} : vector<3x1x128xf32> -> vector<3x1x128xf32>
    %181 = vector.broadcast %180 : vector<3x1x128xf32> to vector<3x20x128xf32>
    %182 = arith.mulf %177, %181 : vector<3x20x128xf32>
    %183 = vector.shape_cast %182 : vector<3x20x128xf32> to vector<3x20x1x128xf32>
    %184 = vector.shape_cast %97 : vector<20x16x128xf32> to vector<1x20x16x128xf32>
    %185 = vector.broadcast %183 : vector<3x20x1x128xf32> to vector<3x20x16x128xf32>
    %186 = vector.broadcast %184 : vector<1x20x16x128xf32> to vector<3x20x16x128xf32>
    %187 = arith.mulf %185, %186 : vector<3x20x16x128xf32>
    %cst_83 = arith.constant dense<0.000000e+00> : vector<3x16x128xf32>
    %188 = vector.multi_reduction <add>, %187, %cst_83 [1] : vector<3x20x16x128xf32> to vector<3x16x128xf32>
    %189 = arith.mulf %188, %188 : vector<3x16x128xf32>
    %cst_84 = arith.constant dense<0.000000e+00> : vector<3x128xf32>
    %190 = vector.multi_reduction <add>, %189, %cst_84 [1] : vector<3x16x128xf32> to vector<3x128xf32>
    %191 = vector.shape_cast %190 : vector<3x128xf32> to vector<3x1x128xf32>
    %cst_85 = arith.constant 1.000000e+00 : f32
    %192 = vector.broadcast %cst_85 : f32 to vector<3x1x128xf32>
    %193 = arith.addf %192, %191 : vector<3x1x128xf32>
    %194 = tpu.reciprocal %193 {approx = true} : vector<3x1x128xf32> -> vector<3x1x128xf32>
    %195 = arith.mulf %191, %194 : vector<3x1x128xf32>
    %cst_86 = arith.constant 9.99999971E-10 : f32
    %196 = vector.broadcast %cst_86 : f32 to vector<3x1x128xf32>
    %197 = arith.addf %191, %196 : vector<3x1x128xf32>
    %198 = math.rsqrt %197 : vector<3x1x128xf32>
    %199 = arith.mulf %195, %198 : vector<3x1x128xf32>
    %200 = vector.broadcast %199 : vector<3x1x128xf32> to vector<3x16x128xf32>
    %201 = arith.mulf %200, %188 : vector<3x16x128xf32>
    %202 = vector.shape_cast %201 : vector<3x16x128xf32> to vector<3x1x16x128xf32>
    %203 = vector.shape_cast %201 : vector<3x16x128xf32> to vector<1x3x16x128xf32>
    %204 = vector.broadcast %202 : vector<3x1x16x128xf32> to vector<3x3x16x128xf32>
    %205 = vector.broadcast %203 : vector<1x3x16x128xf32> to vector<3x3x16x128xf32>
    %206 = arith.mulf %204, %205 : vector<3x3x16x128xf32>
    %cst_87 = arith.constant dense<0.000000e+00> : vector<3x3x128xf32>
    %207 = vector.multi_reduction <add>, %206, %cst_87 [2] : vector<3x3x16x128xf32> to vector<3x3x128xf32>
    %208 = arith.mulf %201, %201 : vector<3x16x128xf32>
    %cst_88 = arith.constant dense<0.000000e+00> : vector<3x128xf32>
    %209 = vector.multi_reduction <add>, %208, %cst_88 [1] : vector<3x16x128xf32> to vector<3x128xf32>
    %cst_89 = arith.constant 1.000000e+00 : f32
    %210 = vector.broadcast %cst_89 : f32 to vector<3x128xf32>
    %211 = arith.divf %210, %209 : vector<3x128xf32>
    %212 = vector.shape_cast %211 : vector<3x128xf32> to vector<3x1x128xf32>
    %213 = vector.broadcast %212 : vector<3x1x128xf32> to vector<3x3x128xf32>
    %214 = arith.mulf %207, %213 : vector<3x3x128xf32>
    %cst_90 = arith.constant dense<0.000000e+00> : vector<128xf32>
    %215 = vector.multi_reduction <add>, %214, %cst_90 [0, 1] : vector<3x3x128xf32> to vector<128xf32>
    %216 = vector.shape_cast %215 : vector<128xf32> to vector<1x1x128xf32>
    %cst_91 = arith.constant 9.000000e+00 : f32
    %217 = vector.broadcast %cst_91 : f32 to vector<1x1x128xf32>
    %218 = arith.divf %216, %217 : vector<1x1x128xf32>
    %219 = vector.shape_cast %218 : vector<1x1x128xf32> to vector<1x128xf32>
    %c0_92 = arith.constant 0 : index
    %c0_93 = arith.constant 0 : index
    %220 = vector.load %arg9[%c0_92, %c0_93] : memref<1x128xf32, #tpu.memory_space<vmem>>, vector<1x128xf32>
    tpu.vector_store %arg9[%c0_92, %c0_93], %219 {strides = array<i32>} : memref<1x128xf32, #tpu.memory_space<vmem>>, vector<1x128xf32>,
    %221 = vector.extract_strided_slice %201 {offsets = [0, 0, 0], sizes = [1, 16, 128], strides = [1, 1, 1]} : vector<3x16x128xf32> to vector<1x16x128xf32>
    %222 = vector.shape_cast %221 : vector<1x16x128xf32> to vector<16x128xf32>
    %223 = tpu.transpose %222, [1, 0] : vector<16x128xf32> -> vector<128x16xf32>
    %224 = vector.extract_strided_slice %201 {offsets = [1, 0, 0], sizes = [1, 16, 128], strides = [1, 1, 1]} : vector<3x16x128xf32> to vector<1x16x128xf32>
    %225 = vector.shape_cast %224 : vector<1x16x128xf32> to vector<16x128xf32>
    %226 = tpu.transpose %225, [1, 0] : vector<16x128xf32> -> vector<128x16xf32>
    %227 = vector.extract_strided_slice %201 {offsets = [2, 0, 0], sizes = [1, 16, 128], strides = [1, 1, 1]} : vector<3x16x128xf32> to vector<1x16x128xf32>
    %228 = vector.shape_cast %227 : vector<1x16x128xf32> to vector<16x128xf32>
    %229 = tpu.transpose %228, [1, 0] : vector<16x128xf32> -> vector<128x16xf32>
    %230 = tpu.concatenate %223, %226, %229 in 0 : vector<128x16xf32>, vector<128x16xf32>, vector<128x16xf32> -> vector<384x16xf32>
    %c0_94 = arith.constant 0 : index
    %c0_95 = arith.constant 0 : index
    %231 = vector.load %arg4[%c0_94, %c0_95] : memref<16x32xf32, #tpu.memory_space<vmem>>, vector<16x32xf32>
    %cst_96 = arith.constant dense<0.000000e+00> : vector<384x32xf32>
    %232 = tpu.matmul %230, %231, %cst_96 {dimension_numbers = #tpu.dot_dimension_numbers<[1], [0], [0], [1], [0, 0, 1, 1], [], []>} : vector<384x16xf32>, vector<16x32xf32>, vector<384x32xf32> -> vector<384x32xf32>
    %c0_97 = arith.constant 0 : index
    %c0_98 = arith.constant 0 : index
    %233 = vector.load %arg5[%c0_97, %c0_98] : memref<1x32xf32, #tpu.memory_space<vmem>>, vector<1x32xf32>
    %234 = vector.broadcast %233 : vector<1x32xf32> to vector<384x32xf32>
    %235 = arith.addf %232, %234 : vector<384x32xf32>
    %cst_99 = arith.constant 0.000000e+00 : f32
    %236 = vector.broadcast %cst_99 : f32 to vector<384x32xf32>
    %237 = arith.maximumf %235, %236 : vector<384x32xf32>
    %c0_100 = arith.constant 0 : index
    %c0_101 = arith.constant 0 : index
    %238 = vector.load %arg6[%c0_100, %c0_101] : memref<32x256xf32, #tpu.memory_space<vmem>>, vector<32x256xf32>
    %cst_102 = arith.constant dense<0.000000e+00> : vector<384x256xf32>
    %239 = tpu.matmul %237, %238, %cst_102 {dimension_numbers = #tpu.dot_dimension_numbers<[1], [0], [0], [1], [0, 0, 1, 1], [], []>} : vector<384x32xf32>, vector<32x256xf32>, vector<384x256xf32> -> vector<384x256xf32>
    %c0_103 = arith.constant 0 : index
    %c0_104 = arith.constant 0 : index
    %240 = vector.load %arg7[%c0_103, %c0_104] : memref<1x256xf32, #tpu.memory_space<vmem>>, vector<1x256xf32>
    %241 = vector.broadcast %240 : vector<1x256xf32> to vector<384x256xf32>
    %242 = arith.addf %239, %241 : vector<384x256xf32>
    %243 = vector.extract_strided_slice %242 {offsets = [0, 0], sizes = [128, 256], strides = [1, 1]} : vector<384x256xf32> to vector<128x256xf32>
    %c0_105 = arith.constant 0 : index
    %c0_106 = arith.constant 0 : index
    %244 = vector.load %arg8[%c0_105, %c0_106] : memref<128x768xf32, #tpu.memory_space<vmem>>, vector<128x256xf32>
    tpu.vector_store %arg8[%c0_105, %c0_106], %243 {strides = array<i32>} : memref<128x768xf32, #tpu.memory_space<vmem>>, vector<128x256xf32>,
    %245 = vector.extract_strided_slice %242 {offsets = [128, 0], sizes = [128, 256], strides = [1, 1]} : vector<384x256xf32> to vector<128x256xf32>
    %c0_107 = arith.constant 0 : index
    %c256 = arith.constant 256 : index
    %246 = vector.load %arg8[%c0_107, %c256] : memref<128x768xf32, #tpu.memory_space<vmem>>, vector<128x256xf32>
    tpu.vector_store %arg8[%c0_107, %c256], %245 {strides = array<i32>} : memref<128x768xf32, #tpu.memory_space<vmem>>, vector<128x256xf32>,
    %247 = vector.extract_strided_slice %242 {offsets = [256, 0], sizes = [128, 256], strides = [1, 1]} : vector<384x256xf32> to vector<128x256xf32>
    %c0_108 = arith.constant 0 : index
    %c512 = arith.constant 512 : index
    %248 = vector.load %arg8[%c0_108, %c512] : memref<128x768xf32, #tpu.memory_space<vmem>>, vector<128x256xf32>
    tpu.vector_store %arg8[%c0_108, %c512], %247 {strides = array<i32>} : memref<128x768xf32, #tpu.memory_space<vmem>>, vector<128x256xf32>,
    return
  }
  func.func @transform_0(%arg0: i32) -> (i32, i32, i32) {
    %c0_i32 = arith.constant 0 : i32
    %c0_i32_0 = arith.constant 0 : i32
    %c0_i32_1 = arith.constant 0 : i32
    return %c0_i32, %c0_i32_0, %arg0 : i32, i32, i32
  }
  func.func @transform_1(%arg0: i32) -> (i32, i32) {
    %c0_i32 = arith.constant 0 : i32
    %c0_i32_0 = arith.constant 0 : i32
    return %c0_i32, %arg0 : i32, i32
  }
  func.func @transform_2(%arg0: i32) -> (i32, i32) {
    %c0_i32 = arith.constant 0 : i32
    %c0_i32_0 = arith.constant 0 : i32
    %c0_i32_1 = arith.constant 0 : i32
    return %c0_i32, %c0_i32_0 : i32, i32
  }
  func.func @transform_3(%arg0: i32) -> (i32, i32) {
    %c0_i32 = arith.constant 0 : i32
    %c0_i32_0 = arith.constant 0 : i32
    %c0_i32_1 = arith.constant 0 : i32
    return %c0_i32, %c0_i32_0 : i32, i32
  }
  func.func @transform_4(%arg0: i32) -> (i32, i32) {
    %c0_i32 = arith.constant 0 : i32
    %c0_i32_0 = arith.constant 0 : i32
    %c0_i32_1 = arith.constant 0 : i32
    return %c0_i32, %c0_i32_0 : i32, i32
  }
  func.func @transform_5(%arg0: i32) -> (i32, i32) {
    %c0_i32 = arith.constant 0 : i32
    %c0_i32_0 = arith.constant 0 : i32
    %c0_i32_1 = arith.constant 0 : i32
    return %c0_i32, %c0_i32_0 : i32, i32
  }
  func.func @transform_6(%arg0: i32) -> (i32, i32) {
    %c0_i32 = arith.constant 0 : i32
    %c0_i32_0 = arith.constant 0 : i32
    %c0_i32_1 = arith.constant 0 : i32
    return %c0_i32, %c0_i32_0 : i32, i32
  }
  func.func @transform_7(%arg0: i32) -> (i32, i32) {
    %c0_i32 = arith.constant 0 : i32
    %c0_i32_0 = arith.constant 0 : i32
    return %arg0, %c0_i32 : i32, i32
  }
  func.func @transform_8(%arg0: i32) -> (i32, i32) {
    %c0_i32 = arith.constant 0 : i32
    %c0_i32_0 = arith.constant 0 : i32
    return %c0_i32, %arg0 : i32, i32
  }
}

</mosaic_0001>

<llo_original>
// kernel: tpu_custom_call.1
$region0: #{tpu_custom_call.1}
  #allocation0 [shape = 'u32[]', space=smem, size = 0x4, offset = 0x4, fixed_abs, tag = 'smem constant byte address 0x4 - core index']
  #allocation1 [shape = 'u32[144,128]{1,0:T(1,128)}', space=vmem, size = 0x12000, scoped, tag = 'internal scratch']
  %s0 = inlined_call_operand.hbm [shape: f32[20,16,256], index: 0, kind: input, shape index: {}]
  %s1 = inlined_call_operand.hbm [shape: s32[20,256], index: 1, kind: input, shape index: {}]
  %s2 = inlined_call_operand.hbm [shape: f32[16,16], index: 2, kind: input, shape index: {}]
  %s3 = inlined_call_operand.hbm [shape: f32[16,32], index: 3, kind: input, shape index: {}]
  %s4 = inlined_call_operand.vmem [shape: f32[1,32], index: 4, kind: input, shape index: {}]
  %s5 = inlined_call_operand.hbm [shape: f32[32,256], index: 5, kind: input, shape index: {}]
  %s6 = inlined_call_operand.vmem [shape: f32[1,256], index: 6, kind: input, shape index: {}]
  %s7 = inlined_call_operand.hbm [shape: f32[256,768], index: 7, kind: output, shape index: {0}]
  %s8 = inlined_call_operand.hbm [shape: f32[1,256], index: 8, kind: output, shape index: {1}]
  %9 = xla_tuple %s7, %s8
  %s10 = sld [smem:[#allocation0]]
  $region89: #{tpu_custom_call.1} parent=0
    _
  %s12 = ssub.s32 1, %s10
  %s13 = scalar_select 0, %s12, %s10
  $region1: #{tpu_custom_call.1} parent=0
    #allocation2 [shape = 'u8[327680]{0}', space=vmem, size = 0x50000, scoped, tag = 'input window, operand 0']
    #allocation3 [shape = 's32[2]{0}', space=sflag, size = 0x8, scoped, tag = 'scoped memory for tpu_custom_call.1']
    #allocation4 [shape = 's32[2]{0}', space=sflag, size = 0x8, scoped, tag = 'scoped memory for tpu_custom_call.1']
    #allocation5 [shape = 'u8[24576]{0}', space=vmem, size = 0x6000, scoped, tag = 'input window, operand 1']
    #allocation6 [shape = 's32[2]{0}', space=sflag, size = 0x8, scoped, tag = 'scoped memory for tpu_custom_call.1']
    #allocation7 [shape = 'u8[8192]{0}', space=vmem, size = 0x2000, scoped, tag = 'input window, operand 2, single buffered']
    #allocation8 [shape = 'u8[8192]{0}', space=vmem, size = 0x2000, scoped, tag = 'input window, operand 3, single buffered']
    #allocation9 [shape = 's32[1]{0}', space=sflag, size = 0x4, scoped, tag = 'scoped memory for tpu_custom_call.1']
    #allocation10 [shape = 'u8[32768]{0}', space=vmem, size = 0x8000, scoped, tag = 'input window, operand 5, single buffered']
    #allocation11 [shape = 'u8[786432]{0}', space=vmem, size = 0xc0000, scoped, tag = 'output window, operand 0']
    #allocation12 [shape = 'u8[1024]{0}', space=vmem, size = 0x400, scoped, tag = 'output window, operand 1']
    #allocation13 [shape = 's32[2]{0}', space=sflag, size = 0x8, scoped, tag = 'scoped memory for tpu_custom_call.1']
    %14 = vsyncpa [#allocation3], 0
    %s15 = scalar_lea.sflag [#allocation3], 1
    %16 = vsyncpa %s15, 0
    %17 = vsyncpa [#allocation6], 0
    %s18 = scalar_lea.sflag [#allocation6], 1
    %19 = vsyncpa %s18, 0
    %20 = vsyncpa [#allocation9], 0
    %21 = vsyncpa [#allocation4], 0
    %s22 = scalar_lea.sflag [#allocation4], 1
    %23 = vsyncpa %s22, 0
    %24 = vsyncpa [#allocation13], 0
    %s25 = scalar_lea.sflag [#allocation13], 1
    %26 = vsyncpa %s25, 0
    loop: start=0, step=1, limit=4
    $region2: #{tpu_custom_call.1} parent=1 // loop_pre_header
      _
    $region3: #{tpu_custom_call.1} parent=1 // loop_header
      %s28 = sphi 0, %s32
      %p29 = scmp.ge.s32.totalorder %s28, 4
      %s38 = sphi 0, %s40
      %s41 = sphi 0, %s38
      %s42 = sphi 0, %s41
      %s58 = sphi 0, %s42
      %s64 = sphi 0, %s66
      %s67 = sphi 0, %s64
      %s68 = sphi 0, %s67
      %s84 = sphi 0, %s68
      %s88 = sphi 0, %s88
      %s90 = sphi 0, %s88
      %s91 = sphi 0, %s90
      %s105 = sphi 0, %s91
      %s109 = sphi 0, %s109
      %s111 = sphi 0, %s109
      %s112 = sphi 0, %s111
      %s126 = sphi 0, %s112
      %s130 = sphi 0, %s130
      %s132 = sphi 0, %s130
      %s133 = sphi 0, %s132
      %s147 = sphi 0, %s133
      %s151 = sphi 0, %s151
      %s153 = sphi 0, %s151
      %s154 = sphi 0, %s153
      %s168 = sphi 0, %s154
      %s172 = sphi 0, %s172
      %s174 = sphi 0, %s172
      %s175 = sphi 0, %s174
      %s189 = sphi 0, %s175
      %s195 = sphi 0, %s197
      %s198 = sphi 0, %s195
      %s199 = sphi 0, %s198
      %s215 = sphi 0, %s199
      %s221 = sphi 0, %s223
      %s224 = sphi 0, %s221
      %s225 = sphi 0, %s224
      %s241 = sphi 0, %s225
    $region4: #{tpu_custom_call.1} parent=1 // loop_header_branch
      %31 = sbr.rel (%p29) target = $region8
    $region5: #{tpu_custom_call.1} parent=1 // loop_body
      %s33 = ssub.s32 %s28, 1
      %s34 = ssub.s32 %s28, 2
      %s35 = sadd.s32 %s28, 1
      %s36 = ssub.s32 %s28, %s35
      %p37 = scmp.eq.s32.totalorder %s36, 0
      %s39 = sadd.s32 %s38, 1
      %s40 = scalar_select %p37, %s38, %s39
      %p43 = pneg %p37
      %p44 = scmp.eq.s32.totalorder %s28, 1
      %p45 = por %p43, %p44
      %p46 = scmp.ne.s32.totalorder %s38, %s41
      %p47 = scmp.eq.s32.totalorder %s28, 0
      %p48 = por %p46, %p47
      %p49 = scmp.ne.s32.totalorder %s38, %s41
      %p50 = scmp.eq.s32.totalorder %s33, 1
      %p51 = por %p49, %p50
      %p52 = scmp.ne.s32.totalorder %s41, %s42
      %p53 = scmp.eq.s32.totalorder %s33, 0
      %p54 = por %p52, %p53
      %p55 = scmp.ne.s32.totalorder %s41, %s42
      %p56 = scmp.eq.s32.totalorder %s34, 1
      %p57 = por %p55, %p56
      %p59 = scmp.ne.s32.totalorder %s42, %s58
      %p60 = scmp.eq.s32.totalorder %s34, 0
      %p61 = por %p59, %p60
      %s62 = ssub.s32 %s28, %s35
      %p63 = scmp.eq.s32.totalorder %s62, 0
      %s65 = sadd.s32 %s64, 1
      %s66 = scalar_select %p63, %s64, %s65
      %p69 = pneg %p63
      %p70 = scmp.eq.s32.totalorder %s28, 1
      %p71 = por %p69, %p70
      %p72 = scmp.ne.s32.totalorder %s64, %s67
      %p73 = scmp.eq.s32.totalorder %s28, 0
      %p74 = por %p72, %p73
      %p75 = scmp.ne.s32.totalorder %s64, %s67
      %p76 = scmp.eq.s32.totalorder %s33, 1
      %p77 = por %p75, %p76
      %p78 = scmp.ne.s32.totalorder %s67, %s68
      %p79 = scmp.eq.s32.totalorder %s33, 0
      %p80 = por %p78, %p79
      %p81 = scmp.ne.s32.totalorder %s67, %s68
      %p82 = scmp.eq.s32.totalorder %s34, 1
      %p83 = por %p81, %p82
      %p85 = scmp.ne.s32.totalorder %s68, %s84
      %p86 = scmp.eq.s32.totalorder %s34, 0
      %p87 = por %p85, %p86
      %s89 = sadd.s32 %s88, 1
      %p92 = scmp.eq.s32.totalorder %s28, 1
      %p93 = scmp.ne.s32.totalorder %s88, %s90
      %p94 = scmp.eq.s32.totalorder %s28, 0
      %p95 = por %p93, %p94
      %p96 = scmp.ne.s32.totalorder %s88, %s90
      %p97 = scmp.eq.s32.totalorder %s33, 1
      %p98 = por %p96, %p97
      %p99 = scmp.ne.s32.totalorder %s90, %s91
      %p100 = scmp.eq.s32.totalorder %s33, 0
      %p101 = por %p99, %p100
      %p102 = scmp.ne.s32.totalorder %s90, %s91
      %p103 = scmp.eq.s32.totalorder %s34, 1
      %p104 = por %p102, %p103
      %p106 = scmp.ne.s32.totalorder %s91, %s105
      %p107 = scmp.eq.s32.totalorder %s34, 0
      %p108 = por %p106, %p107
      %s110 = sadd.s32 %s109, 1
      %p113 = scmp.eq.s32.totalorder %s28, 1
      %p114 = scmp.ne.s32.totalorder %s109, %s111
      %p115 = scmp.eq.s32.totalorder %s28, 0
      %p116 = por %p114, %p115
      %p117 = scmp.ne.s32.totalorder %s109, %s111
      %p118 = scmp.eq.s32.totalorder %s33, 1
      %p119 = por %p117, %p118
      %p120 = scmp.ne.s32.totalorder %s111, %s112
      %p121 = scmp.eq.s32.totalorder %s33, 0
      %p122 = por %p120, %p121
      %p123 = scmp.ne.s32.totalorder %s111, %s112
      %p124 = scmp.eq.s32.totalorder %s34, 1
      %p125 = por %p123, %p124
      %p127 = scmp.ne.s32.totalorder %s112, %s126
      %p128 = scmp.eq.s32.totalorder %s34, 0
      %p129 = por %p127, %p128
      %s131 = sadd.s32 %s130, 1
      %p134 = scmp.eq.s32.totalorder %s28, 1
      %p135 = scmp.ne.s32.totalorder %s130, %s132
      %p136 = scmp.eq.s32.totalorder %s28, 0
      %p137 = por %p135, %p136
      %p138 = scmp.ne.s32.totalorder %s130, %s132
      %p139 = scmp.eq.s32.totalorder %s33, 1
      %p140 = por %p138, %p139
      %p141 = scmp.ne.s32.totalorder %s132, %s133
      %p142 = scmp.eq.s32.totalorder %s33, 0
      %p143 = por %p141, %p142
      %p144 = scmp.ne.s32.totalorder %s132, %s133
      %p145 = scmp.eq.s32.totalorder %s34, 1
      %p146 = por %p144, %p145
      %p148 = scmp.ne.s32.totalorder %s133, %s147
      %p149 = scmp.eq.s32.totalorder %s34, 0
      %p150 = por %p148, %p149
      %s152 = sadd.s32 %s151, 1
      %p155 = scmp.eq.s32.totalorder %s28, 1
      %p156 = scmp.ne.s32.totalorder %s151, %s153
      %p157 = scmp.eq.s32.totalorder %s28, 0
      %p158 = por %p156, %p157
      %p159 = scmp.ne.s32.totalorder %s151, %s153
      %p160 = scmp.eq.s32.totalorder %s33, 1
      %p161 = por %p159, %p160
      %p162 = scmp.ne.s32.totalorder %s153, %s154
      %p163 = scmp.eq.s32.totalorder %s33, 0
      %p164 = por %p162, %p163
      %p165 = scmp.ne.s32.totalorder %s153, %s154
      %p166 = scmp.eq.s32.totalorder %s34, 1
      %p167 = por %p165, %p166
      %p169 = scmp.ne.s32.totalorder %s154, %s168
      %p170 = scmp.eq.s32.totalorder %s34, 0
      %p171 = por %p169, %p170
      %s173 = sadd.s32 %s172, 1
      %p176 = scmp.eq.s32.totalorder %s28, 1
      %p177 = scmp.ne.s32.totalorder %s172, %s174
      %p178 = scmp.eq.s32.totalorder %s28, 0
      %p179 = por %p177, %p178
      %p180 = scmp.ne.s32.totalorder %s172, %s174
      %p181 = scmp.eq.s32.totalorder %s33, 1
      %p182 = por %p180, %p181
      %p183 = scmp.ne.s32.totalorder %s174, %s175
      %p184 = scmp.eq.s32.totalorder %s33, 0
      %p185 = por %p183, %p184
      %p186 = scmp.ne.s32.totalorder %s174, %s175
      %p187 = scmp.eq.s32.totalorder %s34, 1
      %p188 = por %p186, %p187
      %p190 = scmp.ne.s32.totalorder %s175, %s189
      %p191 = scmp.eq.s32.totalorder %s34, 0
      %p192 = por %p190, %p191
      %s193 = ssub.s32 %s28, %s35
      %p194 = scmp.eq.s32.totalorder %s193, 0
      %s196 = sadd.s32 %s195, 1
      %s197 = scalar_select %p194, %s195, %s196
      %p200 = pneg %p194
      %p201 = scmp.eq.s32.totalorder %s28, 1
      %p202 = por %p200, %p201
      %p203 = scmp.ne.s32.totalorder %s195, %s198
      %p204 = scmp.eq.s32.totalorder %s28, 0
      %p205 = por %p203, %p204
      %p206 = scmp.ne.s32.totalorder %s195, %s198
      %p207 = scmp.eq.s32.totalorder %s33, 1
      %p208 = por %p206, %p207
      %p209 = scmp.ne.s32.totalorder %s198, %s199
      %p210 = scmp.eq.s32.totalorder %s33, 0
      %p211 = por %p209, %p210
      %p212 = scmp.ne.s32.totalorder %s198, %s199
      %p213 = scmp.eq.s32.totalorder %s34, 1
      %p214 = por %p212, %p213
      %p216 = scmp.ne.s32.totalorder %s199, %s215
      %p217 = scmp.eq.s32.totalorder %s34, 0
      %p218 = por %p216, %p217
      %s219 = ssub.s32 %s28, %s35
      %p220 = scmp.eq.s32.totalorder %s219, 0
      %s222 = sadd.s32 %s221, 1
      %s223 = scalar_select %p220, %s221, %s222
      %p226 = pneg %p220
      %p227 = scmp.eq.s32.totalorder %s28, 1
      %p228 = por %p226, %p227
      %p229 = scmp.ne.s32.totalorder %s221, %s224
      %p230 = scmp.eq.s32.totalorder %s28, 0
      %p231 = por %p229, %p230
      %p232 = scmp.ne.s32.totalorder %s221, %s224
      %p233 = scmp.eq.s32.totalorder %s33, 1
      %p234 = por %p232, %p233
      %p235 = scmp.ne.s32.totalorder %s224, %s225
      %p236 = scmp.eq.s32.totalorder %s33, 0
      %p237 = por %p235, %p236
      %p238 = scmp.ne.s32.totalorder %s224, %s225
      %p239 = scmp.eq.s32.totalorder %s34, 1
      %p240 = por %p238, %p239
      %p242 = scmp.ne.s32.totalorder %s225, %s241
      %p243 = scmp.eq.s32.totalorder %s34, 0
      %p244 = por %p242, %p243
      %p245 = scmp.le.s32.totalorder 1, %s28
      %p246 = scmp.lt.s32.totalorder %s28, 3
      %p247 = pnand %p245, %p246
      %p248 = pneg %p247
      // Predicated region
      $region9: #{tpu_custom_call.1} parent=5 // pred_check
        _
      $region10: #{tpu_custom_call.1} parent=5 // pred_check_branch
        %250 = sbr.rel (%p247) target = $region12
      $region11: #{tpu_custom_call.1} parent=5 // pred_region
        %s251 = ssub.s32 %s28, 1
        // Predicated region
        $region13: #{tpu_custom_call.1} parent=11 // pred_check
          %p252 = pneg %p101
        $region14: #{tpu_custom_call.1} parent=11 // pred_check_branch
          %254 = sbr.rel (%p252) target = $region16
        $region15: #{tpu_custom_call.1} parent=11 // pred_region
          %s256 = ssub.s32 256, 256
          %257 = vsyncadd [#allocation6], %s256
          %s258 = sshll.u32 [#allocation7], 4
          %s259 = int_to_ptr.vmem [resolvable:$true] %s258
          %264 = dma.hbm_to_vmem [thread:$0]  %s2, 256, %s259, [#allocation6], 128, 128, 8
        $region16: #{tpu_custom_call.1} parent=11 // pred_fallthru
          _
        // Predicated region
        $region17: #{tpu_custom_call.1} parent=11 // pred_check
          %p265 = pneg %p122
        $region18: #{tpu_custom_call.1} parent=11 // pred_check_branch
          %267 = sbr.rel (%p265) target = $region20
        $region19: #{tpu_custom_call.1} parent=11 // pred_region
          %s269 = ssub.s32 256, 256
          %270 = vsyncadd [#allocation9], %s269
          %s271 = sshll.u32 [#allocation8], 4
          %s272 = int_to_ptr.vmem [resolvable:$true] %s271
          %277 = dma.hbm_to_vmem [thread:$0]  %s3, 256, %s272, [#allocation9], 128, 128, 8
        $region20: #{tpu_custom_call.1} parent=11 // pred_fallthru
          _
        // Predicated region
        $region21: #{tpu_custom_call.1} parent=11 // pred_check
          %p278 = pneg %p143
        $region22: #{tpu_custom_call.1} parent=11 // pred_check_branch
          %280 = sbr.rel (%p278) target = $region24
        $region23: #{tpu_custom_call.1} parent=11 // pred_region
          _
        $region24: #{tpu_custom_call.1} parent=11 // pred_fallthru
          _
        // Predicated region
        $region25: #{tpu_custom_call.1} parent=11 // pred_check
          %p281 = pneg %p164
        $region26: #{tpu_custom_call.1} parent=11 // pred_check_branch
          %283 = sbr.rel (%p281) target = $region28
        $region27: #{tpu_custom_call.1} parent=11 // pred_region
          %s285 = ssub.s32 1024, 1024
          %286 = vsyncadd [#allocation9], %s285
          %s287 = sshll.u32 [#allocation10], 4
          %s288 = int_to_ptr.vmem [resolvable:$true] %s287
          %293 = dma.hbm_to_vmem [thread:$0]  %s5, 1024, %s288, [#allocation9], 256, 256, 16
        $region28: #{tpu_custom_call.1} parent=11 // pred_fallthru
          _
        // Predicated region
        $region29: #{tpu_custom_call.1} parent=11 // pred_check
          %p294 = pneg %p185
        $region30: #{tpu_custom_call.1} parent=11 // pred_check_branch
          %296 = sbr.rel (%p294) target = $region32
        $region31: #{tpu_custom_call.1} parent=11 // pred_region
          _
        $region32: #{tpu_custom_call.1} parent=11 // pred_fallthru
          _
      $region12: #{tpu_custom_call.1} parent=5 // pred_fallthru
        _
      %p297 = scmp.lt.s32.totalorder %s28, 2
      // Predicated region
      $region33: #{tpu_custom_call.1} parent=5 // pred_check
        %p298 = pneg %p297
      $region34: #{tpu_custom_call.1} parent=5 // pred_check_branch
        %300 = sbr.rel (%p298) target = $region36
      $region35: #{tpu_custom_call.1} parent=5 // pred_region
        // Predicated region
        $region37: #{tpu_custom_call.1} parent=35 // pred_check
          %p301 = pneg %p48
        $region38: #{tpu_custom_call.1} parent=35 // pred_check_branch
          %303 = sbr.rel (%p301) target = $region40
        $region39: #{tpu_custom_call.1} parent=35 // pred_region
          %s304 = sand.u32 %s38, 1
          %s305 = scalar_lea.sflag [#allocation3], %s304
          %s306 = sand.u32 %s38, 1
          %s307 = smul.addr %s306, 320
          %s308 = scalar_lea.vmem [#allocation2], %s307
          %s310 = ssub.s32 5120, 5120
          %311 = vsyncadd %s305, %s310
          %s312 = smul.addr %s28, 128
          %s313 = scalar_lea.hbm %s0, %s312
          %s314 = sshll.u32 %s308, 4
          %s315 = int_to_ptr.vmem [resolvable:$true] %s314
          %320 = dma.hbm_to_vmem [thread:$0]  %s313, 5120, %s315, %s305, 256, 128, 8
        $region40: #{tpu_custom_call.1} parent=35 // pred_fallthru
          _
        // Predicated region
        $region41: #{tpu_custom_call.1} parent=35 // pred_check
          %p321 = pneg %p74
        $region42: #{tpu_custom_call.1} parent=35 // pred_check_branch
          %323 = sbr.rel (%p321) target = $region44
        $region43: #{tpu_custom_call.1} parent=35 // pred_region
          %s324 = sand.u32 %s28, 1
          %s325 = scalar_lea.sflag [#allocation6], %s324
          %s326 = sand.u32 %s64, 1
          %s327 = smul.addr %s326, 24
          %s328 = scalar_lea.vmem [#allocation5], %s327
          %s330 = ssub.s32 384, 384
          %331 = vsyncadd %s325, %s330
          %s332 = smul.addr %s28, 128
          %s333 = scalar_lea.hbm %s1, %s332
          %s334 = sshll.u32 %s328, 4
          %s335 = int_to_ptr.vmem [resolvable:$true] %s334
          %340 = dma.hbm_to_vmem [thread:$0]  %s333, 384, %s335, %s325, 256, 128, 8
        $region44: #{tpu_custom_call.1} parent=35 // pred_fallthru
          _
      $region36: #{tpu_custom_call.1} parent=5 // pred_fallthru
        _
      %p341 = scmp.le.s32.totalorder 1, %s28
      %p342 = scmp.lt.s32.totalorder %s28, 3
      %p343 = pnand %p341, %p342
      %p344 = pneg %p343
      // Predicated region
      $region45: #{tpu_custom_call.1} parent=5 // pred_check
        _
      $region46: #{tpu_custom_call.1} parent=5 // pred_check_branch
        %346 = sbr.rel (%p343) target = $region48
      $region47: #{tpu_custom_call.1} parent=5 // pred_region
        %s347 = ssub.s32 %s28, 1
        %s348 = sand.u32 %s41, 1
        %s349 = scalar_lea.sflag [#allocation3], %s348
        %s350 = sand.u32 %s41, 1
        %s351 = smul.addr %s350, 320
        %s352 = scalar_lea.vmem [#allocation2], %s351
        // Predicated region
        $region49: #{tpu_custom_call.1} parent=47 // pred_check
          %p353 = pneg %p54
        $region50: #{tpu_custom_call.1} parent=47 // pred_check_branch
          %355 = sbr.rel (%p353) target = $region52
        $region51: #{tpu_custom_call.1} parent=47 // pred_region
          %356 = dma.done %s349, 5120
        $region52: #{tpu_custom_call.1} parent=47 // pred_fallthru
          _
        %s357 = sand.u32 %s33, 1
        %s358 = scalar_lea.sflag [#allocation6], %s357
        %s359 = sand.u32 %s67, 1
        %s360 = smul.addr %s359, 24
        %s361 = scalar_lea.vmem [#allocation5], %s360
        // Predicated region
        $region53: #{tpu_custom_call.1} parent=47 // pred_check
          %p362 = pneg %p80
        $region54: #{tpu_custom_call.1} parent=47 // pred_check_branch
          %364 = sbr.rel (%p362) target = $region56
        $region55: #{tpu_custom_call.1} parent=47 // pred_region
          %365 = dma.done %s358, 384
        $region56: #{tpu_custom_call.1} parent=47 // pred_fallthru
          _
        // Predicated region
        $region57: #{tpu_custom_call.1} parent=47 // pred_check
          %p366 = pneg %p101
        $region58: #{tpu_custom_call.1} parent=47 // pred_check_branch
          %368 = sbr.rel (%p366) target = $region60
        $region59: #{tpu_custom_call.1} parent=47 // pred_region
          %369 = dma.done [#allocation6], 256
        $region60: #{tpu_custom_call.1} parent=47 // pred_fallthru
          _
        // Predicated region
        $region61: #{tpu_custom_call.1} parent=47 // pred_check
          %p370 = pneg %p122
        $region62: #{tpu_custom_call.1} parent=47 // pred_check_branch
          %372 = sbr.rel (%p370) target = $region64
        $region63: #{tpu_custom_call.1} parent=47 // pred_region
          %373 = dma.done [#allocation9], 256
        $region64: #{tpu_custom_call.1} parent=47 // pred_fallthru
          _
        // Predicated region
        $region65: #{tpu_custom_call.1} parent=47 // pred_check
          %p374 = pneg %p164
        $region66: #{tpu_custom_call.1} parent=47 // pred_check_branch
          %376 = sbr.rel (%p374) target = $region68
        $region67: #{tpu_custom_call.1} parent=47 // pred_region
          %377 = dma.done [#allocation9], 1024
        $region68: #{tpu_custom_call.1} parent=47 // pred_fallthru
          _
        %s378 = sand.u32 %s41, 1
        %s379 = scalar_lea.sflag [#allocation3], %s378
        %s380 = sand.u32 %s41, 1
        %s381 = smul.addr %s380, 320
        %s382 = scalar_lea.vmem [#allocation2], %s381
        %p383 = pneg %p54
        %p384 = pneg %p51
        %s385 = sand.u32 %s33, 1
        %s386 = scalar_lea.sflag [#allocation6], %s385
        %s387 = sand.u32 %s67, 1
        %s388 = smul.addr %s387, 24
        %s389 = scalar_lea.vmem [#allocation5], %s388
        %p390 = pneg %p80
        %p391 = pneg %p77
        %p392 = pneg %p101
        %p393 = pneg %p98
        %p394 = pneg %p122
        %p395 = pneg %p119
        %p396 = pneg %p143
        %p397 = pneg %p140
        %p398 = pneg %p164
        %p399 = pneg %p161
        %p400 = pneg %p185
        %p401 = pneg %p182
        %p402 = pneg %p211
        %p403 = pneg %p208
        %s404 = sand.u32 %s198, 1
        %s405 = scalar_lea.sflag [#allocation4], %s404
        %s406 = sand.u32 %s198, 1
        %s407 = smul.addr %s406, 768
        %s408 = scalar_lea.vmem [#allocation11], %s407
        %p409 = pneg %p237
        %p410 = pneg %p234
        %s411 = sand.u32 %s224, 1
        %s412 = scalar_lea.sflag [#allocation13], %s411
        %s413 = sand.u32 %s224, 1
        %s414 = scalar_lea.vmem [#allocation12], %s413
        %s415 = smul.u32 16, %s33
        %v416 = vld [vmem:[%s361] sm:$0xff]
        %v417 = vld [vmem:[%s361 + $0x8] sm:$0xff]
        %v418 = vld [vmem:[%s361 + $0x10] sm:$0xf]
        %vm419 = vcmp.ne.s32.totalorder %v416, 0
        %vm420 = vcmp.ne.s32.totalorder %v417, 0
        %vm421 = vcmp.ne.s32.totalorder %v418, 0
        %v422 = vsel %vm419, 1, 0
        %v423 = vsel %vm420, 1, 0
        %v424 = vsel %vm421, 1, 0
        %vm425 = vcmask 1043456
        %v426 = vsel %vm425, %v424, 0
        %v427 = vadd.s32 %v422, %v423
        %v428 = vadd.s32 %v427, %v426
        %v429 = vrot.slane %v428, 4
        %v430 = vadd.s32 %v428, %v429
        %v431 = vrot.slane %v430, 2
        %v432 = vadd.s32 %v430, %v431
        %v433 = vrot.slane %v432, 1
        %v434 = vadd.s32 %v432, %v433
        %v435 = vlaneseq
        %v436 = vshrl.u32 %v435, 7
        %v437 = vadd.s32 %v436, 8
        %v438 = vadd.s32 %v436, 16
        %vm439 = vcmp.lt.s32.totalorder %v436, %v434
        %vm440 = vcmp.lt.s32.totalorder %v437, %v434
        %vm441 = vcmp.lt.s32.totalorder %v438, %v434
        %v442 = vcvt.s32.f32 %v434
        %v443 = vmax.f32 %v442, 1.0
        %v444 = vrcp.pop %v443
        %v445 = vmul.f32 1.0, %v444
        %v446 = vld [vmem:[#allocation7] sm:$0xff]
        %v447 = vld [vmem:[#allocation7 + $0x8] sm:$0xff]
        %v448 = vld [vmem:[%s352] sm:$0xff]
        %v449 = vld [vmem:[%s352 + $0x8] sm:$0xff]
        %vm450 = vcmask 130048
        %v452 = vsel %vm450, %v446, 0
        %v455 = vsel %vm450, %v447, 0
        %457 = vmatprep.subr.mxu0 0.0
        %458 = vmatpush1.msra.mxu0 %v448
        %459 = vmatprep.subr.mxu0 0.0
        %460 = vmatpush1.msra.mxu0 %v449
        %461 = vmatprep.subr.mxu0 0.0
        %462 = vmatpush1.msra.mxu0 0.0
        %463 = vmatprep.subr.mxu0 0.0
        %464 = vmatpush1.msra.mxu0 0.0
        %465 = vmatprep.subr.mxu0 0.0
        %466 = vmatpush1.msra.mxu0 0.0
        %467 = vmatprep.subr.mxu0 0.0
        %468 = vmatpush1.msra.mxu0 0.0
        %469 = vmatprep.subr.mxu0 0.0
        %470 = vmatpush1.msra.mxu0 0.0
        %471 = vmatprep.subr.mxu0 0.0
        %472 = vmatpush1.msra.mxu0 0.0
        %473 = vmatprep.subr.mxu0 0.0
        %474 = vmatpush1.msra.mxu0 0.0
        %475 = vmatprep.subr.mxu0 0.0
        %476 = vmatpush1.msra.mxu0 0.0
        %477 = vmatprep.subr.mxu0 0.0
        %478 = vmatpush1.msra.mxu0 0.0
        %479 = vmatprep.subr.mxu0 0.0
        %480 = vmatpush1.msra.mxu0 0.0
        %481 = vmatprep.subr.mxu0 0.0
        %482 = vmatpush1.msra.mxu0 0.0
        %483 = vmatprep.subr.mxu0 0.0
        %484 = vmatpush1.msra.mxu0 0.0
        %485 = vmatprep.subr.mxu0 0.0
        %486 = vmatpush1.msra.mxu0 0.0
        %487 = vmatprep.subr.mxu0 0.0
        %488 = vmatpush1.msra.mxu0 0.0
        %489 = vmatprep.subr.mxu0 0.0
        %490 = vmatpush1.msra.mxu0 0.0
        %491 = vmatprep.subr.mxu0 0.0
        %492 = vmatpush1.msra.mxu0 0.0
        %493 = vmatprep.subr.mxu0 0.0
        %494 = vmatpush1.msra.mxu0 0.0
        %495 = vmatprep.subr.mxu0 0.0
        %496 = vmatpush1.msra.mxu0 0.0
        %497 = vmatprep.subr.mxu0 0.0
        %498 = vmatpush1.msra.mxu0 0.0
        %499 = vmatprep.subr.mxu0 0.0
        %500 = vmatpush1.msra.mxu0 0.0
        %501 = vmatprep.subr.mxu0 0.0
        %502 = vmatpush1.msra.mxu0 0.0
        %503 = vmatprep.subr.mxu0 0.0
        %504 = vmatpush1.msra.mxu0 0.0
        %505 = vmatprep.subr.mxu0 0.0
        %506 = vmatpush1.msra.mxu0 0.0
        %507 = vmatprep.subr.mxu0 0.0
        %508 = vmatpush1.msra.mxu0 0.0
        %509 = vmatprep.subr.mxu0 0.0
        %510 = vmatpush1.msra.mxu0 0.0
        %511 = vmatprep.subr.mxu0 0.0
        %512 = vmatpush1.msra.mxu0 0.0
        %513 = vmatprep.subr.mxu0 0.0
        %514 = vmatpush1.msra.mxu0 0.0
        %515 = vmatprep.subr.mxu0 0.0
        %516 = vmatpush1.msra.mxu0 0.0
        %517 = vmatprep.subr.mxu0 0.0
        %518 = vmatpush1.msra.mxu0 0.0
        %519 = vmatprep.subr.mxu0 0.0
        %520 = vmatpush1.msra.mxu0 0.0
        %521 = vmatprep.mubr.f32.mxu0 0.0
        %522 = vmatmul.mubr.f32.gmra.mrb[0].mxu0 %v452
        %v523 = vpop.f32.mrb[0].mxu0
        %v524 = vadd.f32 0.0, %v523
        %v525 = vpop.f32.mrb[0].mxu0
        %526 = vmatprep.mubr.f32.mxu0 0.0
        %527 = vmatmul.mubr.f32.gmra.mrb[0].mxu0 %v455
        %v528 = vpop.f32.mrb[0].mxu0
        %v529 = vadd.f32 0.0, %v528
        %v530 = vpop.f32.mrb[0].mxu0
        %531 = vdwg.mxu0
        %s532 = scalar_lea.vmem %s352, 16 [#allocation2]
        %v533 = vld [vmem:[%s532] sm:$0xff]
        %v534 = vld [vmem:[%s532 + $0x8] sm:$0xff]
        %535 = vmatprep.subr.mxu0 0.0
        %536 = vmatpush1.msra.mxu0 %v533
        %537 = vmatprep.subr.mxu0 0.0
        %538 = vmatpush1.msra.mxu0 %v534
        %539 = vmatprep.subr.mxu0 0.0
        %540 = vmatpush1.msra.mxu0 0.0
        %541 = vmatprep.subr.mxu0 0.0
        %542 = vmatpush1.msra.mxu0 0.0
        %543 = vmatprep.subr.mxu0 0.0
        %544 = vmatpush1.msra.mxu0 0.0
        %545 = vmatprep.subr.mxu0 0.0
        %546 = vmatpush1.msra.mxu0 0.0
        %547 = vmatprep.subr.mxu0 0.0
        %548 = vmatpush1.msra.mxu0 0.0
        %549 = vmatprep.subr.mxu0 0.0
        %550 = vmatpush1.msra.mxu0 0.0
        %551 = vmatprep.subr.mxu0 0.0
        %552 = vmatpush1.msra.mxu0 0.0
        %553 = vmatprep.subr.mxu0 0.0
        %554 = vmatpush1.msra.mxu0 0.0
        %555 = vmatprep.subr.mxu0 0.0
        %556 = vmatpush1.msra.mxu0 0.0
        %557 = vmatprep.subr.mxu0 0.0
        %558 = vmatpush1.msra.mxu0 0.0
        %559 = vmatprep.subr.mxu0 0.0
        %560 = vmatpush1.msra.mxu0 0.0
        %561 = vmatprep.subr.mxu0 0.0
        %562 = vmatpush1.msra.mxu0 0.0
        %563 = vmatprep.subr.mxu0 0.0
        %564 = vmatpush1.msra.mxu0 0.0
        %565 = vmatprep.subr.mxu0 0.0
        %566 = vmatpush1.msra.mxu0 0.0
        %567 = vmatprep.subr.mxu0 0.0
        %568 = vmatpush1.msra.mxu0 0.0
        %569 = vmatprep.subr.mxu0 0.0
        %570 = vmatpush1.msra.mxu0 0.0
        %571 = vmatprep.subr.mxu0 0.0
        %572 = vmatpush1.msra.mxu0 0.0
        %573 = vmatprep.subr.mxu0 0.0
        %574 = vmatpush1.msra.mxu0 0.0
        %575 = vmatprep.subr.mxu0 0.0
        %576 = vmatpush1.msra.mxu0 0.0
        %577 = vmatprep.subr.mxu0 0.0
        %578 = vmatpush1.msra.mxu0 0.0
        %579 = vmatprep.subr.mxu0 0.0
        %580 = vmatpush1.msra.mxu0 0.0
        %581 = vmatprep.subr.mxu0 0.0
        %582 = vmatpush1.msra.mxu0 0.0
        %583 = vmatprep.subr.mxu0 0.0
        %584 = vmatpush1.msra.mxu0 0.0
        %585 = vmatprep.subr.mxu0 0.0
        %586 = vmatpush1.msra.mxu0 0.0
        %587 = vmatprep.subr.mxu0 0.0
        %588 = vmatpush1.msra.mxu0 0.0
        %589 = vmatprep.subr.mxu0 0.0
        %590 = vmatpush1.msra.mxu0 0.0
        %591 = vmatprep.subr.mxu0 0.0
        %592 = vmatpush1.msra.mxu0 0.0
        %593 = vmatprep.subr.mxu0 0.0
        %594 = vmatpush1.msra.mxu0 0.0
        %595 = vmatprep.subr.mxu0 0.0
        %596 = vmatpush1.msra.mxu0 0.0
        %597 = vmatprep.subr.mxu0 0.0
        %598 = vmatpush1.msra.mxu0 0.0
        %599 = vmatprep.mubr.f32.mxu0 0.0
        %600 = vmatmul.mubr.f32.gmra.mrb[0].mxu0 %v452
        %v601 = vpop.f32.mrb[0].mxu0
        %v602 = vadd.f32 0.0, %v601
        %v603 = vpop.f32.mrb[0].mxu0
        %604 = vmatprep.mubr.f32.mxu0 0.0
        %605 = vmatmul.mubr.f32.gmra.mrb[0].mxu0 %v455
        %v606 = vpop.f32.mrb[0].mxu0
        %v607 = vadd.f32 0.0, %v606
        %v608 = vpop.f32.mrb[0].mxu0
        %609 = vdwg.mxu0
        %s610 = scalar_lea.vmem %s352, 32 [#allocation2]
        %v611 = vld [vmem:[%s610] sm:$0xff]
        %v612 = vld [vmem:[%s610 + $0x8] sm:$0xff]
        %613 = vmatprep.subr.mxu0 0.0
        %614 = vmatpush1.msra.mxu0 %v611
        %615 = vmatprep.subr.mxu0 0.0
        %616 = vmatpush1.msra.mxu0 %v612
        %617 = vmatprep.subr.mxu0 0.0
        %618 = vmatpush1.msra.mxu0 0.0
        %619 = vmatprep.subr.mxu0 0.0
        %620 = vmatpush1.msra.mxu0 0.0
        %621 = vmatprep.subr.mxu0 0.0
        %622 = vmatpush1.msra.mxu0 0.0
        %623 = vmatprep.subr.mxu0 0.0
        %624 = vmatpush1.msra.mxu0 0.0
        %625 = vmatprep.subr.mxu0 0.0
        %626 = vmatpush1.msra.mxu0 0.0
        %627 = vmatprep.subr.mxu0 0.0
        %628 = vmatpush1.msra.mxu0 0.0
        %629 = vmatprep.subr.mxu0 0.0
        %630 = vmatpush1.msra.mxu0 0.0
        %631 = vmatprep.subr.mxu0 0.0
        %632 = vmatpush1.msra.mxu0 0.0
        %633 = vmatprep.subr.mxu0 0.0
        %634 = vmatpush1.msra.mxu0 0.0
        %635 = vmatprep.subr.mxu0 0.0
        %636 = vmatpush1.msra.mxu0 0.0
        %637 = vmatprep.subr.mxu0 0.0
        %638 = vmatpush1.msra.mxu0 0.0
        %639 = vmatprep.subr.mxu0 0.0
        %640 = vmatpush1.msra.mxu0 0.0
        %641 = vmatprep.subr.mxu0 0.0
        %642 = vmatpush1.msra.mxu0 0.0
        %643 = vmatprep.subr.mxu0 0.0
        %644 = vmatpush1.msra.mxu0 0.0
        %645 = vmatprep.subr.mxu0 0.0
        %646 = vmatpush1.msra.mxu0 0.0
        %647 = vmatprep.subr.mxu0 0.0
        %648 = vmatpush1.msra.mxu0 0.0
        %649 = vmatprep.subr.mxu0 0.0
        %650 = vmatpush1.msra.mxu0 0.0
        %651 = vmatprep.subr.mxu0 0.0
        %652 = vmatpush1.msra.mxu0 0.0
        %653 = vmatprep.subr.mxu0 0.0
        %654 = vmatpush1.msra.mxu0 0.0
        %655 = vmatprep.subr.mxu0 0.0
        %656 = vmatpush1.msra.mxu0 0.0
        %657 = vmatprep.subr.mxu0 0.0
        %658 = vmatpush1.msra.mxu0 0.0
        %659 = vmatprep.subr.mxu0 0.0
        %660 = vmatpush1.msra.mxu0 0.0
        %661 = vmatprep.subr.mxu0 0.0
        %662 = vmatpush1.msra.mxu0 0.0
        %663 = vmatprep.subr.mxu0 0.0
        %664 = vmatpush1.msra.mxu0 0.0
        %665 = vmatprep.subr.mxu0 0.0
        %666 = vmatpush1.msra.mxu0 0.0
        %667 = vmatprep.subr.mxu0 0.0
        %668 = vmatpush1.msra.mxu0 0.0
        %669 = vmatprep.subr.mxu0 0.0
        %670 = vmatpush1.msra.mxu0 0.0
        %671 = vmatprep.subr.mxu0 0.0
        %672 = vmatpush1.msra.mxu0 0.0
        %673 = vmatprep.subr.mxu0 0.0
        %674 = vmatpush1.msra.mxu0 0.0
        %675 = vmatprep.subr.mxu0 0.0
        %676 = vmatpush1.msra.mxu0 0.0
        %677 = vmatprep.mubr.f32.mxu0 0.0
        %678 = vmatmul.mubr.f32.gmra.mrb[0].mxu0 %v452
        %v679 = vpop.f32.mrb[0].mxu0
        %v680 = vadd.f32 0.0, %v679
        %v681 = vpop.f32.mrb[0].mxu0
        %682 = vmatprep.mubr.f32.mxu0 0.0
        %683 = vmatmul.mubr.f32.gmra.mrb[0].mxu0 %v455
        %v684 = vpop.f32.mrb[0].mxu0
        %v685 = vadd.f32 0.0, %v684
        %v686 = vpop.f32.mrb[0].mxu0
        %687 = vdwg.mxu0
        %s688 = scalar_lea.vmem %s352, 48 [#allocation2]
        %v689 = vld [vmem:[%s688] sm:$0xff]
        %v690 = vld [vmem:[%s688 + $0x8] sm:$0xff]
        %691 = vmatprep.subr.mxu0 0.0
        %692 = vmatpush1.msra.mxu0 %v689
        %693 = vmatprep.subr.mxu0 0.0
        %694 = vmatpush1.msra.mxu0 %v690
        %695 = vmatprep.subr.mxu0 0.0
        %696 = vmatpush1.msra.mxu0 0.0
        %697 = vmatprep.subr.mxu0 0.0
        %698 = vmatpush1.msra.mxu0 0.0
        %699 = vmatprep.subr.mxu0 0.0
        %700 = vmatpush1.msra.mxu0 0.0
        %701 = vmatprep.subr.mxu0 0.0
        %702 = vmatpush1.msra.mxu0 0.0
        %703 = vmatprep.subr.mxu0 0.0
        %704 = vmatpush1.msra.mxu0 0.0
        %705 = vmatprep.subr.mxu0 0.0
        %706 = vmatpush1.msra.mxu0 0.0
        %707 = vmatprep.subr.mxu0 0.0
        %708 = vmatpush1.msra.mxu0 0.0
        %709 = vmatprep.subr.mxu0 0.0
        %710 = vmatpush1.msra.mxu0 0.0
        %711 = vmatprep.subr.mxu0 0.0
        %712 = vmatpush1.msra.mxu0 0.0
        %713 = vmatprep.subr.mxu0 0.0
        %714 = vmatpush1.msra.mxu0 0.0
        %715 = vmatprep.subr.mxu0 0.0
        %716 = vmatpush1.msra.mxu0 0.0
        %717 = vmatprep.subr.mxu0 0.0
        %718 = vmatpush1.msra.mxu0 0.0
        %719 = vmatprep.subr.mxu0 0.0
        %720 = vmatpush1.msra.mxu0 0.0
        %721 = vmatprep.subr.mxu0 0.0
        %722 = vmatpush1.msra.mxu0 0.0
        %723 = vmatprep.subr.mxu0 0.0
        %724 = vmatpush1.msra.mxu0 0.0
        %725 = vmatprep.subr.mxu0 0.0
        %726 = vmatpush1.msra.mxu0 0.0
        %727 = vmatprep.subr.mxu0 0.0
        %728 = vmatpush1.msra.mxu0 0.0
        %729 = vmatprep.subr.mxu0 0.0
        %730 = vmatpush1.msra.mxu0 0.0
        %731 = vmatprep.subr.mxu0 0.0
        %732 = vmatpush1.msra.mxu0 0.0
        %733 = vmatprep.subr.mxu0 0.0
        %734 = vmatpush1.msra.mxu0 0.0
        %735 = vmatprep.subr.mxu0 0.0
        %736 = vmatpush1.msra.mxu0 0.0
        %737 = vmatprep.subr.mxu0 0.0
        %738 = vmatpush1.msra.mxu0 0.0
        %739 = vmatprep.subr.mxu0 0.0
        %740 = vmatpush1.msra.mxu0 0.0
        %741 = vmatprep.subr.mxu0 0.0
        %742 = vmatpush1.msra.mxu0 0.0
        %743 = vmatprep.subr.mxu0 0.0
        %744 = vmatpush1.msra.mxu0 0.0
        %745 = vmatprep.subr.mxu0 0.0
        %746 = vmatpush1.msra.mxu0 0.0
        %747 = vmatprep.subr.mxu0 0.0
        %748 = vmatpush1.msra.mxu0 0.0
        %749 = vmatprep.subr.mxu0 0.0
        %750 = vmatpush1.msra.mxu0 0.0
        %751 = vmatprep.subr.mxu0 0.0
        %752 = vmatpush1.msra.mxu0 0.0
        %753 = vmatprep.subr.mxu0 0.0
        %754 = vmatpush1.msra.mxu0 0.0
        %755 = vmatprep.mubr.f32.mxu0 0.0
        %756 = vmatmul.mubr.f32.gmra.mrb[0].mxu0 %v452
        %v757 = vpop.f32.mrb[0].mxu0
        %v758 = vadd.f32 0.0, %v757
        %v759 = vpop.f32.mrb[0].mxu0
        %760 = vmatprep.mubr.f32.mxu0 0.0
        %761 = vmatmul.mubr.f32.gmra.mrb[0].mxu0 %v455
        %v762 = vpop.f32.mrb[0].mxu0
        %v763 = vadd.f32 0.0, %v762
        %v764 = vpop.f32.mrb[0].mxu0
        %765 = vdwg.mxu0
        %s766 = scalar_lea.vmem %s352, 64 [#allocation2]
        %v767 = vld [vmem:[%s766] sm:$0xff]
        %v768 = vld [vmem:[%s766 + $0x8] sm:$0xff]
        %769 = vmatprep.subr.mxu0 0.0
        %770 = vmatpush1.msra.mxu0 %v767
        %771 = vmatprep.subr.mxu0 0.0
        %772 = vmatpush1.msra.mxu0 %v768
        %773 = vmatprep.subr.mxu0 0.0
        %774 = vmatpush1.msra.mxu0 0.0
        %775 = vmatprep.subr.mxu0 0.0
        %776 = vmatpush1.msra.mxu0 0.0
        %777 = vmatprep.subr.mxu0 0.0
        %778 = vmatpush1.msra.mxu0 0.0
        %779 = vmatprep.subr.mxu0 0.0
        %780 = vmatpush1.msra.mxu0 0.0
        %781 = vmatprep.subr.mxu0 0.0
        %782 = vmatpush1.msra.mxu0 0.0
        %783 = vmatprep.subr.mxu0 0.0
        %784 = vmatpush1.msra.mxu0 0.0
        %785 = vmatprep.subr.mxu0 0.0
        %786 = vmatpush1.msra.mxu0 0.0
        %787 = vmatprep.subr.mxu0 0.0
        %788 = vmatpush1.msra.mxu0 0.0
        %789 = vmatprep.subr.mxu0 0.0
        %790 = vmatpush1.msra.mxu0 0.0
        %791 = vmatprep.subr.mxu0 0.0
        %792 = vmatpush1.msra.mxu0 0.0
        %793 = vmatprep.subr.mxu0 0.0
        %794 = vmatpush1.msra.mxu0 0.0
        %795 = vmatprep.subr.mxu0 0.0
        %796 = vmatpush1.msra.mxu0 0.0
        %797 = vmatprep.subr.mxu0 0.0
        %798 = vmatpush1.msra.mxu0 0.0
        %799 = vmatprep.subr.mxu0 0.0
        %800 = vmatpush1.msra.mxu0 0.0
        %801 = vmatprep.subr.mxu0 0.0
        %802 = vmatpush1.msra.mxu0 0.0
        %803 = vmatprep.subr.mxu0 0.0
        %804 = vmatpush1.msra.mxu0 0.0
        %805 = vmatprep.subr.mxu0 0.0
        %806 = vmatpush1.msra.mxu0 0.0
        %807 = vmatprep.subr.mxu0 0.0
        %808 = vmatpush1.msra.mxu0 0.0
        %809 = vmatprep.subr.mxu0 0.0
        %810 = vmatpush1.msra.mxu0 0.0
        %811 = vmatprep.subr.mxu0 0.0
        %812 = vmatpush1.msra.mxu0 0.0
        %813 = vmatprep.subr.mxu0 0.0
        %814 = vmatpush1.msra.mxu0 0.0
        %815 = vmatprep.subr.mxu0 0.0
        %816 = vmatpush1.msra.mxu0 0.0
        %817 = vmatprep.subr.mxu0 0.0
        %818 = vmatpush1.msra.mxu0 0.0
        %819 = vmatprep.subr.mxu0 0.0
        %820 = vmatpush1.msra.mxu0 0.0
        %821 = vmatprep.subr.mxu0 0.0
        %822 = vmatpush1.msra.mxu0 0.0
        %823 = vmatprep.subr.mxu0 0.0
        %824 = vmatpush1.msra.mxu0 0.0
        %825 = vmatprep.subr.mxu0 0.0
        %826 = vmatpush1.msra.mxu0 0.0
        %827 = vmatprep.subr.mxu0 0.0
        %828 = vmatpush1.msra.mxu0 0.0
        %829 = vmatprep.subr.mxu0 0.0
        %830 = vmatpush1.msra.mxu0 0.0
        %831 = vmatprep.subr.mxu0 0.0
        %832 = vmatpush1.msra.mxu0 0.0
        %833 = vmatprep.mubr.f32.mxu0 0.0
        %834 = vmatmul.mubr.f32.gmra.mrb[0].mxu0 %v452
        %v835 = vpop.f32.mrb[0].mxu0
        %v836 = vadd.f32 0.0, %v835
        %v837 = vpop.f32.mrb[0].mxu0
        %838 = vmatprep.mubr.f32.mxu0 0.0
        %839 = vmatmul.mubr.f32.gmra.mrb[0].mxu0 %v455
        %v840 = vpop.f32.mrb[0].mxu0
        %v841 = vadd.f32 0.0, %v840
        %v842 = vpop.f32.mrb[0].mxu0
        %843 = vdwg.mxu0
        %s844 = scalar_lea.vmem %s352, 80 [#allocation2]
        %v845 = vld [vmem:[%s844] sm:$0xff]
        %v846 = vld [vmem:[%s844 + $0x8] sm:$0xff]
        %847 = vmatprep.subr.mxu0 0.0
        %848 = vmatpush1.msra.mxu0 %v845
        %849 = vmatprep.subr.mxu0 0.0
        %850 = vmatpush1.msra.mxu0 %v846
        %851 = vmatprep.subr.mxu0 0.0
        %852 = vmatpush1.msra.mxu0 0.0
        %853 = vmatprep.subr.mxu0 0.0
        %854 = vmatpush1.msra.mxu0 0.0
        %855 = vmatprep.subr.mxu0 0.0
        %856 = vmatpush1.msra.mxu0 0.0
        %857 = vmatprep.subr.mxu0 0.0
        %858 = vmatpush1.msra.mxu0 0.0
        %859 = vmatprep.subr.mxu0 0.0
        %860 = vmatpush1.msra.mxu0 0.0
        %861 = vmatprep.subr.mxu0 0.0
        %862 = vmatpush1.msra.mxu0 0.0
        %863 = vmatprep.subr.mxu0 0.0
        %864 = vmatpush1.msra.mxu0 0.0
        %865 = vmatprep.subr.mxu0 0.0
        %866 = vmatpush1.msra.mxu0 0.0
        %867 = vmatprep.subr.mxu0 0.0
        %868 = vmatpush1.msra.mxu0 0.0
        %869 = vmatprep.subr.mxu0 0.0
        %870 = vmatpush1.msra.mxu0 0.0
        %871 = vmatprep.subr.mxu0 0.0
        %872 = vmatpush1.msra.mxu0 0.0
        %873 = vmatprep.subr.mxu0 0.0
        %874 = vmatpush1.msra.mxu0 0.0
        %875 = vmatprep.subr.mxu0 0.0
        %876 = vmatpush1.msra.mxu0 0.0
        %877 = vmatprep.subr.mxu0 0.0
        %878 = vmatpush1.msra.mxu0 0.0
        %879 = vmatprep.subr.mxu0 0.0
        %880 = vmatpush1.msra.mxu0 0.0
        %881 = vmatprep.subr.mxu0 0.0
        %882 = vmatpush1.msra.mxu0 0.0
        %883 = vmatprep.subr.mxu0 0.0
        %884 = vmatpush1.msra.mxu0 0.0
        %885 = vmatprep.subr.mxu0 0.0
        %886 = vmatpush1.msra.mxu0 0.0
        %887 = vmatprep.subr.mxu0 0.0
        %888 = vmatpush1.msra.mxu0 0.0
        %889 = vmatprep.subr.mxu0 0.0
        %890 = vmatpush1.msra.mxu0 0.0
        %891 = vmatprep.subr.mxu0 0.0
        %892 = vmatpush1.msra.mxu0 0.0
        %893 = vmatprep.subr.mxu0 0.0
        %894 = vmatpush1.msra.mxu0 0.0
        %895 = vmatprep.subr.mxu0 0.0
        %896 = vmatpush1.msra.mxu0 0.0
        %897 = vmatprep.subr.mxu0 0.0
        %898 = vmatpush1.msra.mxu0 0.0
        %899 = vmatprep.subr.mxu0 0.0
        %900 = vmatpush1.msra.mxu0 0.0
        %901 = vmatprep.subr.mxu0 0.0
        %902 = vmatpush1.msra.mxu0 0.0
        %903 = vmatprep.subr.mxu0 0.0
        %904 = vmatpush1.msra.mxu0 0.0
        %905 = vmatprep.subr.mxu0 0.0
        %906 = vmatpush1.msra.mxu0 0.0
        %907 = vmatprep.subr.mxu0 0.0
        %908 = vmatpush1.msra.mxu0 0.0
        %909 = vmatprep.subr.mxu0 0.0
        %910 = vmatpush1.msra.mxu0 0.0
        %911 = vmatprep.mubr.f32.mxu0 0.0
        %912 = vmatmul.mubr.f32.gmra.mrb[0].mxu0 %v452
        %v913 = vpop.f32.mrb[0].mxu0
        %v914 = vadd.f32 0.0, %v913
        %v915 = vpop.f32.mrb[0].mxu0
        %916 = vmatprep.mubr.f32.mxu0 0.0
        %917 = vmatmul.mubr.f32.gmra.mrb[0].mxu0 %v455
        %v918 = vpop.f32.mrb[0].mxu0
        %v919 = vadd.f32 0.0, %v918
        %v920 = vpop.f32.mrb[0].mxu0
        %921 = vdwg.mxu0
        %s922 = scalar_lea.vmem %s352, 96 [#allocation2]
        %v923 = vld [vmem:[%s922] sm:$0xff]
        %v924 = vld [vmem:[%s922 + $0x8] sm:$0xff]
        %925 = vmatprep.subr.mxu0 0.0
        %926 = vmatpush1.msra.mxu0 %v923
        %927 = vmatprep.subr.mxu0 0.0
        %928 = vmatpush1.msra.mxu0 %v924
        %929 = vmatprep.subr.mxu0 0.0
        %930 = vmatpush1.msra.mxu0 0.0
        %931 = vmatprep.subr.mxu0 0.0
        %932 = vmatpush1.msra.mxu0 0.0
        %933 = vmatprep.subr.mxu0 0.0
        %934 = vmatpush1.msra.mxu0 0.0
        %935 = vmatprep.subr.mxu0 0.0
        %936 = vmatpush1.msra.mxu0 0.0
        %937 = vmatprep.subr.mxu0 0.0
        %938 = vmatpush1.msra.mxu0 0.0
        %939 = vmatprep.subr.mxu0 0.0
        %940 = vmatpush1.msra.mxu0 0.0
        %941 = vmatprep.subr.mxu0 0.0
        %942 = vmatpush1.msra.mxu0 0.0
        %943 = vmatprep.subr.mxu0 0.0
        %944 = vmatpush1.msra.mxu0 0.0
        %945 = vmatprep.subr.mxu0 0.0
        %946 = vmatpush1.msra.mxu0 0.0
        %947 = vmatprep.subr.mxu0 0.0
        %948 = vmatpush1.msra.mxu0 0.0
        %949 = vmatprep.subr.mxu0 0.0
        %950 = vmatpush1.msra.mxu0 0.0
        %951 = vmatprep.subr.mxu0 0.0
        %952 = vmatpush1.msra.mxu0 0.0
        %953 = vmatprep.subr.mxu0 0.0
        %954 = vmatpush1.msra.mxu0 0.0
        %955 = vmatprep.subr.mxu0 0.0
        %956 = vmatpush1.msra.mxu0 0.0
        %957 = vmatprep.subr.mxu0 0.0
        %958 = vmatpush1.msra.mxu0 0.0
        %959 = vmatprep.subr.mxu0 0.0
        %960 = vmatpush1.msra.mxu0 0.0
        %961 = vmatprep.subr.mxu0 0.0
        %962 = vmatpush1.msra.mxu0 0.0
        %963 = vmatprep.subr.mxu0 0.0
        %964 = vmatpush1.msra.mxu0 0.0
        %965 = vmatprep.subr.mxu0 0.0
        %966 = vmatpush1.msra.mxu0 0.0
        %967 = vmatprep.subr.mxu0 0.0
        %968 = vmatpush1.msra.mxu0 0.0
        %969 = vmatprep.subr.mxu0 0.0
        %970 = vmatpush1.msra.mxu0 0.0
        %971 = vmatprep.subr.mxu0 0.0
        %972 = vmatpush1.msra.mxu0 0.0
        %973 = vmatprep.subr.mxu0 0.0
        %974 = vmatpush1.msra.mxu0 0.0
        %975 = vmatprep.subr.mxu0 0.0
        %976 = vmatpush1.msra.mxu0 0.0
        %977 = vmatprep.subr.mxu0 0.0
        %978 = vmatpush1.msra.mxu0 0.0
        %979 = vmatprep.subr.mxu0 0.0
        %980 = vmatpush1.msra.mxu0 0.0
        %981 = vmatprep.subr.mxu0 0.0
        %982 = vmatpush1.msra.mxu0 0.0
        %983 = vmatprep.subr.mxu0 0.0
        %984 = vmatpush1.msra.mxu0 0.0
        %985 = vmatprep.subr.mxu0 0.0
        %986 = vmatpush1.msra.mxu0 0.0
        %987 = vmatprep.subr.mxu0 0.0
        %988 = vmatpush1.msra.mxu0 0.0
        %989 = vmatprep.mubr.f32.mxu0 0.0
        %990 = vmatmul.mubr.f32.gmra.mrb[0].mxu0 %v452
        %v991 = vpop.f32.mrb[0].mxu0
        %v992 = vadd.f32 0.0, %v991
        %v993 = vpop.f32.mrb[0].mxu0
        %994 = vmatprep.mubr.f32.mxu0 0.0
        %995 = vmatmul.mubr.f32.gmra.mrb[0].mxu0 %v455
        %v996 = vpop.f32.mrb[0].mxu0
        %v997 = vadd.f32 0.0, %v996
        %v998 = vpop.f32.mrb[0].mxu0
        %999 = vdwg.mxu0
        %s1000 = scalar_lea.vmem %s352, 112 [#allocation2]
        %v1001 = vld [vmem:[%s1000] sm:$0xff]
        %v1002 = vld [vmem:[%s1000 + $0x8] sm:$0xff]
        %1003 = vmatprep.subr.mxu0 0.0
        %1004 = vmatpush1.msra.mxu0 %v1001
        %1005 = vmatprep.subr.mxu0 0.0
        %1006 = vmatpush1.msra.mxu0 %v1002
        %1007 = vmatprep.subr.mxu0 0.0
        %1008 = vmatpush1.msra.mxu0 0.0
        %1009 = vmatprep.subr.mxu0 0.0
        %1010 = vmatpush1.msra.mxu0 0.0
        %1011 = vmatprep.subr.mxu0 0.0
        %1012 = vmatpush1.msra.mxu0 0.0
        %1013 = vmatprep.subr.mxu0 0.0
        %1014 = vmatpush1.msra.mxu0 0.0
        %1015 = vmatprep.subr.mxu0 0.0
        %1016 = vmatpush1.msra.mxu0 0.0
        %1017 = vmatprep.subr.mxu0 0.0
        %1018 = vmatpush1.msra.mxu0 0.0
        %1019 = vmatprep.subr.mxu0 0.0
        %1020 = vmatpush1.msra.mxu0 0.0
        %1021 = vmatprep.subr.mxu0 0.0
        %1022 = vmatpush1.msra.mxu0 0.0
        %1023 = vmatprep.subr.mxu0 0.0
        %1024 = vmatpush1.msra.mxu0 0.0
        %1025 = vmatprep.subr.mxu0 0.0
        %1026 = vmatpush1.msra.mxu0 0.0
        %1027 = vmatprep.subr.mxu0 0.0
        %1028 = vmatpush1.msra.mxu0 0.0
        %1029 = vmatprep.subr.mxu0 0.0
        %1030 = vmatpush1.msra.mxu0 0.0
        %1031 = vmatprep.subr.mxu0 0.0
        %1032 = vmatpush1.msra.mxu0 0.0
        %1033 = vmatprep.subr.mxu0 0.0
        %1034 = vmatpush1.msra.mxu0 0.0
        %1035 = vmatprep.subr.mxu0 0.0
        %1036 = vmatpush1.msra.mxu0 0.0
        %1037 = vmatprep.subr.mxu0 0.0
        %1038 = vmatpush1.msra.mxu0 0.0
        %1039 = vmatprep.subr.mxu0 0.0
        %1040 = vmatpush1.msra.mxu0 0.0
        %1041 = vmatprep.subr.mxu0 0.0
        %1042 = vmatpush1.msra.mxu0 0.0
        %1043 = vmatprep.subr.mxu0 0.0
        %1044 = vmatpush1.msra.mxu0 0.0
        %1045 = vmatprep.subr.mxu0 0.0
        %1046 = vmatpush1.msra.mxu0 0.0
        %1047 = vmatprep.subr.mxu0 0.0
        %1048 = vmatpush1.msra.mxu0 0.0
        %1049 = vmatprep.subr.mxu0 0.0
        %1050 = vmatpush1.msra.mxu0 0.0
        %1051 = vmatprep.subr.mxu0 0.0
        %1052 = vmatpush1.msra.mxu0 0.0
        %1053 = vmatprep.subr.mxu0 0.0
        %1054 = vmatpush1.msra.mxu0 0.0
        %1055 = vmatprep.subr.mxu0 0.0
        %1056 = vmatpush1.msra.mxu0 0.0
        %1057 = vmatprep.subr.mxu0 0.0
        %1058 = vmatpush1.msra.mxu0 0.0
        %1059 = vmatprep.subr.mxu0 0.0
        %1060 = vmatpush1.msra.mxu0 0.0
        %1061 = vmatprep.subr.mxu0 0.0
        %1062 = vmatpush1.msra.mxu0 0.0
        %1063 = vmatprep.subr.mxu0 0.0
        %1064 = vmatpush1.msra.mxu0 0.0
        %1065 = vmatprep.subr.mxu0 0.0
        %1066 = vmatpush1.msra.mxu0 0.0
        %1067 = vmatprep.mubr.f32.mxu0 0.0
        %1068 = vmatmul.mubr.f32.gmra.mrb[0].mxu0 %v452
        %v1069 = vpop.f32.mrb[0].mxu0
        %v1070 = vadd.f32 0.0, %v1069
        %v1071 = vpop.f32.mrb[0].mxu0
        %1072 = vmatprep.mubr.f32.mxu0 0.0
        %1073 = vmatmul.mubr.f32.gmra.mrb[0].mxu0 %v455
        %v1074 = vpop.f32.mrb[0].mxu0
        %v1075 = vadd.f32 0.0, %v1074
        %v1076 = vpop.f32.mrb[0].mxu0
        %1077 = vdwg.mxu0
        %s1078 = scalar_lea.vmem %s352, 128 [#allocation2]
        %v1079 = vld [vmem:[%s1078] sm:$0xff]
        %v1080 = vld [vmem:[%s1078 + $0x8] sm:$0xff]
        %1081 = vmatprep.subr.mxu0 0.0
        %1082 = vmatpush1.msra.mxu0 %v1079
        %1083 = vmatprep.subr.mxu0 0.0
        %1084 = vmatpush1.msra.mxu0 %v1080
        %1085 = vmatprep.subr.mxu0 0.0
        %1086 = vmatpush1.msra.mxu0 0.0
        %1087 = vmatprep.subr.mxu0 0.0
        %1088 = vmatpush1.msra.mxu0 0.0
        %1089 = vmatprep.subr.mxu0 0.0
        %1090 = vmatpush1.msra.mxu0 0.0
        %1091 = vmatprep.subr.mxu0 0.0
        %1092 = vmatpush1.msra.mxu0 0.0
        %1093 = vmatprep.subr.mxu0 0.0
        %1094 = vmatpush1.msra.mxu0 0.0
        %1095 = vmatprep.subr.mxu0 0.0
        %1096 = vmatpush1.msra.mxu0 0.0
        %1097 = vmatprep.subr.mxu0 0.0
        %1098 = vmatpush1.msra.mxu0 0.0
        %1099 = vmatprep.subr.mxu0 0.0
        %1100 = vmatpush1.msra.mxu0 0.0
        %1101 = vmatprep.subr.mxu0 0.0
        %1102 = vmatpush1.msra.mxu0 0.0
        %1103 = vmatprep.subr.mxu0 0.0
        %1104 = vmatpush1.msra.mxu0 0.0
        %1105 = vmatprep.subr.mxu0 0.0
        %1106 = vmatpush1.msra.mxu0 0.0
        %1107 = vmatprep.subr.mxu0 0.0
        %1108 = vmatpush1.msra.mxu0 0.0
        %1109 = vmatprep.subr.mxu0 0.0
        %1110 = vmatpush1.msra.mxu0 0.0
        %1111 = vmatprep.subr.mxu0 0.0
        %1112 = vmatpush1.msra.mxu0 0.0
        %1113 = vmatprep.subr.mxu0 0.0
        %1114 = vmatpush1.msra.mxu0 0.0
        %1115 = vmatprep.subr.mxu0 0.0
        %1116 = vmatpush1.msra.mxu0 0.0
        %1117 = vmatprep.subr.mxu0 0.0
        %1118 = vmatpush1.msra.mxu0 0.0
        %1119 = vmatprep.subr.mxu0 0.0
        %1120 = vmatpush1.msra.mxu0 0.0
        %1121 = vmatprep.subr.mxu0 0.0
        %1122 = vmatpush1.msra.mxu0 0.0
        %1123 = vmatprep.subr.mxu0 0.0
        %1124 = vmatpush1.msra.mxu0 0.0
        %1125 = vmatprep.subr.mxu0 0.0
        %1126 = vmatpush1.msra.mxu0 0.0
        %1127 = vmatprep.subr.mxu0 0.0
        %1128 = vmatpush1.msra.mxu0 0.0
        %1129 = vmatprep.subr.mxu0 0.0
        %1130 = vmatpush1.msra.mxu0 0.0
        %1131 = vmatprep.subr.mxu0 0.0
        %1132 = vmatpush1.msra.mxu0 0.0
        %1133 = vmatprep.subr.mxu0 0.0
        %1134 = vmatpush1.msra.mxu0 0.0
        %1135 = vmatprep.subr.mxu0 0.0
        %1136 = vmatpush1.msra.mxu0 0.0
        %1137 = vmatprep.subr.mxu0 0.0
        %1138 = vmatpush1.msra.mxu0 0.0
        %1139 = vmatprep.subr.mxu0 0.0
        %1140 = vmatpush1.msra.mxu0 0.0
        %1141 = vmatprep.subr.mxu0 0.0
        %1142 = vmatpush1.msra.mxu0 0.0
        %1143 = vmatprep.subr.mxu0 0.0
        %1144 = vmatpush1.msra.mxu0 0.0
        %1145 = vmatprep.mubr.f32.mxu0 0.0
        %1146 = vmatmul.mubr.f32.gmra.mrb[0].mxu0 %v452
        %v1147 = vpop.f32.mrb[0].mxu0
        %v1148 = vadd.f32 0.0, %v1147
        %v1149 = vpop.f32.mrb[0].mxu0
        %1150 = vmatprep.mubr.f32.mxu0 0.0
        %1151 = vmatmul.mubr.f32.gmra.mrb[0].mxu0 %v455
        %v1152 = vpop.f32.mrb[0].mxu0
        %v1153 = vadd.f32 0.0, %v1152
        %v1154 = vpop.f32.mrb[0].mxu0
        %1155 = vdwg.mxu0
        %s1156 = scalar_lea.vmem %s352, 144 [#allocation2]
        %v1157 = vld [vmem:[%s1156] sm:$0xff]
        %v1158 = vld [vmem:[%s1156 + $0x8] sm:$0xff]
        %1159 = vmatprep.subr.mxu0 0.0
        %1160 = vmatpush1.msra.mxu0 %v1157
        %1161 = vmatprep.subr.mxu0 0.0
        %1162 = vmatpush1.msra.mxu0 %v1158
        %1163 = vmatprep.subr.mxu0 0.0
        %1164 = vmatpush1.msra.mxu0 0.0
        %1165 = vmatprep.subr.mxu0 0.0
        %1166 = vmatpush1.msra.mxu0 0.0
        %1167 = vmatprep.subr.mxu0 0.0
        %1168 = vmatpush1.msra.mxu0 0.0
        %1169 = vmatprep.subr.mxu0 0.0
        %1170 = vmatpush1.msra.mxu0 0.0
        %1171 = vmatprep.subr.mxu0 0.0
        %1172 = vmatpush1.msra.mxu0 0.0
        %1173 = vmatprep.subr.mxu0 0.0
        %1174 = vmatpush1.msra.mxu0 0.0
        %1175 = vmatprep.subr.mxu0 0.0
        %1176 = vmatpush1.msra.mxu0 0.0
        %1177 = vmatprep.subr.mxu0 0.0
        %1178 = vmatpush1.msra.mxu0 0.0
        %1179 = vmatprep.subr.mxu0 0.0
        %1180 = vmatpush1.msra.mxu0 0.0
        %1181 = vmatprep.subr.mxu0 0.0
        %1182 = vmatpush1.msra.mxu0 0.0
        %1183 = vmatprep.subr.mxu0 0.0
        %1184 = vmatpush1.msra.mxu0 0.0
        %1185 = vmatprep.subr.mxu0 0.0
        %1186 = vmatpush1.msra.mxu0 0.0
        %1187 = vmatprep.subr.mxu0 0.0
        %1188 = vmatpush1.msra.mxu0 0.0
        %1189 = vmatprep.subr.mxu0 0.0
        %1190 = vmatpush1.msra.mxu0 0.0
        %1191 = vmatprep.subr.mxu0 0.0
        %1192 = vmatpush1.msra.mxu0 0.0
        %1193 = vmatprep.subr.mxu0 0.0
        %1194 = vmatpush1.msra.mxu0 0.0
        %1195 = vmatprep.subr.mxu0 0.0
        %1196 = vmatpush1.msra.mxu0 0.0
        %1197 = vmatprep.subr.mxu0 0.0
        %1198 = vmatpush1.msra.mxu0 0.0
        %1199 = vmatprep.subr.mxu0 0.0
        %1200 = vmatpush1.msra.mxu0 0.0
        %1201 = vmatprep.subr.mxu0 0.0
        %1202 = vmatpush1.msra.mxu0 0.0
        %1203 = vmatprep.subr.mxu0 0.0
        %1204 = vmatpush1.msra.mxu0 0.0
        %1205 = vmatprep.subr.mxu0 0.0
        %1206 = vmatpush1.msra.mxu0 0.0
        %1207 = vmatprep.subr.mxu0 0.0
        %1208 = vmatpush1.msra.mxu0 0.0
        %1209 = vmatprep.subr.mxu0 0.0
        %1210 = vmatpush1.msra.mxu0 0.0
        %1211 = vmatprep.subr.mxu0 0.0
        %1212 = vmatpush1.msra.mxu0 0.0
        %1213 = vmatprep.subr.mxu0 0.0
        %1214 = vmatpush1.msra.mxu0 0.0
        %1215 = vmatprep.subr.mxu0 0.0
        %1216 = vmatpush1.msra.mxu0 0.0
        %1217 = vmatprep.subr.mxu0 0.0
        %1218 = vmatpush1.msra.mxu0 0.0
        %1219 = vmatprep.subr.mxu0 0.0
        %1220 = vmatpush1.msra.mxu0 0.0
        %1221 = vmatprep.subr.mxu0 0.0
        %1222 = vmatpush1.msra.mxu0 0.0
        %1223 = vmatprep.mubr.f32.mxu0 0.0
        %1224 = vmatmul.mubr.f32.gmra.mrb[0].mxu0 %v452
        %v1225 = vpop.f32.mrb[0].mxu0
        %v1226 = vadd.f32 0.0, %v1225
        %v1227 = vpop.f32.mrb[0].mxu0
        %1228 = vmatprep.mubr.f32.mxu0 0.0
        %1229 = vmatmul.mubr.f32.gmra.mrb[0].mxu0 %v455
        %v1230 = vpop.f32.mrb[0].mxu0
        %v1231 = vadd.f32 0.0, %v1230
        %v1232 = vpop.f32.mrb[0].mxu0
        %1233 = vdwg.mxu0
        %s1234 = scalar_lea.vmem %s352, 160 [#allocation2]
        %v1235 = vld [vmem:[%s1234] sm:$0xff]
        %v1236 = vld [vmem:[%s1234 + $0x8] sm:$0xff]
        %1237 = vmatprep.subr.mxu0 0.0
        %1238 = vmatpush1.msra.mxu0 %v1235
        %1239 = vmatprep.subr.mxu0 0.0
        %1240 = vmatpush1.msra.mxu0 %v1236
        %1241 = vmatprep.subr.mxu0 0.0
        %1242 = vmatpush1.msra.mxu0 0.0
        %1243 = vmatprep.subr.mxu0 0.0
        %1244 = vmatpush1.msra.mxu0 0.0
        %1245 = vmatprep.subr.mxu0 0.0
        %1246 = vmatpush1.msra.mxu0 0.0
        %1247 = vmatprep.subr.mxu0 0.0
        %1248 = vmatpush1.msra.mxu0 0.0
        %1249 = vmatprep.subr.mxu0 0.0
        %1250 = vmatpush1.msra.mxu0 0.0
        %1251 = vmatprep.subr.mxu0 0.0
        %1252 = vmatpush1.msra.mxu0 0.0
        %1253 = vmatprep.subr.mxu0 0.0
        %1254 = vmatpush1.msra.mxu0 0.0
        %1255 = vmatprep.subr.mxu0 0.0
        %1256 = vmatpush1.msra.mxu0 0.0
        %1257 = vmatprep.subr.mxu0 0.0
        %1258 = vmatpush1.msra.mxu0 0.0
        %1259 = vmatprep.subr.mxu0 0.0
        %1260 = vmatpush1.msra.mxu0 0.0
        %1261 = vmatprep.subr.mxu0 0.0
        %1262 = vmatpush1.msra.mxu0 0.0
        %1263 = vmatprep.subr.mxu0 0.0
        %1264 = vmatpush1.msra.mxu0 0.0
        %1265 = vmatprep.subr.mxu0 0.0
        %1266 = vmatpush1.msra.mxu0 0.0
        %1267 = vmatprep.subr.mxu0 0.0
        %1268 = vmatpush1.msra.mxu0 0.0
        %1269 = vmatprep.subr.mxu0 0.0
        %1270 = vmatpush1.msra.mxu0 0.0
        %1271 = vmatprep.subr.mxu0 0.0
        %1272 = vmatpush1.msra.mxu0 0.0
        %1273 = vmatprep.subr.mxu0 0.0
        %1274 = vmatpush1.msra.mxu0 0.0
        %1275 = vmatprep.subr.mxu0 0.0
        %1276 = vmatpush1.msra.mxu0 0.0
        %1277 = vmatprep.subr.mxu0 0.0
        %1278 = vmatpush1.msra.mxu0 0.0
        %1279 = vmatprep.subr.mxu0 0.0
        %1280 = vmatpush1.msra.mxu0 0.0
        %1281 = vmatprep.subr.mxu0 0.0
        %1282 = vmatpush1.msra.mxu0 0.0
        %1283 = vmatprep.subr.mxu0 0.0
        %1284 = vmatpush1.msra.mxu0 0.0
        %1285 = vmatprep.subr.mxu0 0.0
        %1286 = vmatpush1.msra.mxu0 0.0
        %1287 = vmatprep.subr.mxu0 0.0
        %1288 = vmatpush1.msra.mxu0 0.0
        %1289 = vmatprep.subr.mxu0 0.0
        %1290 = vmatpush1.msra.mxu0 0.0
        %1291 = vmatprep.subr.mxu0 0.0
        %1292 = vmatpush1.msra.mxu0 0.0
        %1293 = vmatprep.subr.mxu0 0.0
        %1294 = vmatpush1.msra.mxu0 0.0
        %1295 = vmatprep.subr.mxu0 0.0
        %1296 = vmatpush1.msra.mxu0 0.0
        %1297 = vmatprep.subr.mxu0 0.0
        %1298 = vmatpush1.msra.mxu0 0.0
        %1299 = vmatprep.subr.mxu0 0.0
        %1300 = vmatpush1.msra.mxu0 0.0
        %1301 = vmatprep.mubr.f32.mxu0 0.0
        %1302 = vmatmul.mubr.f32.gmra.mrb[0].mxu0 %v452
        %v1303 = vpop.f32.mrb[0].mxu0
        %v1304 = vadd.f32 0.0, %v1303
        %v1305 = vpop.f32.mrb[0].mxu0
        %1306 = vmatprep.mubr.f32.mxu0 0.0
        %1307 = vmatmul.mubr.f32.gmra.mrb[0].mxu0 %v455
        %v1308 = vpop.f32.mrb[0].mxu0
        %v1309 = vadd.f32 0.0, %v1308
        %v1310 = vpop.f32.mrb[0].mxu0
        %1311 = vdwg.mxu0
        %s1312 = scalar_lea.vmem %s352, 176 [#allocation2]
        %v1313 = vld [vmem:[%s1312] sm:$0xff]
        %v1314 = vld [vmem:[%s1312 + $0x8] sm:$0xff]
        %1315 = vmatprep.subr.mxu0 0.0
        %1316 = vmatpush1.msra.mxu0 %v1313
        %1317 = vmatprep.subr.mxu0 0.0
        %1318 = vmatpush1.msra.mxu0 %v1314
        %1319 = vmatprep.subr.mxu0 0.0
        %1320 = vmatpush1.msra.mxu0 0.0
        %1321 = vmatprep.subr.mxu0 0.0
        %1322 = vmatpush1.msra.mxu0 0.0
        %1323 = vmatprep.subr.mxu0 0.0
        %1324 = vmatpush1.msra.mxu0 0.0
        %1325 = vmatprep.subr.mxu0 0.0
        %1326 = vmatpush1.msra.mxu0 0.0
        %1327 = vmatprep.subr.mxu0 0.0
        %1328 = vmatpush1.msra.mxu0 0.0
        %1329 = vmatprep.subr.mxu0 0.0
        %1330 = vmatpush1.msra.mxu0 0.0
        %1331 = vmatprep.subr.mxu0 0.0
        %1332 = vmatpush1.msra.mxu0 0.0
        %1333 = vmatprep.subr.mxu0 0.0
        %1334 = vmatpush1.msra.mxu0 0.0
        %1335 = vmatprep.subr.mxu0 0.0
        %1336 = vmatpush1.msra.mxu0 0.0
        %1337 = vmatprep.subr.mxu0 0.0
        %1338 = vmatpush1.msra.mxu0 0.0
        %1339 = vmatprep.subr.mxu0 0.0
        %1340 = vmatpush1.msra.mxu0 0.0
        %1341 = vmatprep.subr.mxu0 0.0
        %1342 = vmatpush1.msra.mxu0 0.0
        %1343 = vmatprep.subr.mxu0 0.0
        %1344 = vmatpush1.msra.mxu0 0.0
        %1345 = vmatprep.subr.mxu0 0.0
        %1346 = vmatpush1.msra.mxu0 0.0
        %1347 = vmatprep.subr.mxu0 0.0
        %1348 = vmatpush1.msra.mxu0 0.0
        %1349 = vmatprep.subr.mxu0 0.0
        %1350 = vmatpush1.msra.mxu0 0.0
        %1351 = vmatprep.subr.mxu0 0.0
        %1352 = vmatpush1.msra.mxu0 0.0
        %1353 = vmatprep.subr.mxu0 0.0
        %1354 = vmatpush1.msra.mxu0 0.0
        %1355 = vmatprep.subr.mxu0 0.0
        %1356 = vmatpush1.msra.mxu0 0.0
        %1357 = vmatprep.subr.mxu0 0.0
        %1358 = vmatpush1.msra.mxu0 0.0
        %1359 = vmatprep.subr.mxu0 0.0
        %1360 = vmatpush1.msra.mxu0 0.0
        %1361 = vmatprep.subr.mxu0 0.0
        %1362 = vmatpush1.msra.mxu0 0.0
        %1363 = vmatprep.subr.mxu0 0.0
        %1364 = vmatpush1.msra.mxu0 0.0
        %1365 = vmatprep.subr.mxu0 0.0
        %1366 = vmatpush1.msra.mxu0 0.0
        %1367 = vmatprep.subr.mxu0 0.0
        %1368 = vmatpush1.msra.mxu0 0.0
        %1369 = vmatprep.subr.mxu0 0.0
        %1370 = vmatpush1.msra.mxu0 0.0
        %1371 = vmatprep.subr.mxu0 0.0
        %1372 = vmatpush1.msra.mxu0 0.0
        %1373 = vmatprep.subr.mxu0 0.0
        %1374 = vmatpush1.msra.mxu0 0.0
        %1375 = vmatprep.subr.mxu0 0.0
        %1376 = vmatpush1.msra.mxu0 0.0
        %1377 = vmatprep.subr.mxu0 0.0
        %1378 = vmatpush1.msra.mxu0 0.0
        %1379 = vmatprep.mubr.f32.mxu0 0.0
        %1380 = vmatmul.mubr.f32.gmra.mrb[0].mxu0 %v452
        %v1381 = vpop.f32.mrb[0].mxu0
        %v1382 = vadd.f32 0.0, %v1381
        %v1383 = vpop.f32.mrb[0].mxu0
        %1384 = vmatprep.mubr.f32.mxu0 0.0
        %1385 = vmatmul.mubr.f32.gmra.mrb[0].mxu0 %v455
        %v1386 = vpop.f32.mrb[0].mxu0
        %v1387 = vadd.f32 0.0, %v1386
        %v1388 = vpop.f32.mrb[0].mxu0
        %1389 = vdwg.mxu0
        %s1390 = scalar_lea.vmem %s352, 192 [#allocation2]
        %v1391 = vld [vmem:[%s1390] sm:$0xff]
        %v1392 = vld [vmem:[%s1390 + $0x8] sm:$0xff]
        %1393 = vmatprep.subr.mxu0 0.0
        %1394 = vmatpush1.msra.mxu0 %v1391
        %1395 = vmatprep.subr.mxu0 0.0
        %1396 = vmatpush1.msra.mxu0 %v1392
        %1397 = vmatprep.subr.mxu0 0.0
        %1398 = vmatpush1.msra.mxu0 0.0
        %1399 = vmatprep.subr.mxu0 0.0
        %1400 = vmatpush1.msra.mxu0 0.0
        %1401 = vmatprep.subr.mxu0 0.0
        %1402 = vmatpush1.msra.mxu0 0.0
        %1403 = vmatprep.subr.mxu0 0.0
        %1404 = vmatpush1.msra.mxu0 0.0
        %1405 = vmatprep.subr.mxu0 0.0
        %1406 = vmatpush1.msra.mxu0 0.0
        %1407 = vmatprep.subr.mxu0 0.0
        %1408 = vmatpush1.msra.mxu0 0.0
        %1409 = vmatprep.subr.mxu0 0.0
        %1410 = vmatpush1.msra.mxu0 0.0
        %1411 = vmatprep.subr.mxu0 0.0
        %1412 = vmatpush1.msra.mxu0 0.0
        %1413 = vmatprep.subr.mxu0 0.0
        %1414 = vmatpush1.msra.mxu0 0.0
        %1415 = vmatprep.subr.mxu0 0.0
        %1416 = vmatpush1.msra.mxu0 0.0
        %1417 = vmatprep.subr.mxu0 0.0
        %1418 = vmatpush1.msra.mxu0 0.0
        %1419 = vmatprep.subr.mxu0 0.0
        %1420 = vmatpush1.msra.mxu0 0.0
        %1421 = vmatprep.subr.mxu0 0.0
        %1422 = vmatpush1.msra.mxu0 0.0
        %1423 = vmatprep.subr.mxu0 0.0
        %1424 = vmatpush1.msra.mxu0 0.0
        %1425 = vmatprep.subr.mxu0 0.0
        %1426 = vmatpush1.msra.mxu0 0.0
        %1427 = vmatprep.subr.mxu0 0.0
        %1428 = vmatpush1.msra.mxu0 0.0
        %1429 = vmatprep.subr.mxu0 0.0
        %1430 = vmatpush1.msra.mxu0 0.0
        %1431 = vmatprep.subr.mxu0 0.0
        %1432 = vmatpush1.msra.mxu0 0.0
        %1433 = vmatprep.subr.mxu0 0.0
        %1434 = vmatpush1.msra.mxu0 0.0
        %1435 = vmatprep.subr.mxu0 0.0
        %1436 = vmatpush1.msra.mxu0 0.0
        %1437 = vmatprep.subr.mxu0 0.0
        %1438 = vmatpush1.msra.mxu0 0.0
        %1439 = vmatprep.subr.mxu0 0.0
        %1440 = vmatpush1.msra.mxu0 0.0
        %1441 = vmatprep.subr.mxu0 0.0
        %1442 = vmatpush1.msra.mxu0 0.0
        %1443 = vmatprep.subr.mxu0 0.0
        %1444 = vmatpush1.msra.mxu0 0.0
        %1445 = vmatprep.subr.mxu0 0.0
        %1446 = vmatpush1.msra.mxu0 0.0
        %1447 = vmatprep.subr.mxu0 0.0
        %1448 = vmatpush1.msra.mxu0 0.0
        %1449 = vmatprep.subr.mxu0 0.0
        %1450 = vmatpush1.msra.mxu0 0.0
        %1451 = vmatprep.subr.mxu0 0.0
        %1452 = vmatpush1.msra.mxu0 0.0
        %1453 = vmatprep.subr.mxu0 0.0
        %1454 = vmatpush1.msra.mxu0 0.0
        %1455 = vmatprep.subr.mxu0 0.0
        %1456 = vmatpush1.msra.mxu0 0.0
        %1457 = vmatprep.mubr.f32.mxu0 0.0
        %1458 = vmatmul.mubr.f32.gmra.mrb[0].mxu0 %v452
        %v1459 = vpop.f32.mrb[0].mxu0
        %v1460 = vadd.f32 0.0, %v1459
        %v1461 = vpop.f32.mrb[0].mxu0
        %1462 = vmatprep.mubr.f32.mxu0 0.0
        %1463 = vmatmul.mubr.f32.gmra.mrb[0].mxu0 %v455
        %v1464 = vpop.f32.mrb[0].mxu0
        %v1465 = vadd.f32 0.0, %v1464
        %v1466 = vpop.f32.mrb[0].mxu0
        %1467 = vdwg.mxu0
        %s1468 = scalar_lea.vmem %s352, 208 [#allocation2]
        %v1469 = vld [vmem:[%s1468] sm:$0xff]
        %v1470 = vld [vmem:[%s1468 + $0x8] sm:$0xff]
        %1471 = vmatprep.subr.mxu0 0.0
        %1472 = vmatpush1.msra.mxu0 %v1469
        %1473 = vmatprep.subr.mxu0 0.0
        %1474 = vmatpush1.msra.mxu0 %v1470
        %1475 = vmatprep.subr.mxu0 0.0
        %1476 = vmatpush1.msra.mxu0 0.0
        %1477 = vmatprep.subr.mxu0 0.0
        %1478 = vmatpush1.msra.mxu0 0.0
        %1479 = vmatprep.subr.mxu0 0.0
        %1480 = vmatpush1.msra.mxu0 0.0
        %1481 = vmatprep.subr.mxu0 0.0
        %1482 = vmatpush1.msra.mxu0 0.0
        %1483 = vmatprep.subr.mxu0 0.0
        %1484 = vmatpush1.msra.mxu0 0.0
        %1485 = vmatprep.subr.mxu0 0.0
        %1486 = vmatpush1.msra.mxu0 0.0
        %1487 = vmatprep.subr.mxu0 0.0
        %1488 = vmatpush1.msra.mxu0 0.0
        %1489 = vmatprep.subr.mxu0 0.0
        %1490 = vmatpush1.msra.mxu0 0.0
        %1491 = vmatprep.subr.mxu0 0.0
        %1492 = vmatpush1.msra.mxu0 0.0
        %1493 = vmatprep.subr.mxu0 0.0
        %1494 = vmatpush1.msra.mxu0 0.0
        %1495 = vmatprep.subr.mxu0 0.0
        %1496 = vmatpush1.msra.mxu0 0.0
        %1497 = vmatprep.subr.mxu0 0.0
        %1498 = vmatpush1.msra.mxu0 0.0
        %1499 = vmatprep.subr.mxu0 0.0
        %1500 = vmatpush1.msra.mxu0 0.0
        %1501 = vmatprep.subr.mxu0 0.0
        %1502 = vmatpush1.msra.mxu0 0.0
        %1503 = vmatprep.subr.mxu0 0.0
        %1504 = vmatpush1.msra.mxu0 0.0
        %1505 = vmatprep.subr.mxu0 0.0
        %1506 = vmatpush1.msra.mxu0 0.0
        %1507 = vmatprep.subr.mxu0 0.0
        %1508 = vmatpush1.msra.mxu0 0.0
        %1509 = vmatprep.subr.mxu0 0.0
        %1510 = vmatpush1.msra.mxu0 0.0
        %1511 = vmatprep.subr.mxu0 0.0
        %1512 = vmatpush1.msra.mxu0 0.0
        %1513 = vmatprep.subr.mxu0 0.0
        %1514 = vmatpush1.msra.mxu0 0.0
        %1515 = vmatprep.subr.mxu0 0.0
        %1516 = vmatpush1.msra.mxu0 0.0
        %1517 = vmatprep.subr.mxu0 0.0
        %1518 = vmatpush1.msra.mxu0 0.0
        %1519 = vmatprep.subr.mxu0 0.0
        %1520 = vmatpush1.msra.mxu0 0.0
        %1521 = vmatprep.subr.mxu0 0.0
        %1522 = vmatpush1.msra.mxu0 0.0
        %1523 = vmatprep.subr.mxu0 0.0
        %1524 = vmatpush1.msra.mxu0 0.0
        %1525 = vmatprep.subr.mxu0 0.0
        %1526 = vmatpush1.msra.mxu0 0.0
        %1527 = vmatprep.subr.mxu0 0.0
        %1528 = vmatpush1.msra.mxu0 0.0
        %1529 = vmatprep.subr.mxu0 0.0
        %1530 = vmatpush1.msra.mxu0 0.0
        %1531 = vmatprep.subr.mxu0 0.0
        %1532 = vmatpush1.msra.mxu0 0.0
        %1533 = vmatprep.subr.mxu0 0.0
        %1534 = vmatpush1.msra.mxu0 0.0
        %1535 = vmatprep.mubr.f32.mxu0 0.0
        %1536 = vmatmul.mubr.f32.gmra.mrb[0].mxu0 %v452
        %v1537 = vpop.f32.mrb[0].mxu0
        %v1538 = vadd.f32 0.0, %v1537
        %v1539 = vpop.f32.mrb[0].mxu0
        %1540 = vmatprep.mubr.f32.mxu0 0.0
        %1541 = vmatmul.mubr.f32.gmra.mrb[0].mxu0 %v455
        %v1542 = vpop.f32.mrb[0].mxu0
        %v1543 = vadd.f32 0.0, %v1542
        %v1544 = vpop.f32.mrb[0].mxu0
        %1545 = vdwg.mxu0
        %s1546 = scalar_lea.vmem %s352, 224 [#allocation2]
        %v1547 = vld [vmem:[%s1546] sm:$0xff]
        %v1548 = vld [vmem:[%s1546 + $0x8] sm:$0xff]
        %1549 = vmatprep.subr.mxu0 0.0
        %1550 = vmatpush1.msra.mxu0 %v1547
        %1551 = vmatprep.subr.mxu0 0.0
        %1552 = vmatpush1.msra.mxu0 %v1548
        %1553 = vmatprep.subr.mxu0 0.0
        %1554 = vmatpush1.msra.mxu0 0.0
        %1555 = vmatprep.subr.mxu0 0.0
        %1556 = vmatpush1.msra.mxu0 0.0
        %1557 = vmatprep.subr.mxu0 0.0
        %1558 = vmatpush1.msra.mxu0 0.0
        %1559 = vmatprep.subr.mxu0 0.0
        %1560 = vmatpush1.msra.mxu0 0.0
        %1561 = vmatprep.subr.mxu0 0.0
        %1562 = vmatpush1.msra.mxu0 0.0
        %1563 = vmatprep.subr.mxu0 0.0
        %1564 = vmatpush1.msra.mxu0 0.0
        %1565 = vmatprep.subr.mxu0 0.0
        %1566 = vmatpush1.msra.mxu0 0.0
        %1567 = vmatprep.subr.mxu0 0.0
        %1568 = vmatpush1.msra.mxu0 0.0
        %1569 = vmatprep.subr.mxu0 0.0
        %1570 = vmatpush1.msra.mxu0 0.0
        %1571 = vmatprep.subr.mxu0 0.0
        %1572 = vmatpush1.msra.mxu0 0.0
        %1573 = vmatprep.subr.mxu0 0.0
        %1574 = vmatpush1.msra.mxu0 0.0
        %1575 = vmatprep.subr.mxu0 0.0
        %1576 = vmatpush1.msra.mxu0 0.0
        %1577 = vmatprep.subr.mxu0 0.0
        %1578 = vmatpush1.msra.mxu0 0.0
        %1579 = vmatprep.subr.mxu0 0.0
        %1580 = vmatpush1.msra.mxu0 0.0
        %1581 = vmatprep.subr.mxu0 0.0
        %1582 = vmatpush1.msra.mxu0 0.0
        %1583 = vmatprep.subr.mxu0 0.0
        %1584 = vmatpush1.msra.mxu0 0.0
        %1585 = vmatprep.subr.mxu0 0.0
        %1586 = vmatpush1.msra.mxu0 0.0
        %1587 = vmatprep.subr.mxu0 0.0
        %1588 = vmatpush1.msra.mxu0 0.0
        %1589 = vmatprep.subr.mxu0 0.0
        %1590 = vmatpush1.msra.mxu0 0.0
        %1591 = vmatprep.subr.mxu0 0.0
        %1592 = vmatpush1.msra.mxu0 0.0
        %1593 = vmatprep.subr.mxu0 0.0
        %1594 = vmatpush1.msra.mxu0 0.0
        %1595 = vmatprep.subr.mxu0 0.0
        %1596 = vmatpush1.msra.mxu0 0.0
        %1597 = vmatprep.subr.mxu0 0.0
        %1598 = vmatpush1.msra.mxu0 0.0
        %1599 = vmatprep.subr.mxu0 0.0
        %1600 = vmatpush1.msra.mxu0 0.0
        %1601 = vmatprep.subr.mxu0 0.0
        %1602 = vmatpush1.msra.mxu0 0.0
        %1603 = vmatprep.subr.mxu0 0.0
        %1604 = vmatpush1.msra.mxu0 0.0
        %1605 = vmatprep.subr.mxu0 0.0
        %1606 = vmatpush1.msra.mxu0 0.0
        %1607 = vmatprep.subr.mxu0 0.0
        %1608 = vmatpush1.msra.mxu0 0.0
        %1609 = vmatprep.subr.mxu0 0.0
        %1610 = vmatpush1.msra.mxu0 0.0
        %1611 = vmatprep.subr.mxu0 0.0
        %1612 = vmatpush1.msra.mxu0 0.0
        %1613 = vmatprep.mubr.f32.mxu0 0.0
        %1614 = vmatmul.mubr.f32.gmra.mrb[0].mxu0 %v452
        %v1615 = vpop.f32.mrb[0].mxu0
        %v1616 = vadd.f32 0.0, %v1615
        %v1617 = vpop.f32.mrb[0].mxu0
        %1618 = vmatprep.mubr.f32.mxu0 0.0
        %1619 = vmatmul.mubr.f32.gmra.mrb[0].mxu0 %v455
        %v1620 = vpop.f32.mrb[0].mxu0
        %v1621 = vadd.f32 0.0, %v1620
        %v1622 = vpop.f32.mrb[0].mxu0
        %1623 = vdwg.mxu0
        %s1624 = scalar_lea.vmem %s352, 240 [#allocation2]
        %v1625 = vld [vmem:[%s1624] sm:$0xff]
        %v1626 = vld [vmem:[%s1624 + $0x8] sm:$0xff]
        %1627 = vmatprep.subr.mxu0 0.0
        %1628 = vmatpush1.msra.mxu0 %v1625
        %1629 = vmatprep.subr.mxu0 0.0
        %1630 = vmatpush1.msra.mxu0 %v1626
        %1631 = vmatprep.subr.mxu0 0.0
        %1632 = vmatpush1.msra.mxu0 0.0
        %1633 = vmatprep.subr.mxu0 0.0
        %1634 = vmatpush1.msra.mxu0 0.0
        %1635 = vmatprep.subr.mxu0 0.0
        %1636 = vmatpush1.msra.mxu0 0.0
        %1637 = vmatprep.subr.mxu0 0.0
        %1638 = vmatpush1.msra.mxu0 0.0
        %1639 = vmatprep.subr.mxu0 0.0
        %1640 = vmatpush1.msra.mxu0 0.0
        %1641 = vmatprep.subr.mxu0 0.0
        %1642 = vmatpush1.msra.mxu0 0.0
        %1643 = vmatprep.subr.mxu0 0.0
        %1644 = vmatpush1.msra.mxu0 0.0
        %1645 = vmatprep.subr.mxu0 0.0
        %1646 = vmatpush1.msra.mxu0 0.0
        %1647 = vmatprep.subr.mxu0 0.0
        %1648 = vmatpush1.msra.mxu0 0.0
        %1649 = vmatprep.subr.mxu0 0.0
        %1650 = vmatpush1.msra.mxu0 0.0
        %1651 = vmatprep.subr.mxu0 0.0
        %1652 = vmatpush1.msra.mxu0 0.0
        %1653 = vmatprep.subr.mxu0 0.0
        %1654 = vmatpush1.msra.mxu0 0.0
        %1655 = vmatprep.subr.mxu0 0.0
        %1656 = vmatpush1.msra.mxu0 0.0
        %1657 = vmatprep.subr.mxu0 0.0
        %1658 = vmatpush1.msra.mxu0 0.0
        %1659 = vmatprep.subr.mxu0 0.0
        %1660 = vmatpush1.msra.mxu0 0.0
        %1661 = vmatprep.subr.mxu0 0.0
        %1662 = vmatpush1.msra.mxu0 0.0
        %1663 = vmatprep.subr.mxu0 0.0
        %1664 = vmatpush1.msra.mxu0 0.0
        %1665 = vmatprep.subr.mxu0 0.0
        %1666 = vmatpush1.msra.mxu0 0.0
        %1667 = vmatprep.subr.mxu0 0.0
        %1668 = vmatpush1.msra.mxu0 0.0
        %1669 = vmatprep.subr.mxu0 0.0
        %1670 = vmatpush1.msra.mxu0 0.0
        %1671 = vmatprep.subr.mxu0 0.0
        %1672 = vmatpush1.msra.mxu0 0.0
        %1673 = vmatprep.subr.mxu0 0.0
        %1674 = vmatpush1.msra.mxu0 0.0
        %1675 = vmatprep.subr.mxu0 0.0
        %1676 = vmatpush1.msra.mxu0 0.0
        %1677 = vmatprep.subr.mxu0 0.0
        %1678 = vmatpush1.msra.mxu0 0.0
        %1679 = vmatprep.subr.mxu0 0.0
        %1680 = vmatpush1.msra.mxu0 0.0
        %1681 = vmatprep.subr.mxu0 0.0
        %1682 = vmatpush1.msra.mxu0 0.0
        %1683 = vmatprep.subr.mxu0 0.0
        %1684 = vmatpush1.msra.mxu0 0.0
        %1685 = vmatprep.subr.mxu0 0.0
        %1686 = vmatpush1.msra.mxu0 0.0
        %1687 = vmatprep.subr.mxu0 0.0
        %1688 = vmatpush1.msra.mxu0 0.0
        %1689 = vmatprep.subr.mxu0 0.0
        %1690 = vmatpush1.msra.mxu0 0.0
        %1691 = vmatprep.mubr.f32.mxu0 0.0
        %1692 = vmatmul.mubr.f32.gmra.mrb[0].mxu0 %v452
        %v1693 = vpop.f32.mrb[0].mxu0
        %v1694 = vadd.f32 0.0, %v1693
        %v1695 = vpop.f32.mrb[0].mxu0
        %1696 = vmatprep.mubr.f32.mxu0 0.0
        %1697 = vmatmul.mubr.f32.gmra.mrb[0].mxu0 %v455
        %v1698 = vpop.f32.mrb[0].mxu0
        %v1699 = vadd.f32 0.0, %v1698
        %v1700 = vpop.f32.mrb[0].mxu0
        %1701 = vdwg.mxu0
        %s1702 = scalar_lea.vmem %s352, 256 [#allocation2]
        %v1703 = vld [vmem:[%s1702] sm:$0xff]
        %v1704 = vld [vmem:[%s1702 + $0x8] sm:$0xff]
        %1705 = vmatprep.subr.mxu0 0.0
        %1706 = vmatpush1.msra.mxu0 %v1703
        %1707 = vmatprep.subr.mxu0 0.0
        %1708 = vmatpush1.msra.mxu0 %v1704
        %1709 = vmatprep.subr.mxu0 0.0
        %1710 = vmatpush1.msra.mxu0 0.0
        %1711 = vmatprep.subr.mxu0 0.0
        %1712 = vmatpush1.msra.mxu0 0.0
        %1713 = vmatprep.subr.mxu0 0.0
        %1714 = vmatpush1.msra.mxu0 0.0
        %1715 = vmatprep.subr.mxu0 0.0
        %1716 = vmatpush1.msra.mxu0 0.0
        %1717 = vmatprep.subr.mxu0 0.0
        %1718 = vmatpush1.msra.mxu0 0.0
        %1719 = vmatprep.subr.mxu0 0.0
        %1720 = vmatpush1.msra.mxu0 0.0
        %1721 = vmatprep.subr.mxu0 0.0
        %1722 = vmatpush1.msra.mxu0 0.0
        %1723 = vmatprep.subr.mxu0 0.0
        %1724 = vmatpush1.msra.mxu0 0.0
        %1725 = vmatprep.subr.mxu0 0.0
        %1726 = vmatpush1.msra.mxu0 0.0
        %1727 = vmatprep.subr.mxu0 0.0
        %1728 = vmatpush1.msra.mxu0 0.0
        %1729 = vmatprep.subr.mxu0 0.0
        %1730 = vmatpush1.msra.mxu0 0.0
        %1731 = vmatprep.subr.mxu0 0.0
        %1732 = vmatpush1.msra.mxu0 0.0
        %1733 = vmatprep.subr.mxu0 0.0
        %1734 = vmatpush1.msra.mxu0 0.0
        %1735 = vmatprep.subr.mxu0 0.0
        %1736 = vmatpush1.msra.mxu0 0.0
        %1737 = vmatprep.subr.mxu0 0.0
        %1738 = vmatpush1.msra.mxu0 0.0
        %1739 = vmatprep.subr.mxu0 0.0
        %1740 = vmatpush1.msra.mxu0 0.0
        %1741 = vmatprep.subr.mxu0 0.0
        %1742 = vmatpush1.msra.mxu0 0.0
        %1743 = vmatprep.subr.mxu0 0.0
        %1744 = vmatpush1.msra.mxu0 0.0
        %1745 = vmatprep.subr.mxu0 0.0
        %1746 = vmatpush1.msra.mxu0 0.0
        %1747 = vmatprep.subr.mxu0 0.0
        %1748 = vmatpush1.msra.mxu0 0.0
        %1749 = vmatprep.subr.mxu0 0.0
        %1750 = vmatpush1.msra.mxu0 0.0
        %1751 = vmatprep.subr.mxu0 0.0
        %1752 = vmatpush1.msra.mxu0 0.0
        %1753 = vmatprep.subr.mxu0 0.0
        %1754 = vmatpush1.msra.mxu0 0.0
        %1755 = vmatprep.subr.mxu0 0.0
        %1756 = vmatpush1.msra.mxu0 0.0
        %1757 = vmatprep.subr.mxu0 0.0
        %1758 = vmatpush1.msra.mxu0 0.0
        %1759 = vmatprep.subr.mxu0 0.0
        %1760 = vmatpush1.msra.mxu0 0.0
        %1761 = vmatprep.subr.mxu0 0.0
        %1762 = vmatpush1.msra.mxu0 0.0
        %1763 = vmatprep.subr.mxu0 0.0
        %1764 = vmatpush1.msra.mxu0 0.0
        %1765 = vmatprep.subr.mxu0 0.0
        %1766 = vmatpush1.msra.mxu0 0.0
        %1767 = vmatprep.subr.mxu0 0.0
        %1768 = vmatpush1.msra.mxu0 0.0
        %1769 = vmatprep.mubr.f32.mxu0 0.0
        %1770 = vmatmul.mubr.f32.gmra.mrb[0].mxu0 %v452
        %v1771 = vpop.f32.mrb[0].mxu0
        %v1772 = vadd.f32 0.0, %v1771
        %v1773 = vpop.f32.mrb[0].mxu0
        %1774 = vmatprep.mubr.f32.mxu0 0.0
        %1775 = vmatmul.mubr.f32.gmra.mrb[0].mxu0 %v455
        %v1776 = vpop.f32.mrb[0].mxu0
        %v1777 = vadd.f32 0.0, %v1776
        %v1778 = vpop.f32.mrb[0].mxu0
        %1779 = vdwg.mxu0
        %s1780 = scalar_lea.vmem %s352, 272 [#allocation2]
        %v1781 = vld [vmem:[%s1780] sm:$0xff]
        %v1782 = vld [vmem:[%s1780 + $0x8] sm:$0xff]
        %1783 = vmatprep.subr.mxu0 0.0
        %1784 = vmatpush1.msra.mxu0 %v1781
        %1785 = vmatprep.subr.mxu0 0.0
        %1786 = vmatpush1.msra.mxu0 %v1782
        %1787 = vmatprep.subr.mxu0 0.0
        %1788 = vmatpush1.msra.mxu0 0.0
        %1789 = vmatprep.subr.mxu0 0.0
        %1790 = vmatpush1.msra.mxu0 0.0
        %1791 = vmatprep.subr.mxu0 0.0
        %1792 = vmatpush1.msra.mxu0 0.0
        %1793 = vmatprep.subr.mxu0 0.0
        %1794 = vmatpush1.msra.mxu0 0.0
        %1795 = vmatprep.subr.mxu0 0.0
        %1796 = vmatpush1.msra.mxu0 0.0
        %1797 = vmatprep.subr.mxu0 0.0
        %1798 = vmatpush1.msra.mxu0 0.0
        %1799 = vmatprep.subr.mxu0 0.0
        %1800 = vmatpush1.msra.mxu0 0.0
        %1801 = vmatprep.subr.mxu0 0.0
        %1802 = vmatpush1.msra.mxu0 0.0
        %1803 = vmatprep.subr.mxu0 0.0
        %1804 = vmatpush1.msra.mxu0 0.0
        %1805 = vmatprep.subr.mxu0 0.0
        %1806 = vmatpush1.msra.mxu0 0.0
        %1807 = vmatprep.subr.mxu0 0.0
        %1808 = vmatpush1.msra.mxu0 0.0
        %1809 = vmatprep.subr.mxu0 0.0
        %1810 = vmatpush1.msra.mxu0 0.0
        %1811 = vmatprep.subr.mxu0 0.0
        %1812 = vmatpush1.msra.mxu0 0.0
        %1813 = vmatprep.subr.mxu0 0.0
        %1814 = vmatpush1.msra.mxu0 0.0
        %1815 = vmatprep.subr.mxu0 0.0
        %1816 = vmatpush1.msra.mxu0 0.0
        %1817 = vmatprep.subr.mxu0 0.0
        %1818 = vmatpush1.msra.mxu0 0.0
        %1819 = vmatprep.subr.mxu0 0.0
        %1820 = vmatpush1.msra.mxu0 0.0
        %1821 = vmatprep.subr.mxu0 0.0
        %1822 = vmatpush1.msra.mxu0 0.0
        %1823 = vmatprep.subr.mxu0 0.0
        %1824 = vmatpush1.msra.mxu0 0.0
        %1825 = vmatprep.subr.mxu0 0.0
        %1826 = vmatpush1.msra.mxu0 0.0
        %1827 = vmatprep.subr.mxu0 0.0
        %1828 = vmatpush1.msra.mxu0 0.0
        %1829 = vmatprep.subr.mxu0 0.0
        %1830 = vmatpush1.msra.mxu0 0.0
        %1831 = vmatprep.subr.mxu0 0.0
        %1832 = vmatpush1.msra.mxu0 0.0
        %1833 = vmatprep.subr.mxu0 0.0
        %1834 = vmatpush1.msra.mxu0 0.0
        %1835 = vmatprep.subr.mxu0 0.0
        %1836 = vmatpush1.msra.mxu0 0.0
        %1837 = vmatprep.subr.mxu0 0.0
        %1838 = vmatpush1.msra.mxu0 0.0
        %1839 = vmatprep.subr.mxu0 0.0
        %1840 = vmatpush1.msra.mxu0 0.0
        %1841 = vmatprep.subr.mxu0 0.0
        %1842 = vmatpush1.msra.mxu0 0.0
        %1843 = vmatprep.subr.mxu0 0.0
        %1844 = vmatpush1.msra.mxu0 0.0
        %1845 = vmatprep.subr.mxu0 0.0
        %1846 = vmatpush1.msra.mxu0 0.0
        %1847 = vmatprep.mubr.f32.mxu0 0.0
        %1848 = vmatmul.mubr.f32.gmra.mrb[0].mxu0 %v452
        %v1849 = vpop.f32.mrb[0].mxu0
        %v1850 = vadd.f32 0.0, %v1849
        %v1851 = vpop.f32.mrb[0].mxu0
        %1852 = vmatprep.mubr.f32.mxu0 0.0
        %1853 = vmatmul.mubr.f32.gmra.mrb[0].mxu0 %v455
        %v1854 = vpop.f32.mrb[0].mxu0
        %v1855 = vadd.f32 0.0, %v1854
        %v1856 = vpop.f32.mrb[0].mxu0
        %1857 = vdwg.mxu0
        %s1858 = scalar_lea.vmem %s352, 288 [#allocation2]
        %v1859 = vld [vmem:[%s1858] sm:$0xff]
        %v1860 = vld [vmem:[%s1858 + $0x8] sm:$0xff]
        %1861 = vmatprep.subr.mxu0 0.0
        %1862 = vmatpush1.msra.mxu0 %v1859
        %1863 = vmatprep.subr.mxu0 0.0
        %1864 = vmatpush1.msra.mxu0 %v1860
        %1865 = vmatprep.subr.mxu0 0.0
        %1866 = vmatpush1.msra.mxu0 0.0
        %1867 = vmatprep.subr.mxu0 0.0
        %1868 = vmatpush1.msra.mxu0 0.0
        %1869 = vmatprep.subr.mxu0 0.0
        %1870 = vmatpush1.msra.mxu0 0.0
        %1871 = vmatprep.subr.mxu0 0.0
        %1872 = vmatpush1.msra.mxu0 0.0
        %1873 = vmatprep.subr.mxu0 0.0
        %1874 = vmatpush1.msra.mxu0 0.0
        %1875 = vmatprep.subr.mxu0 0.0
        %1876 = vmatpush1.msra.mxu0 0.0
        %1877 = vmatprep.subr.mxu0 0.0
        %1878 = vmatpush1.msra.mxu0 0.0
        %1879 = vmatprep.subr.mxu0 0.0
        %1880 = vmatpush1.msra.mxu0 0.0
        %1881 = vmatprep.subr.mxu0 0.0
        %1882 = vmatpush1.msra.mxu0 0.0
        %1883 = vmatprep.subr.mxu0 0.0
        %1884 = vmatpush1.msra.mxu0 0.0
        %1885 = vmatprep.subr.mxu0 0.0
        %1886 = vmatpush1.msra.mxu0 0.0
        %1887 = vmatprep.subr.mxu0 0.0
        %1888 = vmatpush1.msra.mxu0 0.0
        %1889 = vmatprep.subr.mxu0 0.0
        %1890 = vmatpush1.msra.mxu0 0.0
        %1891 = vmatprep.subr.mxu0 0.0
        %1892 = vmatpush1.msra.mxu0 0.0
        %1893 = vmatprep.subr.mxu0 0.0
        %1894 = vmatpush1.msra.mxu0 0.0
        %1895 = vmatprep.subr.mxu0 0.0
        %1896 = vmatpush1.msra.mxu0 0.0
        %1897 = vmatprep.subr.mxu0 0.0
        %1898 = vmatpush1.msra.mxu0 0.0
        %1899 = vmatprep.subr.mxu0 0.0
        %1900 = vmatpush1.msra.mxu0 0.0
        %1901 = vmatprep.subr.mxu0 0.0
        %1902 = vmatpush1.msra.mxu0 0.0
        %1903 = vmatprep.subr.mxu0 0.0
        %1904 = vmatpush1.msra.mxu0 0.0
        %1905 = vmatprep.subr.mxu0 0.0
        %1906 = vmatpush1.msra.mxu0 0.0
        %1907 = vmatprep.subr.mxu0 0.0
        %1908 = vmatpush1.msra.mxu0 0.0
        %1909 = vmatprep.subr.mxu0 0.0
        %1910 = vmatpush1.msra.mxu0 0.0
        %1911 = vmatprep.subr.mxu0 0.0
        %1912 = vmatpush1.msra.mxu0 0.0
        %1913 = vmatprep.subr.mxu0 0.0
        %1914 = vmatpush1.msra.mxu0 0.0
        %1915 = vmatprep.subr.mxu0 0.0
        %1916 = vmatpush1.msra.mxu0 0.0
        %1917 = vmatprep.subr.mxu0 0.0
        %1918 = vmatpush1.msra.mxu0 0.0
        %1919 = vmatprep.subr.mxu0 0.0
        %1920 = vmatpush1.msra.mxu0 0.0
        %1921 = vmatprep.subr.mxu0 0.0
        %1922 = vmatpush1.msra.mxu0 0.0
        %1923 = vmatprep.subr.mxu0 0.0
        %1924 = vmatpush1.msra.mxu0 0.0
        %1925 = vmatprep.mubr.f32.mxu0 0.0
        %1926 = vmatmul.mubr.f32.gmra.mrb[0].mxu0 %v452
        %v1927 = vpop.f32.mrb[0].mxu0
        %v1928 = vadd.f32 0.0, %v1927
        %v1929 = vpop.f32.mrb[0].mxu0
        %1930 = vmatprep.mubr.f32.mxu0 0.0
        %1931 = vmatmul.mubr.f32.gmra.mrb[0].mxu0 %v455
        %v1932 = vpop.f32.mrb[0].mxu0
        %v1933 = vadd.f32 0.0, %v1932
        %v1934 = vpop.f32.mrb[0].mxu0
        %1935 = vdwg.mxu0
        %s1936 = scalar_lea.vmem %s352, 304 [#allocation2]
        %v1937 = vld [vmem:[%s1936] sm:$0xff]
        %v1938 = vld [vmem:[%s1936 + $0x8] sm:$0xff]
        %1939 = vmatprep.subr.mxu0 0.0
        %1940 = vmatpush1.msra.mxu0 %v1937
        %1941 = vmatprep.subr.mxu0 0.0
        %1942 = vmatpush1.msra.mxu0 %v1938
        %1943 = vmatprep.subr.mxu0 0.0
        %1944 = vmatpush1.msra.mxu0 0.0
        %1945 = vmatprep.subr.mxu0 0.0
        %1946 = vmatpush1.msra.mxu0 0.0
        %1947 = vmatprep.subr.mxu0 0.0
        %1948 = vmatpush1.msra.mxu0 0.0
        %1949 = vmatprep.subr.mxu0 0.0
        %1950 = vmatpush1.msra.mxu0 0.0
        %1951 = vmatprep.subr.mxu0 0.0
        %1952 = vmatpush1.msra.mxu0 0.0
        %1953 = vmatprep.subr.mxu0 0.0
        %1954 = vmatpush1.msra.mxu0 0.0
        %1955 = vmatprep.subr.mxu0 0.0
        %1956 = vmatpush1.msra.mxu0 0.0
        %1957 = vmatprep.subr.mxu0 0.0
        %1958 = vmatpush1.msra.mxu0 0.0
        %1959 = vmatprep.subr.mxu0 0.0
        %1960 = vmatpush1.msra.mxu0 0.0
        %1961 = vmatprep.subr.mxu0 0.0
        %1962 = vmatpush1.msra.mxu0 0.0
        %1963 = vmatprep.subr.mxu0 0.0
        %1964 = vmatpush1.msra.mxu0 0.0
        %1965 = vmatprep.subr.mxu0 0.0
        %1966 = vmatpush1.msra.mxu0 0.0
        %1967 = vmatprep.subr.mxu0 0.0
        %1968 = vmatpush1.msra.mxu0 0.0
        %1969 = vmatprep.subr.mxu0 0.0
        %1970 = vmatpush1.msra.mxu0 0.0
        %1971 = vmatprep.subr.mxu0 0.0
        %1972 = vmatpush1.msra.mxu0 0.0
        %1973 = vmatprep.subr.mxu0 0.0
        %1974 = vmatpush1.msra.mxu0 0.0
        %1975 = vmatprep.subr.mxu0 0.0
        %1976 = vmatpush1.msra.mxu0 0.0
        %1977 = vmatprep.subr.mxu0 0.0
        %1978 = vmatpush1.msra.mxu0 0.0
        %1979 = vmatprep.subr.mxu0 0.0
        %1980 = vmatpush1.msra.mxu0 0.0
        %1981 = vmatprep.subr.mxu0 0.0
        %1982 = vmatpush1.msra.mxu0 0.0
        %1983 = vmatprep.subr.mxu0 0.0
        %1984 = vmatpush1.msra.mxu0 0.0
        %1985 = vmatprep.subr.mxu0 0.0
        %1986 = vmatpush1.msra.mxu0 0.0
        %1987 = vmatprep.subr.mxu0 0.0
        %1988 = vmatpush1.msra.mxu0 0.0
        %1989 = vmatprep.subr.mxu0 0.0
        %1990 = vmatpush1.msra.mxu0 0.0
        %1991 = vmatprep.subr.mxu0 0.0
        %1992 = vmatpush1.msra.mxu0 0.0
        %1993 = vmatprep.subr.mxu0 0.0
        %1994 = vmatpush1.msra.mxu0 0.0
        %1995 = vmatprep.subr.mxu0 0.0
        %1996 = vmatpush1.msra.mxu0 0.0
        %1997 = vmatprep.subr.mxu0 0.0
        %1998 = vmatpush1.msra.mxu0 0.0
        %1999 = vmatprep.subr.mxu0 0.0
        %2000 = vmatpush1.msra.mxu0 0.0
        %2001 = vmatprep.subr.mxu0 0.0
        %2002 = vmatpush1.msra.mxu0 0.0
        %2003 = vmatprep.mubr.f32.mxu0 0.0
        %2004 = vmatmul.mubr.f32.gmra.mrb[0].mxu0 %v452
        %v2005 = vpop.f32.mrb[0].mxu0
        %v2006 = vadd.f32 0.0, %v2005
        %v2007 = vpop.f32.mrb[0].mxu0
        %2008 = vmatprep.mubr.f32.mxu0 0.0
        %2009 = vmatmul.mubr.f32.gmra.mrb[0].mxu0 %v455
        %v2010 = vpop.f32.mrb[0].mxu0
        %v2011 = vadd.f32 0.0, %v2010
        %v2012 = vpop.f32.mrb[0].mxu0
        %2013 = vdwg.mxu0
        %v2014 = vsel %vm439, 1, 0
        %v2015 = vsel %vm440, 1, 0
        %v2016 = vsel %vm441, 1, 0
        %vm2017 = vcmp.eq.s32.totalorder %v2014, 1
        %vm2018 = vcmp.eq.s32.totalorder %v2015, 1
        %vm2019 = vcmp.eq.s32.totalorder %v2016, 1
        %v2020 = vcvt.s32.f32 %v2014
        %v2021 = vcvt.s32.f32 %v2015
        %v2022 = vcvt.s32.f32 %v2016
        %v2023 = vmul.f32 %v2020, %v445
        %v2024 = vmul.f32 %v2021, %v445
        %v2025 = vmul.f32 %v2022, %v445
        %v2029 = vcombine.high %v2023, %v2023
        %v2031 = vunpack.c.l.s4 1966171168
        %v2032 = vunpack.c.0.s8 %v2031
        %v2033 = vlaneseq
        %v2034 = vshrl.u32 %v2033, 7
        %v2035 = vsub.s32 %v2032, %v2034
        %v2036 = vrot.slane %v2023, %v2035
        %v2038 = vunpack.c.l.s4 1966171168
        %v2039 = vunpack.c.0.s8 %v2038
        %v2040 = vlaneseq
        %v2041 = vshrl.u32 %v2040, 7
        %v2042 = vsub.s32 %v2039, %v2041
        %v2043 = vrot.slane %v2029, %v2042
        %v2044 = vcombine.high %v2036, %v2036
        %v2045 = vcombine.high %v2043, %v2043
        %v2047 = vunpack.c.l.s4 1966171168
        %v2048 = vunpack.c.0.s8 %v2047
        %v2049 = vlaneseq
        %v2050 = vshrl.u32 %v2049, 7
        %v2051 = vsub.s32 %v2048, %v2050
        %v2052 = vrot.slane %v2036, %v2051
        %v2054 = vunpack.c.l.s4 1966171168
        %v2055 = vunpack.c.0.s8 %v2054
        %v2056 = vlaneseq
        %v2057 = vshrl.u32 %v2056, 7
        %v2058 = vsub.s32 %v2055, %v2057
        %v2059 = vrot.slane %v2043, %v2058
        %v2061 = vunpack.c.l.s4 1966171168
        %v2062 = vunpack.c.0.s8 %v2061
        %v2063 = vlaneseq
        %v2064 = vshrl.u32 %v2063, 7
        %v2065 = vsub.s32 %v2062, %v2064
        %v2066 = vrot.slane %v2044, %v2065
        %v2068 = vunpack.c.l.s4 1966171168
        %v2069 = vunpack.c.0.s8 %v2068
        %v2070 = vlaneseq
        %v2071 = vshrl.u32 %v2070, 7
        %v2072 = vsub.s32 %v2069, %v2071
        %v2073 = vrot.slane %v2045, %v2072
        %v2074 = vcombine.high %v2052, %v2052
        %v2075 = vcombine.high %v2059, %v2059
        %v2076 = vcombine.high %v2066, %v2066
        %v2077 = vcombine.high %v2073, %v2073
        %v2078 = vcombine.high %v2024, %v2024
        %v2080 = vunpack.c.l.s4 1966171168
        %v2081 = vunpack.c.0.s8 %v2080
        %v2082 = vlaneseq
        %v2083 = vshrl.u32 %v2082, 7
        %v2084 = vsub.s32 %v2081, %v2083
        %v2085 = vrot.slane %v2024, %v2084
        %v2087 = vunpack.c.l.s4 1966171168
        %v2088 = vunpack.c.0.s8 %v2087
        %v2089 = vlaneseq
        %v2090 = vshrl.u32 %v2089, 7
        %v2091 = vsub.s32 %v2088, %v2090
        %v2092 = vrot.slane %v2078, %v2091
        %v2093 = vcombine.high %v2085, %v2085
        %v2094 = vcombine.high %v2092, %v2092
        %v2096 = vunpack.c.l.s4 1966171168
        %v2097 = vunpack.c.0.s8 %v2096
        %v2098 = vlaneseq
        %v2099 = vshrl.u32 %v2098, 7
        %v2100 = vsub.s32 %v2097, %v2099
        %v2101 = vrot.slane %v2085, %v2100
        %v2103 = vunpack.c.l.s4 1966171168
        %v2104 = vunpack.c.0.s8 %v2103
        %v2105 = vlaneseq
        %v2106 = vshrl.u32 %v2105, 7
        %v2107 = vsub.s32 %v2104, %v2106
        %v2108 = vrot.slane %v2092, %v2107
        %v2110 = vunpack.c.l.s4 1966171168
        %v2111 = vunpack.c.0.s8 %v2110
        %v2112 = vlaneseq
        %v2113 = vshrl.u32 %v2112, 7
        %v2114 = vsub.s32 %v2111, %v2113
        %v2115 = vrot.slane %v2093, %v2114
        %v2117 = vunpack.c.l.s4 1966171168
        %v2118 = vunpack.c.0.s8 %v2117
        %v2119 = vlaneseq
        %v2120 = vshrl.u32 %v2119, 7
        %v2121 = vsub.s32 %v2118, %v2120
        %v2122 = vrot.slane %v2094, %v2121
        %v2123 = vcombine.high %v2101, %v2101
        %v2124 = vcombine.high %v2108, %v2108
        %v2125 = vcombine.high %v2115, %v2115
        %v2126 = vcombine.high %v2122, %v2122
        %v2128 = vunpack.c.l.s4 1966171168
        %v2129 = vunpack.c.0.s8 %v2128
        %v2130 = vlaneseq
        %v2131 = vshrl.u32 %v2130, 7
        %v2132 = vsub.s32 %v2129, %v2131
        %v2133 = vrot.slane %v2025, %v2132
        %v2134 = vcombine.high %v2133, %v2133
        %v2136 = vunpack.c.l.s4 1966171168
        %v2137 = vunpack.c.0.s8 %v2136
        %v2138 = vlaneseq
        %v2139 = vshrl.u32 %v2138, 7
        %v2140 = vsub.s32 %v2137, %v2139
        %v2141 = vrot.slane %v2133, %v2140
        %v2143 = vunpack.c.l.s4 1966171168
        %v2144 = vunpack.c.0.s8 %v2143
        %v2145 = vlaneseq
        %v2146 = vshrl.u32 %v2145, 7
        %v2147 = vsub.s32 %v2144, %v2146
        %v2148 = vrot.slane %v2134, %v2147
        %v2149 = vcombine.high %v2141, %v2141
        %v2150 = vcombine.high %v2148, %v2148
        %v2151 = vlaneseq
        %v2152 = vshrl.u32 %v2151, 7
        %v2153 = vsub.s32 0, %v2152
        %v2154 = vrot.slane %v2052, %v2153
        %v2155 = vlaneseq
        %v2156 = vshrl.u32 %v2155, 7
        %v2157 = vsub.s32 0, %v2156
        %v2158 = vrot.slane %v2066, %v2157
        %v2159 = vlaneseq
        %v2160 = vshrl.u32 %v2159, 7
        %v2161 = vsub.s32 0, %v2160
        %v2162 = vrot.slane %v2074, %v2161
        %v2163 = vlaneseq
        %v2164 = vshrl.u32 %v2163, 7
        %v2165 = vsub.s32 0, %v2164
        %v2166 = vrot.slane %v2076, %v2165
        %v2167 = vlaneseq
        %v2168 = vshrl.u32 %v2167, 7
        %v2169 = vsub.s32 0, %v2168
        %v2170 = vrot.slane %v2059, %v2169
        %v2171 = vlaneseq
        %v2172 = vshrl.u32 %v2171, 7
        %v2173 = vsub.s32 0, %v2172
        %v2174 = vrot.slane %v2073, %v2173
        %v2175 = vlaneseq
        %v2176 = vshrl.u32 %v2175, 7
        %v2177 = vsub.s32 0, %v2176
        %v2178 = vrot.slane %v2075, %v2177
        %v2179 = vlaneseq
        %v2180 = vshrl.u32 %v2179, 7
        %v2181 = vsub.s32 0, %v2180
        %v2182 = vrot.slane %v2077, %v2181
        %v2183 = vlaneseq
        %v2184 = vshrl.u32 %v2183, 7
        %v2185 = vsub.s32 0, %v2184
        %v2186 = vrot.slane %v2101, %v2185
        %v2187 = vlaneseq
        %v2188 = vshrl.u32 %v2187, 7
        %v2189 = vsub.s32 0, %v2188
        %v2190 = vrot.slane %v2115, %v2189
        %v2191 = vlaneseq
        %v2192 = vshrl.u32 %v2191, 7
        %v2193 = vsub.s32 0, %v2192
        %v2194 = vrot.slane %v2123, %v2193
        %v2195 = vlaneseq
        %v2196 = vshrl.u32 %v2195, 7
        %v2197 = vsub.s32 0, %v2196
        %v2198 = vrot.slane %v2125, %v2197
        %v2199 = vlaneseq
        %v2200 = vshrl.u32 %v2199, 7
        %v2201 = vsub.s32 0, %v2200
        %v2202 = vrot.slane %v2108, %v2201
        %v2203 = vlaneseq
        %v2204 = vshrl.u32 %v2203, 7
        %v2205 = vsub.s32 0, %v2204
        %v2206 = vrot.slane %v2122, %v2205
        %v2207 = vlaneseq
        %v2208 = vshrl.u32 %v2207, 7
        %v2209 = vsub.s32 0, %v2208
        %v2210 = vrot.slane %v2124, %v2209
        %v2211 = vlaneseq
        %v2212 = vshrl.u32 %v2211, 7
        %v2213 = vsub.s32 0, %v2212
        %v2214 = vrot.slane %v2126, %v2213
        %v2215 = vlaneseq
        %v2216 = vshrl.u32 %v2215, 7
        %v2217 = vsub.s32 0, %v2216
        %v2218 = vrot.slane %v2141, %v2217
        %v2219 = vlaneseq
        %v2220 = vshrl.u32 %v2219, 7
        %v2221 = vsub.s32 0, %v2220
        %v2222 = vrot.slane %v2148, %v2221
        %v2223 = vlaneseq
        %v2224 = vshrl.u32 %v2223, 7
        %v2225 = vsub.s32 0, %v2224
        %v2226 = vrot.slane %v2149, %v2225
        %v2227 = vlaneseq
        %v2228 = vshrl.u32 %v2227, 7
        %v2229 = vsub.s32 0, %v2228
        %v2230 = vrot.slane %v2150, %v2229
        %v2251 = vmul.f32 %v2154, %v524
        %v2252 = vmul.f32 %v2154, %v529
        %v2253 = vmul.f32 %v2158, %v602
        %v2254 = vmul.f32 %v2158, %v607
        %v2255 = vmul.f32 %v2162, %v680
        %v2256 = vmul.f32 %v2162, %v685
        %v2257 = vmul.f32 %v2166, %v758
        %v2258 = vmul.f32 %v2166, %v763
        %v2259 = vmul.f32 %v2170, %v836
        %v2260 = vmul.f32 %v2170, %v841
        %v2261 = vmul.f32 %v2174, %v914
        %v2262 = vmul.f32 %v2174, %v919
        %v2263 = vmul.f32 %v2178, %v992
        %v2264 = vmul.f32 %v2178, %v997
        %v2265 = vmul.f32 %v2182, %v1070
        %v2266 = vmul.f32 %v2182, %v1075
        %v2267 = vmul.f32 %v2186, %v1148
        %v2268 = vmul.f32 %v2186, %v1153
        %v2269 = vmul.f32 %v2190, %v1226
        %v2270 = vmul.f32 %v2190, %v1231
        %v2271 = vmul.f32 %v2194, %v1304
        %v2272 = vmul.f32 %v2194, %v1309
        %v2273 = vmul.f32 %v2198, %v1382
        %v2274 = vmul.f32 %v2198, %v1387
        %v2275 = vmul.f32 %v2202, %v1460
        %v2276 = vmul.f32 %v2202, %v1465
        %v2277 = vmul.f32 %v2206, %v1538
        %v2278 = vmul.f32 %v2206, %v1543
        %v2279 = vmul.f32 %v2210, %v1616
        %v2280 = vmul.f32 %v2210, %v1621
        %v2281 = vmul.f32 %v2214, %v1694
        %v2282 = vmul.f32 %v2214, %v1699
        %v2283 = vmul.f32 %v2218, %v1772
        %v2284 = vmul.f32 %v2218, %v1777
        %v2285 = vmul.f32 %v2222, %v1850
        %v2286 = vmul.f32 %v2222, %v1855
        %v2287 = vmul.f32 %v2226, %v1928
        %v2288 = vmul.f32 %v2226, %v1933
        %v2289 = vmul.f32 %v2230, %v2006
        %v2290 = vmul.f32 %v2230, %v2011
        %v2291 = vadd.f32 %v2251, %v2253
        %v2292 = vadd.f32 %v2291, %v2255
        %v2293 = vadd.f32 %v2292, %v2257
        %v2294 = vadd.f32 %v2293, %v2259
        %v2295 = vadd.f32 %v2294, %v2261
        %v2296 = vadd.f32 %v2295, %v2263
        %v2297 = vadd.f32 %v2296, %v2265
        %v2298 = vadd.f32 %v2297, %v2267
        %v2299 = vadd.f32 %v2298, %v2269
        %v2300 = vadd.f32 %v2299, %v2271
        %v2301 = vadd.f32 %v2300, %v2273
        %v2302 = vadd.f32 %v2301, %v2275
        %v2303 = vadd.f32 %v2302, %v2277
        %v2304 = vadd.f32 %v2303, %v2279
        %v2305 = vadd.f32 %v2304, %v2281
        %v2306 = vadd.f32 %v2305, %v2283
        %v2307 = vadd.f32 %v2306, %v2285
        %v2308 = vadd.f32 %v2307, %v2287
        %v2309 = vadd.f32 %v2308, %v2289
        %v2310 = vadd.f32 %v2252, %v2254
        %v2311 = vadd.f32 %v2310, %v2256
        %v2312 = vadd.f32 %v2311, %v2258
        %v2313 = vadd.f32 %v2312, %v2260
        %v2314 = vadd.f32 %v2313, %v2262
        %v2315 = vadd.f32 %v2314, %v2264
        %v2316 = vadd.f32 %v2315, %v2266
        %v2317 = vadd.f32 %v2316, %v2268
        %v2318 = vadd.f32 %v2317, %v2270
        %v2319 = vadd.f32 %v2318, %v2272
        %v2320 = vadd.f32 %v2319, %v2274
        %v2321 = vadd.f32 %v2320, %v2276
        %v2322 = vadd.f32 %v2321, %v2278
        %v2323 = vadd.f32 %v2322, %v2280
        %v2324 = vadd.f32 %v2323, %v2282
        %v2325 = vadd.f32 %v2324, %v2284
        %v2326 = vadd.f32 %v2325, %v2286
        %v2327 = vadd.f32 %v2326, %v2288
        %v2328 = vadd.f32 %v2327, %v2290
        %v2329 = vmul.f32 %v2309, %v2309
        %v2330 = vmul.f32 %v2328, %v2328
        %v2331 = vadd.f32 %v2329, %v2330
        %v2332 = vrot.slane %v2331, 4
        %v2333 = vadd.f32 %v2331, %v2332
        %v2334 = vrot.slane %v2333, 2
        %v2335 = vadd.f32 %v2333, %v2334
        %v2336 = vrot.slane %v2335, 1
        %v2337 = vadd.f32 %v2335, %v2336
        %v2338 = vadd.f32 %v2337, 1.0
        %v2339 = vrcp.pop %v2338
        %v2340 = vmul.f32 %v2337, %v2339
        %v2341 = vadd.f32 %v2337, 1e-09
        %v2342 = vrsqrt.pop %v2341
        %v2343 = vmul.f32 %v2340, %v2342
        %v2344 = vmul.f32 %v2343, %v2309
        %v2345 = vmul.f32 %v2343, %v2328
        %v2346 = vmul.f32 %v2344, %v524
        %v2347 = vmul.f32 %v2345, %v529
        %v2348 = vmul.f32 %v2344, %v602
        %v2349 = vmul.f32 %v2345, %v607
        %v2350 = vmul.f32 %v2344, %v680
        %v2351 = vmul.f32 %v2345, %v685
        %v2352 = vmul.f32 %v2344, %v758
        %v2353 = vmul.f32 %v2345, %v763
        %v2354 = vmul.f32 %v2344, %v836
        %v2355 = vmul.f32 %v2345, %v841
        %v2356 = vmul.f32 %v2344, %v914
        %v2357 = vmul.f32 %v2345, %v919
        %v2358 = vmul.f32 %v2344, %v992
        %v2359 = vmul.f32 %v2345, %v997
        %v2360 = vmul.f32 %v2344, %v1070
        %v2361 = vmul.f32 %v2345, %v1075
        %v2362 = vmul.f32 %v2344, %v1148
        %v2363 = vmul.f32 %v2345, %v1153
        %v2364 = vmul.f32 %v2344, %v1226
        %v2365 = vmul.f32 %v2345, %v1231
        %v2366 = vmul.f32 %v2344, %v1304
        %v2367 = vmul.f32 %v2345, %v1309
        %v2368 = vmul.f32 %v2344, %v1382
        %v2369 = vmul.f32 %v2345, %v1387
        %v2370 = vmul.f32 %v2344, %v1460
        %v2371 = vmul.f32 %v2345, %v1465
        %v2372 = vmul.f32 %v2344, %v1538
        %v2373 = vmul.f32 %v2345, %v1543
        %v2374 = vmul.f32 %v2344, %v1616
        %v2375 = vmul.f32 %v2345, %v1621
        %v2376 = vmul.f32 %v2344, %v1694
        %v2377 = vmul.f32 %v2345, %v1699
        %v2378 = vmul.f32 %v2344, %v1772
        %v2379 = vmul.f32 %v2345, %v1777
        %v2380 = vmul.f32 %v2344, %v1850
        %v2381 = vmul.f32 %v2345, %v1855
        %v2382 = vmul.f32 %v2344, %v1928
        %v2383 = vmul.f32 %v2345, %v1933
        %v2384 = vmul.f32 %v2344, %v2006
        %v2385 = vmul.f32 %v2345, %v2011
        %v2386 = vadd.f32 %v2346, %v2347
        %v2387 = vrot.slane %v2386, 4
        %v2388 = vadd.f32 %v2386, %v2387
        %v2389 = vrot.slane %v2388, 2
        %v2390 = vadd.f32 %v2388, %v2389
        %v2391 = vrot.slane %v2390, 1
        %v2392 = vadd.f32 %v2390, %v2391
        %v2393 = vadd.f32 %v2348, %v2349
        %v2394 = vrot.slane %v2393, 4
        %v2395 = vadd.f32 %v2393, %v2394
        %v2396 = vrot.slane %v2395, 2
        %v2397 = vadd.f32 %v2395, %v2396
        %v2398 = vrot.slane %v2397, 1
        %v2399 = vadd.f32 %v2397, %v2398
        %v2400 = vadd.f32 %v2350, %v2351
        %v2401 = vrot.slane %v2400, 4
        %v2402 = vadd.f32 %v2400, %v2401
        %v2403 = vrot.slane %v2402, 2
        %v2404 = vadd.f32 %v2402, %v2403
        %v2405 = vrot.slane %v2404, 1
        %v2406 = vadd.f32 %v2404, %v2405
        %v2407 = vadd.f32 %v2352, %v2353
        %v2408 = vrot.slane %v2407, 4
        %v2409 = vadd.f32 %v2407, %v2408
        %v2410 = vrot.slane %v2409, 2
        %v2411 = vadd.f32 %v2409, %v2410
        %v2412 = vrot.slane %v2411, 1
        %v2413 = vadd.f32 %v2411, %v2412
        %v2414 = vadd.f32 %v2354, %v2355
        %v2415 = vrot.slane %v2414, 4
        %v2416 = vadd.f32 %v2414, %v2415
        %v2417 = vrot.slane %v2416, 2
        %v2418 = vadd.f32 %v2416, %v2417
        %v2419 = vrot.slane %v2418, 1
        %v2420 = vadd.f32 %v2418, %v2419
        %v2421 = vadd.f32 %v2356, %v2357
        %v2422 = vrot.slane %v2421, 4
        %v2423 = vadd.f32 %v2421, %v2422
        %v2424 = vrot.slane %v2423, 2
        %v2425 = vadd.f32 %v2423, %v2424
        %v2426 = vrot.slane %v2425, 1
        %v2427 = vadd.f32 %v2425, %v2426
        %v2428 = vadd.f32 %v2358, %v2359
        %v2429 = vrot.slane %v2428, 4
        %v2430 = vadd.f32 %v2428, %v2429
        %v2431 = vrot.slane %v2430, 2
        %v2432 = vadd.f32 %v2430, %v2431
        %v2433 = vrot.slane %v2432, 1
        %v2434 = vadd.f32 %v2432, %v2433
        %v2435 = vadd.f32 %v2360, %v2361
        %v2436 = vrot.slane %v2435, 4
        %v2437 = vadd.f32 %v2435, %v2436
        %v2438 = vrot.slane %v2437, 2
        %v2439 = vadd.f32 %v2437, %v2438
        %v2440 = vrot.slane %v2439, 1
        %v2441 = vadd.f32 %v2439, %v2440
        %v2442 = vadd.f32 %v2362, %v2363
        %v2443 = vrot.slane %v2442, 4
        %v2444 = vadd.f32 %v2442, %v2443
        %v2445 = vrot.slane %v2444, 2
        %v2446 = vadd.f32 %v2444, %v2445
        %v2447 = vrot.slane %v2446, 1
        %v2448 = vadd.f32 %v2446, %v2447
        %v2449 = vadd.f32 %v2364, %v2365
        %v2450 = vrot.slane %v2449, 4
        %v2451 = vadd.f32 %v2449, %v2450
        %v2452 = vrot.slane %v2451, 2
        %v2453 = vadd.f32 %v2451, %v2452
        %v2454 = vrot.slane %v2453, 1
        %v2455 = vadd.f32 %v2453, %v2454
        %v2456 = vadd.f32 %v2366, %v2367
        %v2457 = vrot.slane %v2456, 4
        %v2458 = vadd.f32 %v2456, %v2457
        %v2459 = vrot.slane %v2458, 2
        %v2460 = vadd.f32 %v2458, %v2459
        %v2461 = vrot.slane %v2460, 1
        %v2462 = vadd.f32 %v2460, %v2461
        %v2463 = vadd.f32 %v2368, %v2369
        %v2464 = vrot.slane %v2463, 4
        %v2465 = vadd.f32 %v2463, %v2464
        %v2466 = vrot.slane %v2465, 2
        %v2467 = vadd.f32 %v2465, %v2466
        %v2468 = vrot.slane %v2467, 1
        %v2469 = vadd.f32 %v2467, %v2468
        %v2470 = vadd.f32 %v2370, %v2371
        %v2471 = vrot.slane %v2470, 4
        %v2472 = vadd.f32 %v2470, %v2471
        %v2473 = vrot.slane %v2472, 2
        %v2474 = vadd.f32 %v2472, %v2473
        %v2475 = vrot.slane %v2474, 1
        %v2476 = vadd.f32 %v2474, %v2475
        %v2477 = vadd.f32 %v2372, %v2373
        %v2478 = vrot.slane %v2477, 4
        %v2479 = vadd.f32 %v2477, %v2478
        %v2480 = vrot.slane %v2479, 2
        %v2481 = vadd.f32 %v2479, %v2480
        %v2482 = vrot.slane %v2481, 1
        %v2483 = vadd.f32 %v2481, %v2482
        %v2484 = vadd.f32 %v2374, %v2375
        %v2485 = vrot.slane %v2484, 4
        %v2486 = vadd.f32 %v2484, %v2485
        %v2487 = vrot.slane %v2486, 2
        %v2488 = vadd.f32 %v2486, %v2487
        %v2489 = vrot.slane %v2488, 1
        %v2490 = vadd.f32 %v2488, %v2489
        %v2491 = vadd.f32 %v2376, %v2377
        %v2492 = vrot.slane %v2491, 4
        %v2493 = vadd.f32 %v2491, %v2492
        %v2494 = vrot.slane %v2493, 2
        %v2495 = vadd.f32 %v2493, %v2494
        %v2496 = vrot.slane %v2495, 1
        %v2497 = vadd.f32 %v2495, %v2496
        %v2498 = vadd.f32 %v2378, %v2379
        %v2499 = vrot.slane %v2498, 4
        %v2500 = vadd.f32 %v2498, %v2499
        %v2501 = vrot.slane %v2500, 2
        %v2502 = vadd.f32 %v2500, %v2501
        %v2503 = vrot.slane %v2502, 1
        %v2504 = vadd.f32 %v2502, %v2503
        %v2505 = vadd.f32 %v2380, %v2381
        %v2506 = vrot.slane %v2505, 4
        %v2507 = vadd.f32 %v2505, %v2506
        %v2508 = vrot.slane %v2507, 2
        %v2509 = vadd.f32 %v2507, %v2508
        %v2510 = vrot.slane %v2509, 1
        %v2511 = vadd.f32 %v2509, %v2510
        %v2512 = vadd.f32 %v2382, %v2383
        %v2513 = vrot.slane %v2512, 4
        %v2514 = vadd.f32 %v2512, %v2513
        %v2515 = vrot.slane %v2514, 2
        %v2516 = vadd.f32 %v2514, %v2515
        %v2517 = vrot.slane %v2516, 1
        %v2518 = vadd.f32 %v2516, %v2517
        %v2519 = vadd.f32 %v2384, %v2385
        %v2520 = vrot.slane %v2519, 4
        %v2521 = vadd.f32 %v2519, %v2520
        %v2522 = vrot.slane %v2521, 2
        %v2523 = vadd.f32 %v2521, %v2522
        %v2524 = vrot.slane %v2523, 1
        %v2525 = vadd.f32 %v2523, %v2524
        %v2526 = vadd.f32 %v2392, 0.0
        %v2527 = vadd.f32 %v2399, 0.0
        %v2528 = vadd.f32 %v2406, 0.0
        %v2529 = vadd.f32 %v2413, 0.0
        %v2530 = vadd.f32 %v2420, 0.0
        %v2531 = vadd.f32 %v2427, 0.0
        %v2532 = vadd.f32 %v2434, 0.0
        %v2533 = vadd.f32 %v2441, 0.0
        %v2534 = vadd.f32 %v2448, 0.0
        %v2535 = vadd.f32 %v2455, 0.0
        %v2536 = vadd.f32 %v2462, 0.0
        %v2537 = vadd.f32 %v2469, 0.0
        %v2538 = vadd.f32 %v2476, 0.0
        %v2539 = vadd.f32 %v2483, 0.0
        %v2540 = vadd.f32 %v2490, 0.0
        %v2541 = vadd.f32 %v2497, 0.0
        %v2542 = vadd.f32 %v2504, 0.0
        %v2543 = vadd.f32 %v2511, 0.0
        %v2544 = vadd.f32 %v2518, 0.0
        %v2545 = vadd.f32 %v2525, 0.0
        %vm2566 = vcmask 1041409
        %v2567 = vsel %vm2566, %v2527, %v2526
        %vm2568 = vcmask 1042434
        %v2569 = vsel %vm2568, %v2528, %v2567
        %vm2570 = vcmask 1043459
        %v2571 = vsel %vm2570, %v2529, %v2569
        %vm2572 = vcmask 1044484
        %v2573 = vsel %vm2572, %v2530, %v2571
        %vm2574 = vcmask 1045509
        %v2575 = vsel %vm2574, %v2531, %v2573
        %vm2576 = vcmask 1046534
        %v2577 = vsel %vm2576, %v2532, %v2575
        %vm2578 = vcmask 1047559
        %v2579 = vsel %vm2578, %v2533, %v2577
        %v2580 = vsel %vm2566, %v2535, %v2534
        %v2581 = vsel %vm2568, %v2536, %v2580
        %v2582 = vsel %vm2570, %v2537, %v2581
        %v2583 = vsel %vm2572, %v2538, %v2582
        %v2584 = vsel %vm2574, %v2539, %v2583
        %v2585 = vsel %vm2576, %v2540, %v2584
        %v2586 = vsel %vm2578, %v2541, %v2585
        %v2587 = vsel %vm2566, %v2543, %v2542
        %v2588 = vsel %vm2568, %v2544, %v2587
        %v2589 = vsel %vm2570, %v2545, %v2588
        %v2593 = vsel %vm2017, %v2579, -1e+09
        %v2594 = vsel %vm2018, %v2586, -1e+09
        %v2595 = vsel %vm2019, %v2589, -1e+09
        %v2596 = vsel %vm425, %v2595, -inf
        %v2597 = vmax.f32 %v2593, %v2596
        %v2598 = vmax.f32 %v2597, %v2594
        %v2599 = vrot.slane %v2598, 4
        %v2600 = vmax.f32 %v2598, %v2599
        %v2601 = vrot.slane %v2600, 2
        %v2602 = vmax.f32 %v2600, %v2601
        %v2603 = vrot.slane %v2602, 1
        %v2604 = vmax.f32 %v2602, %v2603
        %v2605 = vsub.f32 %v2593, %v2604
        %v2606 = vsub.f32 %v2594, %v2604
        %v2607 = vsub.f32 %v2595, %v2604
        %v2608 = vmul.f32 %v2605, 1.442695
        %v2609 = vpow.pop %v2608
        %v2610 = vmul.f32 %v2606, 1.442695
        %v2611 = vpow.pop %v2610
        %v2612 = vmul.f32 %v2607, 1.442695
        %v2613 = vpow.pop %v2612
        %v2614 = vadd.f32 %v2609, %v2611
        %v2615 = vsel %vm425, %v2613, 0.0
        %v2616 = vadd.f32 %v2614, %v2615
        %v2617 = vrot.slane %v2616, 4
        %v2618 = vadd.f32 %v2616, %v2617
        %v2619 = vrot.slane %v2618, 2
        %v2620 = vadd.f32 %v2618, %v2619
        %v2621 = vrot.slane %v2620, 1
        %v2622 = vadd.f32 %v2620, %v2621
        %v2623 = vrcp.pop %v2622
        %v2624 = vmul.f32 %v2609, %v2623
        %v2625 = vmul.f32 %v2611, %v2623
        %v2626 = vmul.f32 %v2613, %v2623
        %v2630 = vcombine.high %v2624, %v2624
        %v2632 = vunpack.c.l.s4 1966171168
        %v2633 = vunpack.c.0.s8 %v2632
        %v2634 = vlaneseq
        %v2635 = vshrl.u32 %v2634, 7
        %v2636 = vsub.s32 %v2633, %v2635
        %v2637 = vrot.slane %v2624, %v2636
        %v2639 = vunpack.c.l.s4 1966171168
        %v2640 = vunpack.c.0.s8 %v2639
        %v2641 = vlaneseq
        %v2642 = vshrl.u32 %v2641, 7
        %v2643 = vsub.s32 %v2640, %v2642
        %v2644 = vrot.slane %v2630, %v2643
        %v2645 = vcombine.high %v2637, %v2637
        %v2646 = vcombine.high %v2644, %v2644
        %v2648 = vunpack.c.l.s4 1966171168
        %v2649 = vunpack.c.0.s8 %v2648
        %v2650 = vlaneseq
        %v2651 = vshrl.u32 %v2650, 7
        %v2652 = vsub.s32 %v2649, %v2651
        %v2653 = vrot.slane %v2637, %v2652
        %v2655 = vunpack.c.l.s4 1966171168
        %v2656 = vunpack.c.0.s8 %v2655
        %v2657 = vlaneseq
        %v2658 = vshrl.u32 %v2657, 7
        %v2659 = vsub.s32 %v2656, %v2658
        %v2660 = vrot.slane %v2644, %v2659
        %v2662 = vunpack.c.l.s4 1966171168
        %v2663 = vunpack.c.0.s8 %v2662
        %v2664 = vlaneseq
        %v2665 = vshrl.u32 %v2664, 7
        %v2666 = vsub.s32 %v2663, %v2665
        %v2667 = vrot.slane %v2645, %v2666
        %v2669 = vunpack.c.l.s4 1966171168
        %v2670 = vunpack.c.0.s8 %v2669
        %v2671 = vlaneseq
        %v2672 = vshrl.u32 %v2671, 7
        %v2673 = vsub.s32 %v2670, %v2672
        %v2674 = vrot.slane %v2646, %v2673
        %v2675 = vcombine.high %v2653, %v2653
        %v2676 = vcombine.high %v2660, %v2660
        %v2677 = vcombine.high %v2667, %v2667
        %v2678 = vcombine.high %v2674, %v2674
        %v2679 = vcombine.high %v2625, %v2625
        %v2681 = vunpack.c.l.s4 1966171168
        %v2682 = vunpack.c.0.s8 %v2681
        %v2683 = vlaneseq
        %v2684 = vshrl.u32 %v2683, 7
        %v2685 = vsub.s32 %v2682, %v2684
        %v2686 = vrot.slane %v2625, %v2685
        %v2688 = vunpack.c.l.s4 1966171168
        %v2689 = vunpack.c.0.s8 %v2688
        %v2690 = vlaneseq
        %v2691 = vshrl.u32 %v2690, 7
        %v2692 = vsub.s32 %v2689, %v2691
        %v2693 = vrot.slane %v2679, %v2692
        %v2694 = vcombine.high %v2686, %v2686
        %v2695 = vcombine.high %v2693, %v2693
        %v2697 = vunpack.c.l.s4 1966171168
        %v2698 = vunpack.c.0.s8 %v2697
        %v2699 = vlaneseq
        %v2700 = vshrl.u32 %v2699, 7
        %v2701 = vsub.s32 %v2698, %v2700
        %v2702 = vrot.slane %v2686, %v2701
        %v2704 = vunpack.c.l.s4 1966171168
        %v2705 = vunpack.c.0.s8 %v2704
        %v2706 = vlaneseq
        %v2707 = vshrl.u32 %v2706, 7
        %v2708 = vsub.s32 %v2705, %v2707
        %v2709 = vrot.slane %v2693, %v2708
        %v2711 = vunpack.c.l.s4 1966171168
        %v2712 = vunpack.c.0.s8 %v2711
        %v2713 = vlaneseq
        %v2714 = vshrl.u32 %v2713, 7
        %v2715 = vsub.s32 %v2712, %v2714
        %v2716 = vrot.slane %v2694, %v2715
        %v2718 = vunpack.c.l.s4 1966171168
        %v2719 = vunpack.c.0.s8 %v2718
        %v2720 = vlaneseq
        %v2721 = vshrl.u32 %v2720, 7
        %v2722 = vsub.s32 %v2719, %v2721
        %v2723 = vrot.slane %v2695, %v2722
        %v2724 = vcombine.high %v2702, %v2702
        %v2725 = vcombine.high %v2709, %v2709
        %v2726 = vcombine.high %v2716, %v2716
        %v2727 = vcombine.high %v2723, %v2723
        %v2729 = vunpack.c.l.s4 1966171168
        %v2730 = vunpack.c.0.s8 %v2729
        %v2731 = vlaneseq
        %v2732 = vshrl.u32 %v2731, 7
        %v2733 = vsub.s32 %v2730, %v2732
        %v2734 = vrot.slane %v2626, %v2733
        %v2735 = vcombine.high %v2734, %v2734
        %v2737 = vunpack.c.l.s4 1966171168
        %v2738 = vunpack.c.0.s8 %v2737
        %v2739 = vlaneseq
        %v2740 = vshrl.u32 %v2739, 7
        %v2741 = vsub.s32 %v2738, %v2740
        %v2742 = vrot.slane %v2734, %v2741
        %v2744 = vunpack.c.l.s4 1966171168
        %v2745 = vunpack.c.0.s8 %v2744
        %v2746 = vlaneseq
        %v2747 = vshrl.u32 %v2746, 7
        %v2748 = vsub.s32 %v2745, %v2747
        %v2749 = vrot.slane %v2735, %v2748
        %v2750 = vcombine.high %v2742, %v2742
        %v2751 = vcombine.high %v2749, %v2749
        %v2752 = vlaneseq
        %v2753 = vshrl.u32 %v2752, 7
        %v2754 = vsub.s32 0, %v2753
        %v2755 = vrot.slane %v2653, %v2754
        %v2756 = vlaneseq
        %v2757 = vshrl.u32 %v2756, 7
        %v2758 = vsub.s32 0, %v2757
        %v2759 = vrot.slane %v2667, %v2758
        %v2760 = vlaneseq
        %v2761 = vshrl.u32 %v2760, 7
        %v2762 = vsub.s32 0, %v2761
        %v2763 = vrot.slane %v2675, %v2762
        %v2764 = vlaneseq
        %v2765 = vshrl.u32 %v2764, 7
        %v2766 = vsub.s32 0, %v2765
        %v2767 = vrot.slane %v2677, %v2766
        %v2768 = vlaneseq
        %v2769 = vshrl.u32 %v2768, 7
        %v2770 = vsub.s32 0, %v2769
        %v2771 = vrot.slane %v2660, %v2770
        %v2772 = vlaneseq
        %v2773 = vshrl.u32 %v2772, 7
        %v2774 = vsub.s32 0, %v2773
        %v2775 = vrot.slane %v2674, %v2774
        %v2776 = vlaneseq
        %v2777 = vshrl.u32 %v2776, 7
        %v2778 = vsub.s32 0, %v2777
        %v2779 = vrot.slane %v2676, %v2778
        %v2780 = vlaneseq
        %v2781 = vshrl.u32 %v2780, 7
        %v2782 = vsub.s32 0, %v2781
        %v2783 = vrot.slane %v2678, %v2782
        %v2784 = vlaneseq
        %v2785 = vshrl.u32 %v2784, 7
        %v2786 = vsub.s32 0, %v2785
        %v2787 = vrot.slane %v2702, %v2786
        %v2788 = vlaneseq
        %v2789 = vshrl.u32 %v2788, 7
        %v2790 = vsub.s32 0, %v2789
        %v2791 = vrot.slane %v2716, %v2790
        %v2792 = vlaneseq
        %v2793 = vshrl.u32 %v2792, 7
        %v2794 = vsub.s32 0, %v2793
        %v2795 = vrot.slane %v2724, %v2794
        %v2796 = vlaneseq
        %v2797 = vshrl.u32 %v2796, 7
        %v2798 = vsub.s32 0, %v2797
        %v2799 = vrot.slane %v2726, %v2798
        %v2800 = vlaneseq
        %v2801 = vshrl.u32 %v2800, 7
        %v2802 = vsub.s32 0, %v2801
        %v2803 = vrot.slane %v2709, %v2802
        %v2804 = vlaneseq
        %v2805 = vshrl.u32 %v2804, 7
        %v2806 = vsub.s32 0, %v2805
        %v2807 = vrot.slane %v2723, %v2806
        %v2808 = vlaneseq
        %v2809 = vshrl.u32 %v2808, 7
        %v2810 = vsub.s32 0, %v2809
        %v2811 = vrot.slane %v2725, %v2810
        %v2812 = vlaneseq
        %v2813 = vshrl.u32 %v2812, 7
        %v2814 = vsub.s32 0, %v2813
        %v2815 = vrot.slane %v2727, %v2814
        %v2816 = vlaneseq
        %v2817 = vshrl.u32 %v2816, 7
        %v2818 = vsub.s32 0, %v2817
        %v2819 = vrot.slane %v2742, %v2818
        %v2820 = vlaneseq
        %v2821 = vshrl.u32 %v2820, 7
        %v2822 = vsub.s32 0, %v2821
        %v2823 = vrot.slane %v2749, %v2822
        %v2824 = vlaneseq
        %v2825 = vshrl.u32 %v2824, 7
        %v2826 = vsub.s32 0, %v2825
        %v2827 = vrot.slane %v2750, %v2826
        %v2828 = vlaneseq
        %v2829 = vshrl.u32 %v2828, 7
        %v2830 = vsub.s32 0, %v2829
        %v2831 = vrot.slane %v2751, %v2830
        %v2852 = vmul.f32 %v2755, %v524
        %v2853 = vmul.f32 %v2755, %v529
        %v2854 = vmul.f32 %v2759, %v602
        %v2855 = vmul.f32 %v2759, %v607
        %v2856 = vmul.f32 %v2763, %v680
        %v2857 = vmul.f32 %v2763, %v685
        %v2858 = vmul.f32 %v2767, %v758
        %v2859 = vmul.f32 %v2767, %v763
        %v2860 = vmul.f32 %v2771, %v836
        %v2861 = vmul.f32 %v2771, %v841
        %v2862 = vmul.f32 %v2775, %v914
        %v2863 = vmul.f32 %v2775, %v919
        %v2864 = vmul.f32 %v2779, %v992
        %v2865 = vmul.f32 %v2779, %v997
        %v2866 = vmul.f32 %v2783, %v1070
        %v2867 = vmul.f32 %v2783, %v1075
        %v2868 = vmul.f32 %v2787, %v1148
        %v2869 = vmul.f32 %v2787, %v1153
        %v2870 = vmul.f32 %v2791, %v1226
        %v2871 = vmul.f32 %v2791, %v1231
        %v2872 = vmul.f32 %v2795, %v1304
        %v2873 = vmul.f32 %v2795, %v1309
        %v2874 = vmul.f32 %v2799, %v1382
        %v2875 = vmul.f32 %v2799, %v1387
        %v2876 = vmul.f32 %v2803, %v1460
        %v2877 = vmul.f32 %v2803, %v1465
        %v2878 = vmul.f32 %v2807, %v1538
        %v2879 = vmul.f32 %v2807, %v1543
        %v2880 = vmul.f32 %v2811, %v1616
        %v2881 = vmul.f32 %v2811, %v1621
        %v2882 = vmul.f32 %v2815, %v1694
        %v2883 = vmul.f32 %v2815, %v1699
        %v2884 = vmul.f32 %v2819, %v1772
        %v2885 = vmul.f32 %v2819, %v1777
        %v2886 = vmul.f32 %v2823, %v1850
        %v2887 = vmul.f32 %v2823, %v1855
        %v2888 = vmul.f32 %v2827, %v1928
        %v2889 = vmul.f32 %v2827, %v1933
        %v2890 = vmul.f32 %v2831, %v2006
        %v2891 = vmul.f32 %v2831, %v2011
        %v2892 = vadd.f32 %v2852, %v2854
        %v2893 = vadd.f32 %v2892, %v2856
        %v2894 = vadd.f32 %v2893, %v2858
        %v2895 = vadd.f32 %v2894, %v2860
        %v2896 = vadd.f32 %v2895, %v2862
        %v2897 = vadd.f32 %v2896, %v2864
        %v2898 = vadd.f32 %v2897, %v2866
        %v2899 = vadd.f32 %v2898, %v2868
        %v2900 = vadd.f32 %v2899, %v2870
        %v2901 = vadd.f32 %v2900, %v2872
        %v2902 = vadd.f32 %v2901, %v2874
        %v2903 = vadd.f32 %v2902, %v2876
        %v2904 = vadd.f32 %v2903, %v2878
        %v2905 = vadd.f32 %v2904, %v2880
        %v2906 = vadd.f32 %v2905, %v2882
        %v2907 = vadd.f32 %v2906, %v2884
        %v2908 = vadd.f32 %v2907, %v2886
        %v2909 = vadd.f32 %v2908, %v2888
        %v2910 = vadd.f32 %v2909, %v2890
        %v2911 = vadd.f32 %v2853, %v2855
        %v2912 = vadd.f32 %v2911, %v2857
        %v2913 = vadd.f32 %v2912, %v2859
        %v2914 = vadd.f32 %v2913, %v2861
        %v2915 = vadd.f32 %v2914, %v2863
        %v2916 = vadd.f32 %v2915, %v2865
        %v2917 = vadd.f32 %v2916, %v2867
        %v2918 = vadd.f32 %v2917, %v2869
        %v2919 = vadd.f32 %v2918, %v2871
        %v2920 = vadd.f32 %v2919, %v2873
        %v2921 = vadd.f32 %v2920, %v2875
        %v2922 = vadd.f32 %v2921, %v2877
        %v2923 = vadd.f32 %v2922, %v2879
        %v2924 = vadd.f32 %v2923, %v2881
        %v2925 = vadd.f32 %v2924, %v2883
        %v2926 = vadd.f32 %v2925, %v2885
        %v2927 = vadd.f32 %v2926, %v2887
        %v2928 = vadd.f32 %v2927, %v2889
        %v2929 = vadd.f32 %v2928, %v2891
        %v2930 = vmul.f32 %v2910, %v2910
        %v2931 = vmul.f32 %v2929, %v2929
        %v2932 = vadd.f32 %v2930, %v2931
        %v2933 = vrot.slane %v2932, 4
        %v2934 = vadd.f32 %v2932, %v2933
        %v2935 = vrot.slane %v2934, 2
        %v2936 = vadd.f32 %v2934, %v2935
        %v2937 = vrot.slane %v2936, 1
        %v2938 = vadd.f32 %v2936, %v2937
        %v2939 = vadd.f32 %v2938, 1.0
        %v2940 = vrcp.pop %v2939
        %v2941 = vmul.f32 %v2938, %v2940
        %v2942 = vadd.f32 %v2938, 1e-09
        %v2943 = vrsqrt.pop %v2942
        %v2944 = vmul.f32 %v2941, %v2943
        %v2945 = vmul.f32 %v2944, %v2910
        %v2946 = vmul.f32 %v2944, %v2929
        %v2947 = vmul.f32 %v2945, %v524
        %v2948 = vmul.f32 %v2946, %v529
        %v2949 = vmul.f32 %v2945, %v602
        %v2950 = vmul.f32 %v2946, %v607
        %v2951 = vmul.f32 %v2945, %v680
        %v2952 = vmul.f32 %v2946, %v685
        %v2953 = vmul.f32 %v2945, %v758
        %v2954 = vmul.f32 %v2946, %v763
        %v2955 = vmul.f32 %v2945, %v836
        %v2956 = vmul.f32 %v2946, %v841
        %v2957 = vmul.f32 %v2945, %v914
        %v2958 = vmul.f32 %v2946, %v919
        %v2959 = vmul.f32 %v2945, %v992
        %v2960 = vmul.f32 %v2946, %v997
        %v2961 = vmul.f32 %v2945, %v1070
        %v2962 = vmul.f32 %v2946, %v1075
        %v2963 = vmul.f32 %v2945, %v1148
        %v2964 = vmul.f32 %v2946, %v1153
        %v2965 = vmul.f32 %v2945, %v1226
        %v2966 = vmul.f32 %v2946, %v1231
        %v2967 = vmul.f32 %v2945, %v1304
        %v2968 = vmul.f32 %v2946, %v1309
        %v2969 = vmul.f32 %v2945, %v1382
        %v2970 = vmul.f32 %v2946, %v1387
        %v2971 = vmul.f32 %v2945, %v1460
        %v2972 = vmul.f32 %v2946, %v1465
        %v2973 = vmul.f32 %v2945, %v1538
        %v2974 = vmul.f32 %v2946, %v1543
        %v2975 = vmul.f32 %v2945, %v1616
        %v2976 = vmul.f32 %v2946, %v1621
        %v2977 = vmul.f32 %v2945, %v1694
        %v2978 = vmul.f32 %v2946, %v1699
        %v2979 = vmul.f32 %v2945, %v1772
        %v2980 = vmul.f32 %v2946, %v1777
        %v2981 = vmul.f32 %v2945, %v1850
        %v2982 = vmul.f32 %v2946, %v1855
        %v2983 = vmul.f32 %v2945, %v1928
        %v2984 = vmul.f32 %v2946, %v1933
        %v2985 = vmul.f32 %v2945, %v2006
        %v2986 = vmul.f32 %v2946, %v2011
        %v2987 = vadd.f32 %v2947, %v2948
        %v2988 = vrot.slane %v2987, 4
        %v2989 = vadd.f32 %v2987, %v2988
        %v2990 = vrot.slane %v2989, 2
        %v2991 = vadd.f32 %v2989, %v2990
        %v2992 = vrot.slane %v2991, 1
        %v2993 = vadd.f32 %v2991, %v2992
        %v2994 = vadd.f32 %v2949, %v2950
        %v2995 = vrot.slane %v2994, 4
        %v2996 = vadd.f32 %v2994, %v2995
        %v2997 = vrot.slane %v2996, 2
        %v2998 = vadd.f32 %v2996, %v2997
        %v2999 = vrot.slane %v2998, 1
        %v3000 = vadd.f32 %v2998, %v2999
        %v3001 = vadd.f32 %v2951, %v2952
        %v3002 = vrot.slane %v3001, 4
        %v3003 = vadd.f32 %v3001, %v3002
        %v3004 = vrot.slane %v3003, 2
        %v3005 = vadd.f32 %v3003, %v3004
        %v3006 = vrot.slane %v3005, 1
        %v3007 = vadd.f32 %v3005, %v3006
        %v3008 = vadd.f32 %v2953, %v2954
        %v3009 = vrot.slane %v3008, 4
        %v3010 = vadd.f32 %v3008, %v3009
        %v3011 = vrot.slane %v3010, 2
        %v3012 = vadd.f32 %v3010, %v3011
        %v3013 = vrot.slane %v3012, 1
        %v3014 = vadd.f32 %v3012, %v3013
        %v3015 = vadd.f32 %v2955, %v2956
        %v3016 = vrot.slane %v3015, 4
        %v3017 = vadd.f32 %v3015, %v3016
        %v3018 = vrot.slane %v3017, 2
        %v3019 = vadd.f32 %v3017, %v3018
        %v3020 = vrot.slane %v3019, 1
        %v3021 = vadd.f32 %v3019, %v3020
        %v3022 = vadd.f32 %v2957, %v2958
        %v3023 = vrot.slane %v3022, 4
        %v3024 = vadd.f32 %v3022, %v3023
        %v3025 = vrot.slane %v3024, 2
        %v3026 = vadd.f32 %v3024, %v3025
        %v3027 = vrot.slane %v3026, 1
        %v3028 = vadd.f32 %v3026, %v3027
        %v3029 = vadd.f32 %v2959, %v2960
        %v3030 = vrot.slane %v3029, 4
        %v3031 = vadd.f32 %v3029, %v3030
        %v3032 = vrot.slane %v3031, 2
        %v3033 = vadd.f32 %v3031, %v3032
        %v3034 = vrot.slane %v3033, 1
        %v3035 = vadd.f32 %v3033, %v3034
        %v3036 = vadd.f32 %v2961, %v2962
        %v3037 = vrot.slane %v3036, 4
        %v3038 = vadd.f32 %v3036, %v3037
        %v3039 = vrot.slane %v3038, 2
        %v3040 = vadd.f32 %v3038, %v3039
        %v3041 = vrot.slane %v3040, 1
        %v3042 = vadd.f32 %v3040, %v3041
        %v3043 = vadd.f32 %v2963, %v2964
        %v3044 = vrot.slane %v3043, 4
        %v3045 = vadd.f32 %v3043, %v3044
        %v3046 = vrot.slane %v3045, 2
        %v3047 = vadd.f32 %v3045, %v3046
        %v3048 = vrot.slane %v3047, 1
        %v3049 = vadd.f32 %v3047, %v3048
        %v3050 = vadd.f32 %v2965, %v2966
        %v3051 = vrot.slane %v3050, 4
        %v3052 = vadd.f32 %v3050, %v3051
        %v3053 = vrot.slane %v3052, 2
        %v3054 = vadd.f32 %v3052, %v3053
        %v3055 = vrot.slane %v3054, 1
        %v3056 = vadd.f32 %v3054, %v3055
        %v3057 = vadd.f32 %v2967, %v2968
        %v3058 = vrot.slane %v3057, 4
        %v3059 = vadd.f32 %v3057, %v3058
        %v3060 = vrot.slane %v3059, 2
        %v3061 = vadd.f32 %v3059, %v3060
        %v3062 = vrot.slane %v3061, 1
        %v3063 = vadd.f32 %v3061, %v3062
        %v3064 = vadd.f32 %v2969, %v2970
        %v3065 = vrot.slane %v3064, 4
        %v3066 = vadd.f32 %v3064, %v3065
        %v3067 = vrot.slane %v3066, 2
        %v3068 = vadd.f32 %v3066, %v3067
        %v3069 = vrot.slane %v3068, 1
        %v3070 = vadd.f32 %v3068, %v3069
        %v3071 = vadd.f32 %v2971, %v2972
        %v3072 = vrot.slane %v3071, 4
        %v3073 = vadd.f32 %v3071, %v3072
        %v3074 = vrot.slane %v3073, 2
        %v3075 = vadd.f32 %v3073, %v3074
        %v3076 = vrot.slane %v3075, 1
        %v3077 = vadd.f32 %v3075, %v3076
        %v3078 = vadd.f32 %v2973, %v2974
        %v3079 = vrot.slane %v3078, 4
        %v3080 = vadd.f32 %v3078, %v3079
        %v3081 = vrot.slane %v3080, 2
        %v3082 = vadd.f32 %v3080, %v3081
        %v3083 = vrot.slane %v3082, 1
        %v3084 = vadd.f32 %v3082, %v3083
        %v3085 = vadd.f32 %v2975, %v2976
        %v3086 = vrot.slane %v3085, 4
        %v3087 = vadd.f32 %v3085, %v3086
        %v3088 = vrot.slane %v3087, 2
        %v3089 = vadd.f32 %v3087, %v3088
        %v3090 = vrot.slane %v3089, 1
        %v3091 = vadd.f32 %v3089, %v3090
        %v3092 = vadd.f32 %v2977, %v2978
        %v3093 = vrot.slane %v3092, 4
        %v3094 = vadd.f32 %v3092, %v3093
        %v3095 = vrot.slane %v3094, 2
        %v3096 = vadd.f32 %v3094, %v3095
        %v3097 = vrot.slane %v3096, 1
        %v3098 = vadd.f32 %v3096, %v3097
        %v3099 = vadd.f32 %v2979, %v2980
        %v3100 = vrot.slane %v3099, 4
        %v3101 = vadd.f32 %v3099, %v3100
        %v3102 = vrot.slane %v3101, 2
        %v3103 = vadd.f32 %v3101, %v3102
        %v3104 = vrot.slane %v3103, 1
        %v3105 = vadd.f32 %v3103, %v3104
        %v3106 = vadd.f32 %v2981, %v2982
        %v3107 = vrot.slane %v3106, 4
        %v3108 = vadd.f32 %v3106, %v3107
        %v3109 = vrot.slane %v3108, 2
        %v3110 = vadd.f32 %v3108, %v3109
        %v3111 = vrot.slane %v3110, 1
        %v3112 = vadd.f32 %v3110, %v3111
        %v3113 = vadd.f32 %v2983, %v2984
        %v3114 = vrot.slane %v3113, 4
        %v3115 = vadd.f32 %v3113, %v3114
        %v3116 = vrot.slane %v3115, 2
        %v3117 = vadd.f32 %v3115, %v3116
        %v3118 = vrot.slane %v3117, 1
        %v3119 = vadd.f32 %v3117, %v3118
        %v3120 = vadd.f32 %v2985, %v2986
        %v3121 = vrot.slane %v3120, 4
        %v3122 = vadd.f32 %v3120, %v3121
        %v3123 = vrot.slane %v3122, 2
        %v3124 = vadd.f32 %v3122, %v3123
        %v3125 = vrot.slane %v3124, 1
        %v3126 = vadd.f32 %v3124, %v3125
        %v3127 = vadd.f32 %v2526, %v2993
        %v3128 = vadd.f32 %v2527, %v3000
        %v3129 = vadd.f32 %v2528, %v3007
        %v3130 = vadd.f32 %v2529, %v3014
        %v3131 = vadd.f32 %v2530, %v3021
        %v3132 = vadd.f32 %v2531, %v3028
        %v3133 = vadd.f32 %v2532, %v3035
        %v3134 = vadd.f32 %v2533, %v3042
        %v3135 = vadd.f32 %v2534, %v3049
        %v3136 = vadd.f32 %v2535, %v3056
        %v3137 = vadd.f32 %v2536, %v3063
        %v3138 = vadd.f32 %v2537, %v3070
        %v3139 = vadd.f32 %v2538, %v3077
        %v3140 = vadd.f32 %v2539, %v3084
        %v3141 = vadd.f32 %v2540, %v3091
        %v3142 = vadd.f32 %v2541, %v3098
        %v3143 = vadd.f32 %v2542, %v3105
        %v3144 = vadd.f32 %v2543, %v3112
        %v3145 = vadd.f32 %v2544, %v3119
        %v3146 = vadd.f32 %v2545, %v3126
        %v3167 = vsel %vm2566, %v3128, %v3127
        %v3168 = vsel %vm2568, %v3129, %v3167
        %v3169 = vsel %vm2570, %v3130, %v3168
        %v3170 = vsel %vm2572, %v3131, %v3169
        %v3171 = vsel %vm2574, %v3132, %v3170
        %v3172 = vsel %vm2576, %v3133, %v3171
        %v3173 = vsel %vm2578, %v3134, %v3172
        %v3174 = vsel %vm2566, %v3136, %v3135
        %v3175 = vsel %vm2568, %v3137, %v3174
        %v3176 = vsel %vm2570, %v3138, %v3175
        %v3177 = vsel %vm2572, %v3139, %v3176
        %v3178 = vsel %vm2574, %v3140, %v3177
        %v3179 = vsel %vm2576, %v3141, %v3178
        %v3180 = vsel %vm2578, %v3142, %v3179
        %v3181 = vsel %vm2566, %v3144, %v3143
        %v3182 = vsel %vm2568, %v3145, %v3181
        %v3183 = vsel %vm2570, %v3146, %v3182
        %v3187 = vsel %vm2017, %v3173, -1e+09
        %v3188 = vsel %vm2018, %v3180, -1e+09
        %v3189 = vsel %vm2019, %v3183, -1e+09
        %v3190 = vsel %vm425, %v3189, -inf
        %v3191 = vmax.f32 %v3187, %v3190
        %v3192 = vmax.f32 %v3191, %v3188
        %v3193 = vrot.slane %v3192, 4
        %v3194 = vmax.f32 %v3192, %v3193
        %v3195 = vrot.slane %v3194, 2
        %v3196 = vmax.f32 %v3194, %v3195
        %v3197 = vrot.slane %v3196, 1
        %v3198 = vmax.f32 %v3196, %v3197
        %v3199 = vsub.f32 %v3187, %v3198
        %v3200 = vsub.f32 %v3188, %v3198
        %v3201 = vsub.f32 %v3189, %v3198
        %v3202 = vmul.f32 %v3199, 1.442695
        %v3203 = vpow.pop %v3202
        %v3204 = vmul.f32 %v3200, 1.442695
        %v3205 = vpow.pop %v3204
        %v3206 = vmul.f32 %v3201, 1.442695
        %v3207 = vpow.pop %v3206
        %v3208 = vadd.f32 %v3203, %v3205
        %v3209 = vsel %vm425, %v3207, 0.0
        %v3210 = vadd.f32 %v3208, %v3209
        %v3211 = vrot.slane %v3210, 4
        %v3212 = vadd.f32 %v3210, %v3211
        %v3213 = vrot.slane %v3212, 2
        %v3214 = vadd.f32 %v3212, %v3213
        %v3215 = vrot.slane %v3214, 1
        %v3216 = vadd.f32 %v3214, %v3215
        %v3217 = vrcp.pop %v3216
        %v3218 = vmul.f32 %v3203, %v3217
        %v3219 = vmul.f32 %v3205, %v3217
        %v3220 = vmul.f32 %v3207, %v3217
        %v3224 = vcombine.high %v3218, %v3218
        %v3226 = vunpack.c.l.s4 1966171168
        %v3227 = vunpack.c.0.s8 %v3226
        %v3228 = vlaneseq
        %v3229 = vshrl.u32 %v3228, 7
        %v3230 = vsub.s32 %v3227, %v3229
        %v3231 = vrot.slane %v3218, %v3230
        %v3233 = vunpack.c.l.s4 1966171168
        %v3234 = vunpack.c.0.s8 %v3233
        %v3235 = vlaneseq
        %v3236 = vshrl.u32 %v3235, 7
        %v3237 = vsub.s32 %v3234, %v3236
        %v3238 = vrot.slane %v3224, %v3237
        %v3239 = vcombine.high %v3231, %v3231
        %v3240 = vcombine.high %v3238, %v3238
        %v3242 = vunpack.c.l.s4 1966171168
        %v3243 = vunpack.c.0.s8 %v3242
        %v3244 = vlaneseq
        %v3245 = vshrl.u32 %v3244, 7
        %v3246 = vsub.s32 %v3243, %v3245
        %v3247 = vrot.slane %v3231, %v3246
        %v3249 = vunpack.c.l.s4 1966171168
        %v3250 = vunpack.c.0.s8 %v3249
        %v3251 = vlaneseq
        %v3252 = vshrl.u32 %v3251, 7
        %v3253 = vsub.s32 %v3250, %v3252
        %v3254 = vrot.slane %v3238, %v3253
        %v3256 = vunpack.c.l.s4 1966171168
        %v3257 = vunpack.c.0.s8 %v3256
        %v3258 = vlaneseq
        %v3259 = vshrl.u32 %v3258, 7
        %v3260 = vsub.s32 %v3257, %v3259
        %v3261 = vrot.slane %v3239, %v3260
        %v3263 = vunpack.c.l.s4 1966171168
        %v3264 = vunpack.c.0.s8 %v3263
        %v3265 = vlaneseq
        %v3266 = vshrl.u32 %v3265, 7
        %v3267 = vsub.s32 %v3264, %v3266
        %v3268 = vrot.slane %v3240, %v3267
        %v3269 = vcombine.high %v3247, %v3247
        %v3270 = vcombine.high %v3254, %v3254
        %v3271 = vcombine.high %v3261, %v3261
        %v3272 = vcombine.high %v3268, %v3268
        %v3273 = vcombine.high %v3219, %v3219
        %v3275 = vunpack.c.l.s4 1966171168
        %v3276 = vunpack.c.0.s8 %v3275
        %v3277 = vlaneseq
        %v3278 = vshrl.u32 %v3277, 7
        %v3279 = vsub.s32 %v3276, %v3278
        %v3280 = vrot.slane %v3219, %v3279
        %v3282 = vunpack.c.l.s4 1966171168
        %v3283 = vunpack.c.0.s8 %v3282
        %v3284 = vlaneseq
        %v3285 = vshrl.u32 %v3284, 7
        %v3286 = vsub.s32 %v3283, %v3285
        %v3287 = vrot.slane %v3273, %v3286
        %v3288 = vcombine.high %v3280, %v3280
        %v3289 = vcombine.high %v3287, %v3287
        %v3291 = vunpack.c.l.s4 1966171168
        %v3292 = vunpack.c.0.s8 %v3291
        %v3293 = vlaneseq
        %v3294 = vshrl.u32 %v3293, 7
        %v3295 = vsub.s32 %v3292, %v3294
        %v3296 = vrot.slane %v3280, %v3295
        %v3298 = vunpack.c.l.s4 1966171168
        %v3299 = vunpack.c.0.s8 %v3298
        %v3300 = vlaneseq
        %v3301 = vshrl.u32 %v3300, 7
        %v3302 = vsub.s32 %v3299, %v3301
        %v3303 = vrot.slane %v3287, %v3302
        %v3305 = vunpack.c.l.s4 1966171168
        %v3306 = vunpack.c.0.s8 %v3305
        %v3307 = vlaneseq
        %v3308 = vshrl.u32 %v3307, 7
        %v3309 = vsub.s32 %v3306, %v3308
        %v3310 = vrot.slane %v3288, %v3309
        %v3312 = vunpack.c.l.s4 1966171168
        %v3313 = vunpack.c.0.s8 %v3312
        %v3314 = vlaneseq
        %v3315 = vshrl.u32 %v3314, 7
        %v3316 = vsub.s32 %v3313, %v3315
        %v3317 = vrot.slane %v3289, %v3316
        %v3318 = vcombine.high %v3296, %v3296
        %v3319 = vcombine.high %v3303, %v3303
        %v3320 = vcombine.high %v3310, %v3310
        %v3321 = vcombine.high %v3317, %v3317
        %v3323 = vunpack.c.l.s4 1966171168
        %v3324 = vunpack.c.0.s8 %v3323
        %v3325 = vlaneseq
        %v3326 = vshrl.u32 %v3325, 7
        %v3327 = vsub.s32 %v3324, %v3326
        %v3328 = vrot.slane %v3220, %v3327
        %v3329 = vcombine.high %v3328, %v3328
        %v3331 = vunpack.c.l.s4 1966171168
        %v3332 = vunpack.c.0.s8 %v3331
        %v3333 = vlaneseq
        %v3334 = vshrl.u32 %v3333, 7
        %v3335 = vsub.s32 %v3332, %v3334
        %v3336 = vrot.slane %v3328, %v3335
        %v3338 = vunpack.c.l.s4 1966171168
        %v3339 = vunpack.c.0.s8 %v3338
        %v3340 = vlaneseq
        %v3341 = vshrl.u32 %v3340, 7
        %v3342 = vsub.s32 %v3339, %v3341
        %v3343 = vrot.slane %v3329, %v3342
        %v3344 = vcombine.high %v3336, %v3336
        %v3345 = vcombine.high %v3343, %v3343
        %v3346 = vlaneseq
        %v3347 = vshrl.u32 %v3346, 7
        %v3348 = vsub.s32 0, %v3347
        %v3349 = vrot.slane %v3247, %v3348
        %v3350 = vlaneseq
        %v3351 = vshrl.u32 %v3350, 7
        %v3352 = vsub.s32 0, %v3351
        %v3353 = vrot.slane %v3261, %v3352
        %v3354 = vlaneseq
        %v3355 = vshrl.u32 %v3354, 7
        %v3356 = vsub.s32 0, %v3355
        %v3357 = vrot.slane %v3269, %v3356
        %v3358 = vlaneseq
        %v3359 = vshrl.u32 %v3358, 7
        %v3360 = vsub.s32 0, %v3359
        %v3361 = vrot.slane %v3271, %v3360
        %v3362 = vlaneseq
        %v3363 = vshrl.u32 %v3362, 7
        %v3364 = vsub.s32 0, %v3363
        %v3365 = vrot.slane %v3254, %v3364
        %v3366 = vlaneseq
        %v3367 = vshrl.u32 %v3366, 7
        %v3368 = vsub.s32 0, %v3367
        %v3369 = vrot.slane %v3268, %v3368
        %v3370 = vlaneseq
        %v3371 = vshrl.u32 %v3370, 7
        %v3372 = vsub.s32 0, %v3371
        %v3373 = vrot.slane %v3270, %v3372
        %v3374 = vlaneseq
        %v3375 = vshrl.u32 %v3374, 7
        %v3376 = vsub.s32 0, %v3375
        %v3377 = vrot.slane %v3272, %v3376
        %v3378 = vlaneseq
        %v3379 = vshrl.u32 %v3378, 7
        %v3380 = vsub.s32 0, %v3379
        %v3381 = vrot.slane %v3296, %v3380
        %v3382 = vlaneseq
        %v3383 = vshrl.u32 %v3382, 7
        %v3384 = vsub.s32 0, %v3383
        %v3385 = vrot.slane %v3310, %v3384
        %v3386 = vlaneseq
        %v3387 = vshrl.u32 %v3386, 7
        %v3388 = vsub.s32 0, %v3387
        %v3389 = vrot.slane %v3318, %v3388
        %v3390 = vlaneseq
        %v3391 = vshrl.u32 %v3390, 7
        %v3392 = vsub.s32 0, %v3391
        %v3393 = vrot.slane %v3320, %v3392
        %v3394 = vlaneseq
        %v3395 = vshrl.u32 %v3394, 7
        %v3396 = vsub.s32 0, %v3395
        %v3397 = vrot.slane %v3303, %v3396
        %v3398 = vlaneseq
        %v3399 = vshrl.u32 %v3398, 7
        %v3400 = vsub.s32 0, %v3399
        %v3401 = vrot.slane %v3317, %v3400
        %v3402 = vlaneseq
        %v3403 = vshrl.u32 %v3402, 7
        %v3404 = vsub.s32 0, %v3403
        %v3405 = vrot.slane %v3319, %v3404
        %v3406 = vlaneseq
        %v3407 = vshrl.u32 %v3406, 7
        %v3408 = vsub.s32 0, %v3407
        %v3409 = vrot.slane %v3321, %v3408
        %v3410 = vlaneseq
        %v3411 = vshrl.u32 %v3410, 7
        %v3412 = vsub.s32 0, %v3411
        %v3413 = vrot.slane %v3336, %v3412
        %v3414 = vlaneseq
        %v3415 = vshrl.u32 %v3414, 7
        %v3416 = vsub.s32 0, %v3415
        %v3417 = vrot.slane %v3343, %v3416
        %v3418 = vlaneseq
        %v3419 = vshrl.u32 %v3418, 7
        %v3420 = vsub.s32 0, %v3419
        %v3421 = vrot.slane %v3344, %v3420
        %v3422 = vlaneseq
        %v3423 = vshrl.u32 %v3422, 7
        %v3424 = vsub.s32 0, %v3423
        %v3425 = vrot.slane %v3345, %v3424
        %v3446 = vmul.f32 %v3349, %v524
        %v3447 = vmul.f32 %v3349, %v529
        %v3448 = vmul.f32 %v3353, %v602
        %v3449 = vmul.f32 %v3353, %v607
        %v3450 = vmul.f32 %v3357, %v680
        %v3451 = vmul.f32 %v3357, %v685
        %v3452 = vmul.f32 %v3361, %v758
        %v3453 = vmul.f32 %v3361, %v763
        %v3454 = vmul.f32 %v3365, %v836
        %v3455 = vmul.f32 %v3365, %v841
        %v3456 = vmul.f32 %v3369, %v914
        %v3457 = vmul.f32 %v3369, %v919
        %v3458 = vmul.f32 %v3373, %v992
        %v3459 = vmul.f32 %v3373, %v997
        %v3460 = vmul.f32 %v3377, %v1070
        %v3461 = vmul.f32 %v3377, %v1075
        %v3462 = vmul.f32 %v3381, %v1148
        %v3463 = vmul.f32 %v3381, %v1153
        %v3464 = vmul.f32 %v3385, %v1226
        %v3465 = vmul.f32 %v3385, %v1231
        %v3466 = vmul.f32 %v3389, %v1304
        %v3467 = vmul.f32 %v3389, %v1309
        %v3468 = vmul.f32 %v3393, %v1382
        %v3469 = vmul.f32 %v3393, %v1387
        %v3470 = vmul.f32 %v3397, %v1460
        %v3471 = vmul.f32 %v3397, %v1465
        %v3472 = vmul.f32 %v3401, %v1538
        %v3473 = vmul.f32 %v3401, %v1543
        %v3474 = vmul.f32 %v3405, %v1616
        %v3475 = vmul.f32 %v3405, %v1621
        %v3476 = vmul.f32 %v3409, %v1694
        %v3477 = vmul.f32 %v3409, %v1699
        %v3478 = vmul.f32 %v3413, %v1772
        %v3479 = vmul.f32 %v3413, %v1777
        %v3480 = vmul.f32 %v3417, %v1850
        %v3481 = vmul.f32 %v3417, %v1855
        %v3482 = vmul.f32 %v3421, %v1928
        %v3483 = vmul.f32 %v3421, %v1933
        %v3484 = vmul.f32 %v3425, %v2006
        %v3485 = vmul.f32 %v3425, %v2011
        %v3486 = vadd.f32 %v3446, %v3448
        %v3487 = vadd.f32 %v3486, %v3450
        %v3488 = vadd.f32 %v3487, %v3452
        %v3489 = vadd.f32 %v3488, %v3454
        %v3490 = vadd.f32 %v3489, %v3456
        %v3491 = vadd.f32 %v3490, %v3458
        %v3492 = vadd.f32 %v3491, %v3460
        %v3493 = vadd.f32 %v3492, %v3462
        %v3494 = vadd.f32 %v3493, %v3464
        %v3495 = vadd.f32 %v3494, %v3466
        %v3496 = vadd.f32 %v3495, %v3468
        %v3497 = vadd.f32 %v3496, %v3470
        %v3498 = vadd.f32 %v3497, %v3472
        %v3499 = vadd.f32 %v3498, %v3474
        %v3500 = vadd.f32 %v3499, %v3476
        %v3501 = vadd.f32 %v3500, %v3478
        %v3502 = vadd.f32 %v3501, %v3480
        %v3503 = vadd.f32 %v3502, %v3482
        %v3504 = vadd.f32 %v3503, %v3484
        %v3505 = vadd.f32 %v3447, %v3449
        %v3506 = vadd.f32 %v3505, %v3451
        %v3507 = vadd.f32 %v3506, %v3453
        %v3508 = vadd.f32 %v3507, %v3455
        %v3509 = vadd.f32 %v3508, %v3457
        %v3510 = vadd.f32 %v3509, %v3459
        %v3511 = vadd.f32 %v3510, %v3461
        %v3512 = vadd.f32 %v3511, %v3463
        %v3513 = vadd.f32 %v3512, %v3465
        %v3514 = vadd.f32 %v3513, %v3467
        %v3515 = vadd.f32 %v3514, %v3469
        %v3516 = vadd.f32 %v3515, %v3471
        %v3517 = vadd.f32 %v3516, %v3473
        %v3518 = vadd.f32 %v3517, %v3475
        %v3519 = vadd.f32 %v3518, %v3477
        %v3520 = vadd.f32 %v3519, %v3479
        %v3521 = vadd.f32 %v3520, %v3481
        %v3522 = vadd.f32 %v3521, %v3483
        %v3523 = vadd.f32 %v3522, %v3485
        %v3524 = vmul.f32 %v3504, %v3504
        %v3525 = vmul.f32 %v3523, %v3523
        %v3526 = vadd.f32 %v3524, %v3525
        %v3527 = vrot.slane %v3526, 4
        %v3528 = vadd.f32 %v3526, %v3527
        %v3529 = vrot.slane %v3528, 2
        %v3530 = vadd.f32 %v3528, %v3529
        %v3531 = vrot.slane %v3530, 1
        %v3532 = vadd.f32 %v3530, %v3531
        %v3533 = vadd.f32 %v3532, 1.0
        %v3534 = vrcp.pop %v3533
        %v3535 = vmul.f32 %v3532, %v3534
        %v3536 = vadd.f32 %v3532, 1e-09
        %v3537 = vrsqrt.pop %v3536
        %v3538 = vmul.f32 %v3535, %v3537
        %v3539 = vmul.f32 %v3538, %v3504
        %v3540 = vmul.f32 %v3538, %v3523
        %v3541 = vmul.f32 %v3539, %v3539
        %v3542 = vmul.f32 %v3540, %v3540
        %v3543 = vadd.f32 %v3541, %v3542
        %v3544 = vrot.slane %v3543, 4
        %v3545 = vadd.f32 %v3543, %v3544
        %v3546 = vrot.slane %v3545, 2
        %v3547 = vadd.f32 %v3545, %v3546
        %v3548 = vrot.slane %v3547, 1
        %v3549 = vadd.f32 %v3547, %v3548
        %v3550 = vrcp.pop %v3549
        %v3551 = vmul.f32 1.0, %v3550
        %v3552 = vmul.f32 %v3549, %v3551
        %v3554 = vrot.slane %v3552, 7
        %v3555 = vsel %vm2566, %v3554, %v3552
        %v3556 = vrot.slane %v3552, 6
        %v3557 = vsel %vm2568, %v3556, %v3555
        %vm3559 = vcmask 1042432
        %v3560 = vsel %vm3559, %v3557, 0.0
        %v3561 = vadd.f32 %v3560, %v3560
        %v3562 = vadd.f32 %v3561, %v3560
        %v3563 = vrot.slane %v3562, 4
        %v3564 = vadd.f32 %v3562, %v3563
        %v3565 = vrot.slane %v3564, 2
        %v3566 = vadd.f32 %v3564, %v3565
        %v3567 = vrot.slane %v3566, 1
        %v3568 = vadd.f32 %v3566, %v3567
        %v3569 = vrcp.pop 9.0
        %v3570 = vmul.f32 %v3568, %v3569
        %3571 = vst [vmem:[%s414] sm:$0x1] %v3570
        %3572 = vxpose.xlu0.b32.start [1/16] %v3539, 128
        %3573 = vxpose.xlu0.b32.cont [2/16] %v3540, 128
        %3574 = vxpose.xlu0.b32.cont [3/16] 0.0, 128
        %3575 = vxpose.xlu0.b32.cont [4/16] 0.0, 128
        %3576 = vxpose.xlu0.b32.cont [5/16] 0.0, 128
        %3577 = vxpose.xlu0.b32.cont [6/16] 0.0, 128
        %3578 = vxpose.xlu0.b32.cont [7/16] 0.0, 128
        %3579 = vxpose.xlu0.b32.cont [8/16] 0.0, 128
        %3580 = vxpose.xlu0.b32.cont [9/16] 0.0, 128
        %3581 = vxpose.xlu0.b32.cont [10/16] 0.0, 128
        %3582 = vxpose.xlu0.b32.cont [11/16] 0.0, 128
        %3583 = vxpose.xlu0.b32.cont [12/16] 0.0, 128
        %3584 = vxpose.xlu0.b32.cont [13/16] 0.0, 128
        %3585 = vxpose.xlu0.b32.cont [14/16] 0.0, 128
        %3586 = vxpose.xlu0.b32.cont [15/16] 0.0, 128
        %3587 = vxpose.xlu0.b32.end [16/16] 0.0, 128
        %v3588 = vpop.trf.xlu0
        %v3589 = vpop.trf.xlu0
        %v3590 = vpop.trf.xlu0
        %v3591 = vpop.trf.xlu0
        %v3592 = vpop.trf.xlu0
        %v3593 = vpop.trf.xlu0
        %v3594 = vpop.trf.xlu0
        %v3595 = vpop.trf.xlu0
        %v3596 = vpop.trf.xlu0
        %v3597 = vpop.trf.xlu0
        %v3598 = vpop.trf.xlu0
        %v3599 = vpop.trf.xlu0
        %v3600 = vpop.trf.xlu0
        %v3601 = vpop.trf.xlu0
        %v3602 = vpop.trf.xlu0
        %v3603 = vpop.trf.xlu0
        %3604 = vxpose.xlu0.b32.start [1/16] %v3539, 128
        %3605 = vxpose.xlu0.b32.cont [2/16] %v3540, 128
        %3606 = vxpose.xlu0.b32.cont [3/16] 0.0, 128
        %3607 = vxpose.xlu0.b32.cont [4/16] 0.0, 128
        %3608 = vxpose.xlu0.b32.cont [5/16] 0.0, 128
        %3609 = vxpose.xlu0.b32.cont [6/16] 0.0, 128
        %3610 = vxpose.xlu0.b32.cont [7/16] 0.0, 128
        %3611 = vxpose.xlu0.b32.cont [8/16] 0.0, 128
        %3612 = vxpose.xlu0.b32.cont [9/16] 0.0, 128
        %3613 = vxpose.xlu0.b32.cont [10/16] 0.0, 128
        %3614 = vxpose.xlu0.b32.cont [11/16] 0.0, 128
        %3615 = vxpose.xlu0.b32.cont [12/16] 0.0, 128
        %3616 = vxpose.xlu0.b32.cont [13/16] 0.0, 128
        %3617 = vxpose.xlu0.b32.cont [14/16] 0.0, 128
        %3618 = vxpose.xlu0.b32.cont [15/16] 0.0, 128
        %3619 = vxpose.xlu0.b32.end [16/16] 0.0, 128
        %v3620 = vpop.trf.xlu0
        %v3621 = vpop.trf.xlu0
        %v3622 = vpop.trf.xlu0
        %v3623 = vpop.trf.xlu0
        %v3624 = vpop.trf.xlu0
        %v3625 = vpop.trf.xlu0
        %v3626 = vpop.trf.xlu0
        %v3627 = vpop.trf.xlu0
        %v3628 = vpop.trf.xlu0
        %v3629 = vpop.trf.xlu0
        %v3630 = vpop.trf.xlu0
        %v3631 = vpop.trf.xlu0
        %v3632 = vpop.trf.xlu0
        %v3633 = vpop.trf.xlu0
        %v3634 = vpop.trf.xlu0
        %v3635 = vpop.trf.xlu0
        %3636 = vxpose.xlu0.b32.start [1/16] %v3539, 128
        %3637 = vxpose.xlu0.b32.cont [2/16] %v3540, 128
        %3638 = vxpose.xlu0.b32.cont [3/16] 0.0, 128
        %3639 = vxpose.xlu0.b32.cont [4/16] 0.0, 128
        %3640 = vxpose.xlu0.b32.cont [5/16] 0.0, 128
        %3641 = vxpose.xlu0.b32.cont [6/16] 0.0, 128
        %3642 = vxpose.xlu0.b32.cont [7/16] 0.0, 128
        %3643 = vxpose.xlu0.b32.cont [8/16] 0.0, 128
        %3644 = vxpose.xlu0.b32.cont [9/16] 0.0, 128
        %3645 = vxpose.xlu0.b32.cont [10/16] 0.0, 128
        %3646 = vxpose.xlu0.b32.cont [11/16] 0.0, 128
        %3647 = vxpose.xlu0.b32.cont [12/16] 0.0, 128
        %3648 = vxpose.xlu0.b32.cont [13/16] 0.0, 128
        %3649 = vxpose.xlu0.b32.cont [14/16] 0.0, 128
        %3650 = vxpose.xlu0.b32.cont [15/16] 0.0, 128
        %3651 = vxpose.xlu0.b32.end [16/16] 0.0, 128
        %v3652 = vpop.trf.xlu0
        %v3653 = vpop.trf.xlu0
        %v3654 = vpop.trf.xlu0
        %v3655 = vpop.trf.xlu0
        %v3656 = vpop.trf.xlu0
        %v3657 = vpop.trf.xlu0
        %v3658 = vpop.trf.xlu0
        %v3659 = vpop.trf.xlu0
        %v3660 = vpop.trf.xlu0
        %v3661 = vpop.trf.xlu0
        %v3662 = vpop.trf.xlu0
        %v3663 = vpop.trf.xlu0
        %v3664 = vpop.trf.xlu0
        %v3665 = vpop.trf.xlu0
        %v3666 = vpop.trf.xlu0
        %v3667 = vpop.trf.xlu0
        %v3668 = vld [vmem:[#allocation8] sm:$0xff]
        %v3669 = vld [vmem:[#allocation8 + $0x8] sm:$0xff]
        %v3670 = vld [vmem:[%s4] sm:$0x1]
        %v3672 = vlaneseq
        %v3673 = vshrl.u32 %v3672, 7
        %v3674 = vsub.s32 0, %v3673
        %v3675 = vrot.slane %v3670, %v3674
        %v3678 = vsel %vm450, %v3588, 0
        %v3681 = vsel %vm450, %v3589, 0
        %v3684 = vsel %vm450, %v3590, 0
        %v3687 = vsel %vm450, %v3591, 0
        %v3690 = vsel %vm450, %v3592, 0
        %v3693 = vsel %vm450, %v3593, 0
        %v3696 = vsel %vm450, %v3594, 0
        %v3699 = vsel %vm450, %v3595, 0
        %v3702 = vsel %vm450, %v3596, 0
        %v3705 = vsel %vm450, %v3597, 0
        %v3708 = vsel %vm450, %v3598, 0
        %v3711 = vsel %vm450, %v3599, 0
        %v3714 = vsel %vm450, %v3600, 0
        %v3717 = vsel %vm450, %v3601, 0
        %v3720 = vsel %vm450, %v3602, 0
        %v3723 = vsel %vm450, %v3603, 0
        %v3726 = vsel %vm450, %v3620, 0
        %v3729 = vsel %vm450, %v3621, 0
        %v3732 = vsel %vm450, %v3622, 0
        %v3735 = vsel %vm450, %v3623, 0
        %v3738 = vsel %vm450, %v3624, 0
        %v3741 = vsel %vm450, %v3625, 0
        %v3744 = vsel %vm450, %v3626, 0
        %v3747 = vsel %vm450, %v3627, 0
        %v3750 = vsel %vm450, %v3628, 0
        %v3753 = vsel %vm450, %v3629, 0
        %v3756 = vsel %vm450, %v3630, 0
        %v3759 = vsel %vm450, %v3631, 0
        %v3762 = vsel %vm450, %v3632, 0
        %v3765 = vsel %vm450, %v3633, 0
        %v3768 = vsel %vm450, %v3634, 0
        %v3771 = vsel %vm450, %v3635, 0
        %v3774 = vsel %vm450, %v3652, 0
        %v3777 = vsel %vm450, %v3653, 0
        %v3780 = vsel %vm450, %v3654, 0
        %v3783 = vsel %vm450, %v3655, 0
        %v3786 = vsel %vm450, %v3656, 0
        %v3789 = vsel %vm450, %v3657, 0
        %v3792 = vsel %vm450, %v3658, 0
        %v3795 = vsel %vm450, %v3659, 0
        %v3798 = vsel %vm450, %v3660, 0
        %v3801 = vsel %vm450, %v3661, 0
        %v3804 = vsel %vm450, %v3662, 0
        %v3807 = vsel %vm450, %v3663, 0
        %v3810 = vsel %vm450, %v3664, 0
        %v3813 = vsel %vm450, %v3665, 0
        %v3816 = vsel %vm450, %v3666, 0
        %v3819 = vsel %vm450, %v3667, 0
        %3821 = vmatprep.subr.mxu0 0.0
        %3822 = vmatpush1.msra.mxu0 %v3668
        %3823 = vmatprep.subr.mxu0 0.0
        %3824 = vmatpush1.msra.mxu0 %v3669
        %3825 = vmatprep.subr.mxu0 0.0
        %3826 = vmatpush1.msra.mxu0 0.0
        %3827 = vmatprep.subr.mxu0 0.0
        %3828 = vmatpush1.msra.mxu0 0.0
        %3829 = vmatprep.subr.mxu0 0.0
        %3830 = vmatpush1.msra.mxu0 0.0
        %3831 = vmatprep.subr.mxu0 0.0
        %3832 = vmatpush1.msra.mxu0 0.0
        %3833 = vmatprep.subr.mxu0 0.0
        %3834 = vmatpush1.msra.mxu0 0.0
        %3835 = vmatprep.subr.mxu0 0.0
        %3836 = vmatpush1.msra.mxu0 0.0
        %3837 = vmatprep.subr.mxu0 0.0
        %3838 = vmatpush1.msra.mxu0 0.0
        %3839 = vmatprep.subr.mxu0 0.0
        %3840 = vmatpush1.msra.mxu0 0.0
        %3841 = vmatprep.subr.mxu0 0.0
        %3842 = vmatpush1.msra.mxu0 0.0
        %3843 = vmatprep.subr.mxu0 0.0
        %3844 = vmatpush1.msra.mxu0 0.0
        %3845 = vmatprep.subr.mxu0 0.0
        %3846 = vmatpush1.msra.mxu0 0.0
        %3847 = vmatprep.subr.mxu0 0.0
        %3848 = vmatpush1.msra.mxu0 0.0
        %3849 = vmatprep.subr.mxu0 0.0
        %3850 = vmatpush1.msra.mxu0 0.0
        %3851 = vmatprep.subr.mxu0 0.0
        %3852 = vmatpush1.msra.mxu0 0.0
        %3853 = vmatprep.subr.mxu0 0.0
        %3854 = vmatpush1.msra.mxu0 0.0
        %3855 = vmatprep.subr.mxu0 0.0
        %3856 = vmatpush1.msra.mxu0 0.0
        %3857 = vmatprep.subr.mxu0 0.0
        %3858 = vmatpush1.msra.mxu0 0.0
        %3859 = vmatprep.subr.mxu0 0.0
        %3860 = vmatpush1.msra.mxu0 0.0
        %3861 = vmatprep.subr.mxu0 0.0
        %3862 = vmatpush1.msra.mxu0 0.0
        %3863 = vmatprep.subr.mxu0 0.0
        %3864 = vmatpush1.msra.mxu0 0.0
        %3865 = vmatprep.subr.mxu0 0.0
        %3866 = vmatpush1.msra.mxu0 0.0
        %3867 = vmatprep.subr.mxu0 0.0
        %3868 = vmatpush1.msra.mxu0 0.0
        %3869 = vmatprep.subr.mxu0 0.0
        %3870 = vmatpush1.msra.mxu0 0.0
        %3871 = vmatprep.subr.mxu0 0.0
        %3872 = vmatpush1.msra.mxu0 0.0
        %3873 = vmatprep.subr.mxu0 0.0
        %3874 = vmatpush1.msra.mxu0 0.0
        %3875 = vmatprep.subr.mxu0 0.0
        %3876 = vmatpush1.msra.mxu0 0.0
        %3877 = vmatprep.subr.mxu0 0.0
        %3878 = vmatpush1.msra.mxu0 0.0
        %3879 = vmatprep.subr.mxu0 0.0
        %3880 = vmatpush1.msra.mxu0 0.0
        %3881 = vmatprep.subr.mxu0 0.0
        %3882 = vmatpush1.msra.mxu0 0.0
        %3883 = vmatprep.subr.mxu0 0.0
        %3884 = vmatpush1.msra.mxu0 0.0
        %3885 = vmatprep.mubr.f32.mxu0 0.0
        %3886 = vmatmul.mubr.f32.gmra.mrb[0].mxu0 %v3678
        %v3887 = vpop.f32.mrb[0].mxu0
        %v3888 = vadd.f32 %v3675, %v3887
        %v3889 = vpop.f32.mrb[0].mxu0
        %3890 = vmatprep.mubr.f32.mxu0 0.0
        %3891 = vmatmul.mubr.f32.gmra.mrb[0].mxu0 %v3681
        %v3892 = vpop.f32.mrb[0].mxu0
        %v3893 = vadd.f32 %v3675, %v3892
        %v3894 = vpop.f32.mrb[0].mxu0
        %3895 = vmatprep.mubr.f32.mxu0 0.0
        %3896 = vmatmul.mubr.f32.gmra.mrb[0].mxu0 %v3684
        %v3897 = vpop.f32.mrb[0].mxu0
        %v3898 = vadd.f32 %v3675, %v3897
        %v3899 = vpop.f32.mrb[0].mxu0
        %3900 = vmatprep.mubr.f32.mxu0 0.0
        %3901 = vmatmul.mubr.f32.gmra.mrb[0].mxu0 %v3687
        %v3902 = vpop.f32.mrb[0].mxu0
        %v3903 = vadd.f32 %v3675, %v3902
        %v3904 = vpop.f32.mrb[0].mxu0
        %3905 = vmatprep.mubr.f32.mxu0 0.0
        %3906 = vmatmul.mubr.f32.gmra.mrb[0].mxu0 %v3690
        %v3907 = vpop.f32.mrb[0].mxu0
        %v3908 = vadd.f32 %v3675, %v3907
        %v3909 = vpop.f32.mrb[0].mxu0
        %3910 = vmatprep.mubr.f32.mxu0 0.0
        %3911 = vmatmul.mubr.f32.gmra.mrb[0].mxu0 %v3693
        %v3912 = vpop.f32.mrb[0].mxu0
        %v3913 = vadd.f32 %v3675, %v3912
        %v3914 = vpop.f32.mrb[0].mxu0
        %3915 = vmatprep.mubr.f32.mxu0 0.0
        %3916 = vmatmul.mubr.f32.gmra.mrb[0].mxu0 %v3696
        %v3917 = vpop.f32.mrb[0].mxu0
        %v3918 = vadd.f32 %v3675, %v3917
        %v3919 = vpop.f32.mrb[0].mxu0
        %3920 = vmatprep.mubr.f32.mxu0 0.0
        %3921 = vmatmul.mubr.f32.gmra.mrb[0].mxu0 %v3699
        %v3922 = vpop.f32.mrb[0].mxu0
        %v3923 = vadd.f32 %v3675, %v3922
        %v3924 = vpop.f32.mrb[0].mxu0
        %3925 = vmatprep.mubr.f32.mxu0 0.0
        %3926 = vmatmul.mubr.f32.gmra.mrb[0].mxu0 %v3702
        %v3927 = vpop.f32.mrb[0].mxu0
        %v3928 = vadd.f32 %v3675, %v3927
        %v3929 = vpop.f32.mrb[0].mxu0
        %3930 = vmatprep.mubr.f32.mxu0 0.0
        %3931 = vmatmul.mubr.f32.gmra.mrb[0].mxu0 %v3705
        %v3932 = vpop.f32.mrb[0].mxu0
        %v3933 = vadd.f32 %v3675, %v3932
        %v3934 = vpop.f32.mrb[0].mxu0
        %3935 = vmatprep.mubr.f32.mxu0 0.0
        %3936 = vmatmul.mubr.f32.gmra.mrb[0].mxu0 %v3708
        %v3937 = vpop.f32.mrb[0].mxu0
        %v3938 = vadd.f32 %v3675, %v3937
        %v3939 = vpop.f32.mrb[0].mxu0
        %3940 = vmatprep.mubr.f32.mxu0 0.0
        %3941 = vmatmul.mubr.f32.gmra.mrb[0].mxu0 %v3711
        %v3942 = vpop.f32.mrb[0].mxu0
        %v3943 = vadd.f32 %v3675, %v3942
        %v3944 = vpop.f32.mrb[0].mxu0
        %3945 = vmatprep.mubr.f32.mxu0 0.0
        %3946 = vmatmul.mubr.f32.gmra.mrb[0].mxu0 %v3714
        %v3947 = vpop.f32.mrb[0].mxu0
        %v3948 = vadd.f32 %v3675, %v3947
        %v3949 = vpop.f32.mrb[0].mxu0
        %3950 = vmatprep.mubr.f32.mxu0 0.0
        %3951 = vmatmul.mubr.f32.gmra.mrb[0].mxu0 %v3717
        %v3952 = vpop.f32.mrb[0].mxu0
        %v3953 = vadd.f32 %v3675, %v3952
        %v3954 = vpop.f32.mrb[0].mxu0
        %3955 = vmatprep.mubr.f32.mxu0 0.0
        %3956 = vmatmul.mubr.f32.gmra.mrb[0].mxu0 %v3720
        %v3957 = vpop.f32.mrb[0].mxu0
        %v3958 = vadd.f32 %v3675, %v3957
        %v3959 = vpop.f32.mrb[0].mxu0
        %3960 = vmatprep.mubr.f32.mxu0 0.0
        %3961 = vmatmul.mubr.f32.gmra.mrb[0].mxu0 %v3723
        %v3962 = vpop.f32.mrb[0].mxu0
        %v3963 = vadd.f32 %v3675, %v3962
        %v3964 = vpop.f32.mrb[0].mxu0
        %3965 = vmatprep.mubr.f32.mxu0 0.0
        %3966 = vmatmul.mubr.f32.gmra.mrb[0].mxu0 %v3726
        %v3967 = vpop.f32.mrb[0].mxu0
        %v3968 = vadd.f32 %v3675, %v3967
        %v3969 = vpop.f32.mrb[0].mxu0
        %3970 = vmatprep.mubr.f32.mxu0 0.0
        %3971 = vmatmul.mubr.f32.gmra.mrb[0].mxu0 %v3729
        %v3972 = vpop.f32.mrb[0].mxu0
        %v3973 = vadd.f32 %v3675, %v3972
        %v3974 = vpop.f32.mrb[0].mxu0
        %3975 = vmatprep.mubr.f32.mxu0 0.0
        %3976 = vmatmul.mubr.f32.gmra.mrb[0].mxu0 %v3732
        %v3977 = vpop.f32.mrb[0].mxu0
        %v3978 = vadd.f32 %v3675, %v3977
        %v3979 = vpop.f32.mrb[0].mxu0
        %3980 = vmatprep.mubr.f32.mxu0 0.0
        %3981 = vmatmul.mubr.f32.gmra.mrb[0].mxu0 %v3735
        %v3982 = vpop.f32.mrb[0].mxu0
        %v3983 = vadd.f32 %v3675, %v3982
        %v3984 = vpop.f32.mrb[0].mxu0
        %3985 = vmatprep.mubr.f32.mxu0 0.0
        %3986 = vmatmul.mubr.f32.gmra.mrb[0].mxu0 %v3738
        %v3987 = vpop.f32.mrb[0].mxu0
        %v3988 = vadd.f32 %v3675, %v3987
        %v3989 = vpop.f32.mrb[0].mxu0
        %3990 = vmatprep.mubr.f32.mxu0 0.0
        %3991 = vmatmul.mubr.f32.gmra.mrb[0].mxu0 %v3741
        %v3992 = vpop.f32.mrb[0].mxu0
        %v3993 = vadd.f32 %v3675, %v3992
        %v3994 = vpop.f32.mrb[0].mxu0
        %3995 = vmatprep.mubr.f32.mxu0 0.0
        %3996 = vmatmul.mubr.f32.gmra.mrb[0].mxu0 %v3744
        %v3997 = vpop.f32.mrb[0].mxu0
        %v3998 = vadd.f32 %v3675, %v3997
        %v3999 = vpop.f32.mrb[0].mxu0
        %4000 = vmatprep.mubr.f32.mxu0 0.0
        %4001 = vmatmul.mubr.f32.gmra.mrb[0].mxu0 %v3747
        %v4002 = vpop.f32.mrb[0].mxu0
        %v4003 = vadd.f32 %v3675, %v4002
        %v4004 = vpop.f32.mrb[0].mxu0
        %4005 = vmatprep.mubr.f32.mxu0 0.0
        %4006 = vmatmul.mubr.f32.gmra.mrb[0].mxu0 %v3750
        %v4007 = vpop.f32.mrb[0].mxu0
        %v4008 = vadd.f32 %v3675, %v4007
        %v4009 = vpop.f32.mrb[0].mxu0
        %4010 = vmatprep.mubr.f32.mxu0 0.0
        %4011 = vmatmul.mubr.f32.gmra.mrb[0].mxu0 %v3753
        %v4012 = vpop.f32.mrb[0].mxu0
        %v4013 = vadd.f32 %v3675, %v4012
        %v4014 = vpop.f32.mrb[0].mxu0
        %4015 = vmatprep.mubr.f32.mxu0 0.0
        %4016 = vmatmul.mubr.f32.gmra.mrb[0].mxu0 %v3756
        %v4017 = vpop.f32.mrb[0].mxu0
        %v4018 = vadd.f32 %v3675, %v4017
        %v4019 = vpop.f32.mrb[0].mxu0
        %4020 = vmatprep.mubr.f32.mxu0 0.0
        %4021 = vmatmul.mubr.f32.gmra.mrb[0].mxu0 %v3759
        %v4022 = vpop.f32.mrb[0].mxu0
        %v4023 = vadd.f32 %v3675, %v4022
        %v4024 = vpop.f32.mrb[0].mxu0
        %4025 = vmatprep.mubr.f32.mxu0 0.0
        %4026 = vmatmul.mubr.f32.gmra.mrb[0].mxu0 %v3762
        %v4027 = vpop.f32.mrb[0].mxu0
        %v4028 = vadd.f32 %v3675, %v4027
        %v4029 = vpop.f32.mrb[0].mxu0
        %4030 = vmatprep.mubr.f32.mxu0 0.0
        %4031 = vmatmul.mubr.f32.gmra.mrb[0].mxu0 %v3765
        %v4032 = vpop.f32.mrb[0].mxu0
        %v4033 = vadd.f32 %v3675, %v4032
        %v4034 = vpop.f32.mrb[0].mxu0
        %4035 = vmatprep.mubr.f32.mxu0 0.0
        %4036 = vmatmul.mubr.f32.gmra.mrb[0].mxu0 %v3768
        %v4037 = vpop.f32.mrb[0].mxu0
        %v4038 = vadd.f32 %v3675, %v4037
        %v4039 = vpop.f32.mrb[0].mxu0
        %4040 = vmatprep.mubr.f32.mxu0 0.0
        %4041 = vmatmul.mubr.f32.gmra.mrb[0].mxu0 %v3771
        %v4042 = vpop.f32.mrb[0].mxu0
        %v4043 = vadd.f32 %v3675, %v4042
        %v4044 = vpop.f32.mrb[0].mxu0
        %4045 = vmatprep.mubr.f32.mxu0 0.0
        %4046 = vmatmul.mubr.f32.gmra.mrb[0].mxu0 %v3774
        %v4047 = vpop.f32.mrb[0].mxu0
        %v4048 = vadd.f32 %v3675, %v4047
        %v4049 = vpop.f32.mrb[0].mxu0
        %4050 = vmatprep.mubr.f32.mxu0 0.0
        %4051 = vmatmul.mubr.f32.gmra.mrb[0].mxu0 %v3777
        %v4052 = vpop.f32.mrb[0].mxu0
        %v4053 = vadd.f32 %v3675, %v4052
        %v4054 = vpop.f32.mrb[0].mxu0
        %4055 = vmatprep.mubr.f32.mxu0 0.0
        %4056 = vmatmul.mubr.f32.gmra.mrb[0].mxu0 %v3780
        %v4057 = vpop.f32.mrb[0].mxu0
        %v4058 = vadd.f32 %v3675, %v4057
        %v4059 = vpop.f32.mrb[0].mxu0
        %4060 = vmatprep.mubr.f32.mxu0 0.0
        %4061 = vmatmul.mubr.f32.gmra.mrb[0].mxu0 %v3783
        %v4062 = vpop.f32.mrb[0].mxu0
        %v4063 = vadd.f32 %v3675, %v4062
        %v4064 = vpop.f32.mrb[0].mxu0
        %4065 = vmatprep.mubr.f32.mxu0 0.0
        %4066 = vmatmul.mubr.f32.gmra.mrb[0].mxu0 %v3786
        %v4067 = vpop.f32.mrb[0].mxu0
        %v4068 = vadd.f32 %v3675, %v4067
        %v4069 = vpop.f32.mrb[0].mxu0
        %4070 = vmatprep.mubr.f32.mxu0 0.0
        %4071 = vmatmul.mubr.f32.gmra.mrb[0].mxu0 %v3789
        %v4072 = vpop.f32.mrb[0].mxu0
        %v4073 = vadd.f32 %v3675, %v4072
        %v4074 = vpop.f32.mrb[0].mxu0
        %4075 = vmatprep.mubr.f32.mxu0 0.0
        %4076 = vmatmul.mubr.f32.gmra.mrb[0].mxu0 %v3792
        %v4077 = vpop.f32.mrb[0].mxu0
        %v4078 = vadd.f32 %v3675, %v4077
        %v4079 = vpop.f32.mrb[0].mxu0
        %4080 = vmatprep.mubr.f32.mxu0 0.0
        %4081 = vmatmul.mubr.f32.gmra.mrb[0].mxu0 %v3795
        %v4082 = vpop.f32.mrb[0].mxu0
        %v4083 = vadd.f32 %v3675, %v4082
        %v4084 = vpop.f32.mrb[0].mxu0
        %4085 = vmatprep.mubr.f32.mxu0 0.0
        %4086 = vmatmul.mubr.f32.gmra.mrb[0].mxu0 %v3798
        %v4087 = vpop.f32.mrb[0].mxu0
        %v4088 = vadd.f32 %v3675, %v4087
        %v4089 = vpop.f32.mrb[0].mxu0
        %4090 = vmatprep.mubr.f32.mxu0 0.0
        %4091 = vmatmul.mubr.f32.gmra.mrb[0].mxu0 %v3801
        %v4092 = vpop.f32.mrb[0].mxu0
        %v4093 = vadd.f32 %v3675, %v4092
        %v4094 = vpop.f32.mrb[0].mxu0
        %4095 = vmatprep.mubr.f32.mxu0 0.0
        %4096 = vmatmul.mubr.f32.gmra.mrb[0].mxu0 %v3804
        %v4097 = vpop.f32.mrb[0].mxu0
        %v4098 = vadd.f32 %v3675, %v4097
        %v4099 = vpop.f32.mrb[0].mxu0
        %4100 = vmatprep.mubr.f32.mxu0 0.0
        %4101 = vmatmul.mubr.f32.gmra.mrb[0].mxu0 %v3807
        %v4102 = vpop.f32.mrb[0].mxu0
        %v4103 = vadd.f32 %v3675, %v4102
        %v4104 = vpop.f32.mrb[0].mxu0
        %4105 = vmatprep.mubr.f32.mxu0 0.0
        %4106 = vmatmul.mubr.f32.gmra.mrb[0].mxu0 %v3810
        %v4107 = vpop.f32.mrb[0].mxu0
        %v4108 = vadd.f32 %v3675, %v4107
        %v4109 = vpop.f32.mrb[0].mxu0
        %4110 = vmatprep.mubr.f32.mxu0 0.0
        %4111 = vmatmul.mubr.f32.gmra.mrb[0].mxu0 %v3813
        %v4112 = vpop.f32.mrb[0].mxu0
        %v4113 = vadd.f32 %v3675, %v4112
        %v4114 = vpop.f32.mrb[0].mxu0
        %4115 = vmatprep.mubr.f32.mxu0 0.0
        %4116 = vmatmul.mubr.f32.gmra.mrb[0].mxu0 %v3816
        %v4117 = vpop.f32.mrb[0].mxu0
        %v4118 = vadd.f32 %v3675, %v4117
        %v4119 = vpop.f32.mrb[0].mxu0
        %4120 = vmatprep.mubr.f32.mxu0 0.0
        %4121 = vmatmul.mubr.f32.gmra.mrb[0].mxu0 %v3819
        %v4122 = vpop.f32.mrb[0].mxu0
        %v4123 = vadd.f32 %v3675, %v4122
        %v4124 = vpop.f32.mrb[0].mxu0
        %4125 = vdwg.mxu0
        %v4126 = vmax.f32 %v3888, 0.0
        %v4127 = vmax.f32 %v3893, 0.0
        %v4128 = vmax.f32 %v3898, 0.0
        %v4129 = vmax.f32 %v3903, 0.0
        %v4130 = vmax.f32 %v3908, 0.0
        %v4131 = vmax.f32 %v3913, 0.0
        %v4132 = vmax.f32 %v3918, 0.0
        %v4133 = vmax.f32 %v3923, 0.0
        %v4134 = vmax.f32 %v3928, 0.0
        %v4135 = vmax.f32 %v3933, 0.0
        %v4136 = vmax.f32 %v3938, 0.0
        %v4137 = vmax.f32 %v3943, 0.0
        %v4138 = vmax.f32 %v3948, 0.0
        %v4139 = vmax.f32 %v3953, 0.0
        %v4140 = vmax.f32 %v3958, 0.0
        %v4141 = vmax.f32 %v3963, 0.0
        %v4142 = vmax.f32 %v3968, 0.0
        %v4143 = vmax.f32 %v3973, 0.0
        %v4144 = vmax.f32 %v3978, 0.0
        %v4145 = vmax.f32 %v3983, 0.0
        %v4146 = vmax.f32 %v3988, 0.0
        %v4147 = vmax.f32 %v3993, 0.0
        %v4148 = vmax.f32 %v3998, 0.0
        %v4149 = vmax.f32 %v4003, 0.0
        %v4150 = vmax.f32 %v4008, 0.0
        %v4151 = vmax.f32 %v4013, 0.0
        %v4152 = vmax.f32 %v4018, 0.0
        %v4153 = vmax.f32 %v4023, 0.0
        %v4154 = vmax.f32 %v4028, 0.0
        %v4155 = vmax.f32 %v4033, 0.0
        %v4156 = vmax.f32 %v4038, 0.0
        %v4157 = vmax.f32 %v4043, 0.0
        %v4158 = vmax.f32 %v4048, 0.0
        %v4159 = vmax.f32 %v4053, 0.0
        %v4160 = vmax.f32 %v4058, 0.0
        %v4161 = vmax.f32 %v4063, 0.0
        %v4162 = vmax.f32 %v4068, 0.0
        %v4163 = vmax.f32 %v4073, 0.0
        %v4164 = vmax.f32 %v4078, 0.0
        %v4165 = vmax.f32 %v4083, 0.0
        %v4166 = vmax.f32 %v4088, 0.0
        %v4167 = vmax.f32 %v4093, 0.0
        %v4168 = vmax.f32 %v4098, 0.0
        %v4169 = vmax.f32 %v4103, 0.0
        %v4170 = vmax.f32 %v4108, 0.0
        %v4171 = vmax.f32 %v4113, 0.0
        %v4172 = vmax.f32 %v4118, 0.0
        %v4173 = vmax.f32 %v4123, 0.0
        %v4174 = vld [vmem:[#allocation10] sm:$0xff]
        %v4175 = vld [vmem:[#allocation10 + $0x8] sm:$0xff]
        %v4176 = vld [vmem:[#allocation10 + $0x10] sm:$0xff]
        %v4177 = vld [vmem:[#allocation10 + $0x18] sm:$0xff]
        %v4178 = vld [vmem:[#allocation10 + $0x20] sm:$0xff]
        %v4179 = vld [vmem:[#allocation10 + $0x28] sm:$0xff]
        %v4180 = vld [vmem:[#allocation10 + $0x30] sm:$0xff]
        %v4181 = vld [vmem:[#allocation10 + $0x38] sm:$0xff]
        %v4182 = vld [vmem:[%s6] sm:$0x3]
        %v4184 = vlaneseq
        %v4185 = vshrl.u32 %v4184, 7
        %v4186 = vsub.s32 0, %v4185
        %v4187 = vrot.slane %v4182, %v4186
        %v4188 = vlaneseq
        %v4189 = vshrl.u32 %v4188, 7
        %v4190 = vsub.s32 1, %v4189
        %v4191 = vrot.slane %v4182, %v4190
        %vm4194 = vcmask 261120
        %v4196 = vsel %vm4194, %v4126, 0
        %v4199 = vsel %vm4194, %v4127, 0
        %v4202 = vsel %vm4194, %v4128, 0
        %v4205 = vsel %vm4194, %v4129, 0
        %v4208 = vsel %vm4194, %v4130, 0
        %v4211 = vsel %vm4194, %v4131, 0
        %v4214 = vsel %vm4194, %v4132, 0
        %v4217 = vsel %vm4194, %v4133, 0
        %v4220 = vsel %vm4194, %v4134, 0
        %v4223 = vsel %vm4194, %v4135, 0
        %v4226 = vsel %vm4194, %v4136, 0
        %v4229 = vsel %vm4194, %v4137, 0
        %v4232 = vsel %vm4194, %v4138, 0
        %v4235 = vsel %vm4194, %v4139, 0
        %v4238 = vsel %vm4194, %v4140, 0
        %v4241 = vsel %vm4194, %v4141, 0
        %v4244 = vsel %vm4194, %v4142, 0
        %v4247 = vsel %vm4194, %v4143, 0
        %v4250 = vsel %vm4194, %v4144, 0
        %v4253 = vsel %vm4194, %v4145, 0
        %v4256 = vsel %vm4194, %v4146, 0
        %v4259 = vsel %vm4194, %v4147, 0
        %v4262 = vsel %vm4194, %v4148, 0
        %v4265 = vsel %vm4194, %v4149, 0
        %v4268 = vsel %vm4194, %v4150, 0
        %v4271 = vsel %vm4194, %v4151, 0
        %v4274 = vsel %vm4194, %v4152, 0
        %v4277 = vsel %vm4194, %v4153, 0
        %v4280 = vsel %vm4194, %v4154, 0
        %v4283 = vsel %vm4194, %v4155, 0
        %v4286 = vsel %vm4194, %v4156, 0
        %v4289 = vsel %vm4194, %v4157, 0
        %v4292 = vsel %vm4194, %v4158, 0
        %v4295 = vsel %vm4194, %v4159, 0
        %v4298 = vsel %vm4194, %v4160, 0
        %v4301 = vsel %vm4194, %v4161, 0
        %v4304 = vsel %vm4194, %v4162, 0
        %v4307 = vsel %vm4194, %v4163, 0
        %v4310 = vsel %vm4194, %v4164, 0
        %v4313 = vsel %vm4194, %v4165, 0
        %v4316 = vsel %vm4194, %v4166, 0
        %v4319 = vsel %vm4194, %v4167, 0
        %v4322 = vsel %vm4194, %v4168, 0
        %v4325 = vsel %vm4194, %v4169, 0
        %v4328 = vsel %vm4194, %v4170, 0
        %v4331 = vsel %vm4194, %v4171, 0
        %v4334 = vsel %vm4194, %v4172, 0
        %v4337 = vsel %vm4194, %v4173, 0
        %4339 = vmatprep.subr.mxu0 %v4175
        %4340 = vmatpush1.msra.mxu0 %v4174
        %4341 = vmatprep.subr.mxu0 %v4177
        %4342 = vmatpush1.msra.mxu0 %v4176
        %4343 = vmatprep.subr.mxu0 %v4179
        %4344 = vmatpush1.msra.mxu0 %v4178
        %4345 = vmatprep.subr.mxu0 %v4181
        %4346 = vmatpush1.msra.mxu0 %v4180
        %4347 = vmatprep.subr.mxu0 0.0
        %4348 = vmatpush1.msra.mxu0 0.0
        %4349 = vmatprep.subr.mxu0 0.0
        %4350 = vmatpush1.msra.mxu0 0.0
        %4351 = vmatprep.subr.mxu0 0.0
        %4352 = vmatpush1.msra.mxu0 0.0
        %4353 = vmatprep.subr.mxu0 0.0
        %4354 = vmatpush1.msra.mxu0 0.0
        %4355 = vmatprep.subr.mxu0 0.0
        %4356 = vmatpush1.msra.mxu0 0.0
        %4357 = vmatprep.subr.mxu0 0.0
        %4358 = vmatpush1.msra.mxu0 0.0
        %4359 = vmatprep.subr.mxu0 0.0
        %4360 = vmatpush1.msra.mxu0 0.0
        %4361 = vmatprep.subr.mxu0 0.0
        %4362 = vmatpush1.msra.mxu0 0.0
        %4363 = vmatprep.subr.mxu0 0.0
        %4364 = vmatpush1.msra.mxu0 0.0
        %4365 = vmatprep.subr.mxu0 0.0
        %4366 = vmatpush1.msra.mxu0 0.0
        %4367 = vmatprep.subr.mxu0 0.0
        %4368 = vmatpush1.msra.mxu0 0.0
        %4369 = vmatprep.subr.mxu0 0.0
        %4370 = vmatpush1.msra.mxu0 0.0
        %4371 = vmatprep.subr.mxu0 0.0
        %4372 = vmatpush1.msra.mxu0 0.0
        %4373 = vmatprep.subr.mxu0 0.0
        %4374 = vmatpush1.msra.mxu0 0.0
        %4375 = vmatprep.subr.mxu0 0.0
        %4376 = vmatpush1.msra.mxu0 0.0
        %4377 = vmatprep.subr.mxu0 0.0
        %4378 = vmatpush1.msra.mxu0 0.0
        %4379 = vmatprep.subr.mxu0 0.0
        %4380 = vmatpush1.msra.mxu0 0.0
        %4381 = vmatprep.subr.mxu0 0.0
        %4382 = vmatpush1.msra.mxu0 0.0
        %4383 = vmatprep.subr.mxu0 0.0
        %4384 = vmatpush1.msra.mxu0 0.0
        %4385 = vmatprep.subr.mxu0 0.0
        %4386 = vmatpush1.msra.mxu0 0.0
        %4387 = vmatprep.subr.mxu0 0.0
        %4388 = vmatpush1.msra.mxu0 0.0
        %4389 = vmatprep.subr.mxu0 0.0
        %4390 = vmatpush1.msra.mxu0 0.0
        %4391 = vmatprep.subr.mxu0 0.0
        %4392 = vmatpush1.msra.mxu0 0.0
        %4393 = vmatprep.subr.mxu0 0.0
        %4394 = vmatpush1.msra.mxu0 0.0
        %4395 = vmatprep.subr.mxu0 0.0
        %4396 = vmatpush1.msra.mxu0 0.0
        %4397 = vmatprep.subr.mxu0 0.0
        %4398 = vmatpush1.msra.mxu0 0.0
        %4399 = vmatprep.subr.mxu0 0.0
        %4400 = vmatpush1.msra.mxu0 0.0
        %4401 = vmatprep.subr.mxu0 0.0
        %4402 = vmatpush1.msra.mxu0 0.0
        %4403 = vmatprep.mubr.f32.mxu0 0.0
        %4404 = vmatmul.mubr.f32.gmra.mrb[0].mxu0 %v4196
        %v4405 = vpop.f32.mrb[0].mxu0
        %v4406 = vadd.f32 %v4187, %v4405
        %v4407 = vpop.f32.mrb[0].mxu0
        %v4408 = vadd.f32 %v4191, %v4407
        %4409 = vmatprep.mubr.f32.mxu0 0.0
        %4410 = vmatmul.mubr.f32.gmra.mrb[0].mxu0 %v4199
        %v4411 = vpop.f32.mrb[0].mxu0
        %v4412 = vadd.f32 %v4187, %v4411
        %v4413 = vpop.f32.mrb[0].mxu0
        %v4414 = vadd.f32 %v4191, %v4413
        %4415 = vmatprep.mubr.f32.mxu0 0.0
        %4416 = vmatmul.mubr.f32.gmra.mrb[0].mxu0 %v4202
        %v4417 = vpop.f32.mrb[0].mxu0
        %v4418 = vadd.f32 %v4187, %v4417
        %v4419 = vpop.f32.mrb[0].mxu0
        %v4420 = vadd.f32 %v4191, %v4419
        %4421 = vmatprep.mubr.f32.mxu0 0.0
        %4422 = vmatmul.mubr.f32.gmra.mrb[0].mxu0 %v4205
        %v4423 = vpop.f32.mrb[0].mxu0
        %v4424 = vadd.f32 %v4187, %v4423
        %v4425 = vpop.f32.mrb[0].mxu0
        %v4426 = vadd.f32 %v4191, %v4425
        %4427 = vmatprep.mubr.f32.mxu0 0.0
        %4428 = vmatmul.mubr.f32.gmra.mrb[0].mxu0 %v4208
        %v4429 = vpop.f32.mrb[0].mxu0
        %v4430 = vadd.f32 %v4187, %v4429
        %v4431 = vpop.f32.mrb[0].mxu0
        %v4432 = vadd.f32 %v4191, %v4431
        %4433 = vmatprep.mubr.f32.mxu0 0.0
        %4434 = vmatmul.mubr.f32.gmra.mrb[0].mxu0 %v4211
        %v4435 = vpop.f32.mrb[0].mxu0
        %v4436 = vadd.f32 %v4187, %v4435
        %v4437 = vpop.f32.mrb[0].mxu0
        %v4438 = vadd.f32 %v4191, %v4437
        %4439 = vmatprep.mubr.f32.mxu0 0.0
        %4440 = vmatmul.mubr.f32.gmra.mrb[0].mxu0 %v4214
        %v4441 = vpop.f32.mrb[0].mxu0
        %v4442 = vadd.f32 %v4187, %v4441
        %v4443 = vpop.f32.mrb[0].mxu0
        %v4444 = vadd.f32 %v4191, %v4443
        %4445 = vmatprep.mubr.f32.mxu0 0.0
        %4446 = vmatmul.mubr.f32.gmra.mrb[0].mxu0 %v4217
        %v4447 = vpop.f32.mrb[0].mxu0
        %v4448 = vadd.f32 %v4187, %v4447
        %v4449 = vpop.f32.mrb[0].mxu0
        %v4450 = vadd.f32 %v4191, %v4449
        %4451 = vmatprep.mubr.f32.mxu0 0.0
        %4452 = vmatmul.mubr.f32.gmra.mrb[0].mxu0 %v4220
        %v4453 = vpop.f32.mrb[0].mxu0
        %v4454 = vadd.f32 %v4187, %v4453
        %v4455 = vpop.f32.mrb[0].mxu0
        %v4456 = vadd.f32 %v4191, %v4455
        %4457 = vmatprep.mubr.f32.mxu0 0.0
        %4458 = vmatmul.mubr.f32.gmra.mrb[0].mxu0 %v4223
        %v4459 = vpop.f32.mrb[0].mxu0
        %v4460 = vadd.f32 %v4187, %v4459
        %v4461 = vpop.f32.mrb[0].mxu0
        %v4462 = vadd.f32 %v4191, %v4461
        %4463 = vmatprep.mubr.f32.mxu0 0.0
        %4464 = vmatmul.mubr.f32.gmra.mrb[0].mxu0 %v4226
        %v4465 = vpop.f32.mrb[0].mxu0
        %v4466 = vadd.f32 %v4187, %v4465
        %v4467 = vpop.f32.mrb[0].mxu0
        %v4468 = vadd.f32 %v4191, %v4467
        %4469 = vmatprep.mubr.f32.mxu0 0.0
        %4470 = vmatmul.mubr.f32.gmra.mrb[0].mxu0 %v4229
        %v4471 = vpop.f32.mrb[0].mxu0
        %v4472 = vadd.f32 %v4187, %v4471
        %v4473 = vpop.f32.mrb[0].mxu0
        %v4474 = vadd.f32 %v4191, %v4473
        %4475 = vmatprep.mubr.f32.mxu0 0.0
        %4476 = vmatmul.mubr.f32.gmra.mrb[0].mxu0 %v4232
        %v4477 = vpop.f32.mrb[0].mxu0
        %v4478 = vadd.f32 %v4187, %v4477
        %v4479 = vpop.f32.mrb[0].mxu0
        %v4480 = vadd.f32 %v4191, %v4479
        %4481 = vmatprep.mubr.f32.mxu0 0.0
        %4482 = vmatmul.mubr.f32.gmra.mrb[0].mxu0 %v4235
        %v4483 = vpop.f32.mrb[0].mxu0
        %v4484 = vadd.f32 %v4187, %v4483
        %v4485 = vpop.f32.mrb[0].mxu0
        %v4486 = vadd.f32 %v4191, %v4485
        %4487 = vmatprep.mubr.f32.mxu0 0.0
        %4488 = vmatmul.mubr.f32.gmra.mrb[0].mxu0 %v4238
        %v4489 = vpop.f32.mrb[0].mxu0
        %v4490 = vadd.f32 %v4187, %v4489
        %v4491 = vpop.f32.mrb[0].mxu0
        %v4492 = vadd.f32 %v4191, %v4491
        %4493 = vmatprep.mubr.f32.mxu0 0.0
        %4494 = vmatmul.mubr.f32.gmra.mrb[0].mxu0 %v4241
        %v4495 = vpop.f32.mrb[0].mxu0
        %v4496 = vadd.f32 %v4187, %v4495
        %v4497 = vpop.f32.mrb[0].mxu0
        %v4498 = vadd.f32 %v4191, %v4497
        %4499 = vmatprep.mubr.f32.mxu0 0.0
        %4500 = vmatmul.mubr.f32.gmra.mrb[0].mxu0 %v4244
        %v4501 = vpop.f32.mrb[0].mxu0
        %v4502 = vadd.f32 %v4187, %v4501
        %v4503 = vpop.f32.mrb[0].mxu0
        %v4504 = vadd.f32 %v4191, %v4503
        %4505 = vmatprep.mubr.f32.mxu0 0.0
        %4506 = vmatmul.mubr.f32.gmra.mrb[0].mxu0 %v4247
        %v4507 = vpop.f32.mrb[0].mxu0
        %v4508 = vadd.f32 %v4187, %v4507
        %v4509 = vpop.f32.mrb[0].mxu0
        %v4510 = vadd.f32 %v4191, %v4509
        %4511 = vmatprep.mubr.f32.mxu0 0.0
        %4512 = vmatmul.mubr.f32.gmra.mrb[0].mxu0 %v4250
        %v4513 = vpop.f32.mrb[0].mxu0
        %v4514 = vadd.f32 %v4187, %v4513
        %v4515 = vpop.f32.mrb[0].mxu0
        %v4516 = vadd.f32 %v4191, %v4515
        %4517 = vmatprep.mubr.f32.mxu0 0.0
        %4518 = vmatmul.mubr.f32.gmra.mrb[0].mxu0 %v4253
        %v4519 = vpop.f32.mrb[0].mxu0
        %v4520 = vadd.f32 %v4187, %v4519
        %v4521 = vpop.f32.mrb[0].mxu0
        %v4522 = vadd.f32 %v4191, %v4521
        %4523 = vmatprep.mubr.f32.mxu0 0.0
        %4524 = vmatmul.mubr.f32.gmra.mrb[0].mxu0 %v4256
        %v4525 = vpop.f32.mrb[0].mxu0
        %v4526 = vadd.f32 %v4187, %v4525
        %v4527 = vpop.f32.mrb[0].mxu0
        %v4528 = vadd.f32 %v4191, %v4527
        %4529 = vmatprep.mubr.f32.mxu0 0.0
        %4530 = vmatmul.mubr.f32.gmra.mrb[0].mxu0 %v4259
        %v4531 = vpop.f32.mrb[0].mxu0
        %v4532 = vadd.f32 %v4187, %v4531
        %v4533 = vpop.f32.mrb[0].mxu0
        %v4534 = vadd.f32 %v4191, %v4533
        %4535 = vmatprep.mubr.f32.mxu0 0.0
        %4536 = vmatmul.mubr.f32.gmra.mrb[0].mxu0 %v4262
        %v4537 = vpop.f32.mrb[0].mxu0
        %v4538 = vadd.f32 %v4187, %v4537
        %v4539 = vpop.f32.mrb[0].mxu0
        %v4540 = vadd.f32 %v4191, %v4539
        %4541 = vmatprep.mubr.f32.mxu0 0.0
        %4542 = vmatmul.mubr.f32.gmra.mrb[0].mxu0 %v4265
        %v4543 = vpop.f32.mrb[0].mxu0
        %v4544 = vadd.f32 %v4187, %v4543
        %v4545 = vpop.f32.mrb[0].mxu0
        %v4546 = vadd.f32 %v4191, %v4545
        %4547 = vmatprep.mubr.f32.mxu0 0.0
        %4548 = vmatmul.mubr.f32.gmra.mrb[0].mxu0 %v4268
        %v4549 = vpop.f32.mrb[0].mxu0
        %v4550 = vadd.f32 %v4187, %v4549
        %v4551 = vpop.f32.mrb[0].mxu0
        %v4552 = vadd.f32 %v4191, %v4551
        %4553 = vmatprep.mubr.f32.mxu0 0.0
        %4554 = vmatmul.mubr.f32.gmra.mrb[0].mxu0 %v4271
        %v4555 = vpop.f32.mrb[0].mxu0
        %v4556 = vadd.f32 %v4187, %v4555
        %v4557 = vpop.f32.mrb[0].mxu0
        %v4558 = vadd.f32 %v4191, %v4557
        %4559 = vmatprep.mubr.f32.mxu0 0.0
        %4560 = vmatmul.mubr.f32.gmra.mrb[0].mxu0 %v4274
        %v4561 = vpop.f32.mrb[0].mxu0
        %v4562 = vadd.f32 %v4187, %v4561
        %v4563 = vpop.f32.mrb[0].mxu0
        %v4564 = vadd.f32 %v4191, %v4563
        %4565 = vmatprep.mubr.f32.mxu0 0.0
        %4566 = vmatmul.mubr.f32.gmra.mrb[0].mxu0 %v4277
        %v4567 = vpop.f32.mrb[0].mxu0
        %v4568 = vadd.f32 %v4187, %v4567
        %v4569 = vpop.f32.mrb[0].mxu0
        %v4570 = vadd.f32 %v4191, %v4569
        %4571 = vmatprep.mubr.f32.mxu0 0.0
        %4572 = vmatmul.mubr.f32.gmra.mrb[0].mxu0 %v4280
        %v4573 = vpop.f32.mrb[0].mxu0
        %v4574 = vadd.f32 %v4187, %v4573
        %v4575 = vpop.f32.mrb[0].mxu0
        %v4576 = vadd.f32 %v4191, %v4575
        %4577 = vmatprep.mubr.f32.mxu0 0.0
        %4578 = vmatmul.mubr.f32.gmra.mrb[0].mxu0 %v4283
        %v4579 = vpop.f32.mrb[0].mxu0
        %v4580 = vadd.f32 %v4187, %v4579
        %v4581 = vpop.f32.mrb[0].mxu0
        %v4582 = vadd.f32 %v4191, %v4581
        %4583 = vmatprep.mubr.f32.mxu0 0.0
        %4584 = vmatmul.mubr.f32.gmra.mrb[0].mxu0 %v4286
        %v4585 = vpop.f32.mrb[0].mxu0
        %v4586 = vadd.f32 %v4187, %v4585
        %v4587 = vpop.f32.mrb[0].mxu0
        %v4588 = vadd.f32 %v4191, %v4587
        %4589 = vmatprep.mubr.f32.mxu0 0.0
        %4590 = vmatmul.mubr.f32.gmra.mrb[0].mxu0 %v4289
        %v4591 = vpop.f32.mrb[0].mxu0
        %v4592 = vadd.f32 %v4187, %v4591
        %v4593 = vpop.f32.mrb[0].mxu0
        %v4594 = vadd.f32 %v4191, %v4593
        %4595 = vmatprep.mubr.f32.mxu0 0.0
        %4596 = vmatmul.mubr.f32.gmra.mrb[0].mxu0 %v4292
        %v4597 = vpop.f32.mrb[0].mxu0
        %v4598 = vadd.f32 %v4187, %v4597
        %v4599 = vpop.f32.mrb[0].mxu0
        %v4600 = vadd.f32 %v4191, %v4599
        %4601 = vmatprep.mubr.f32.mxu0 0.0
        %4602 = vmatmul.mubr.f32.gmra.mrb[0].mxu0 %v4295
        %v4603 = vpop.f32.mrb[0].mxu0
        %v4604 = vadd.f32 %v4187, %v4603
        %v4605 = vpop.f32.mrb[0].mxu0
        %v4606 = vadd.f32 %v4191, %v4605
        %4607 = vmatprep.mubr.f32.mxu0 0.0
        %4608 = vmatmul.mubr.f32.gmra.mrb[0].mxu0 %v4298
        %v4609 = vpop.f32.mrb[0].mxu0
        %v4610 = vadd.f32 %v4187, %v4609
        %v4611 = vpop.f32.mrb[0].mxu0
        %v4612 = vadd.f32 %v4191, %v4611
        %4613 = vmatprep.mubr.f32.mxu0 0.0
        %4614 = vmatmul.mubr.f32.gmra.mrb[0].mxu0 %v4301
        %v4615 = vpop.f32.mrb[0].mxu0
        %v4616 = vadd.f32 %v4187, %v4615
        %v4617 = vpop.f32.mrb[0].mxu0
        %v4618 = vadd.f32 %v4191, %v4617
        %4619 = vmatprep.mubr.f32.mxu0 0.0
        %4620 = vmatmul.mubr.f32.gmra.mrb[0].mxu0 %v4304
        %v4621 = vpop.f32.mrb[0].mxu0
        %v4622 = vadd.f32 %v4187, %v4621
        %v4623 = vpop.f32.mrb[0].mxu0
        %v4624 = vadd.f32 %v4191, %v4623
        %4625 = vmatprep.mubr.f32.mxu0 0.0
        %4626 = vmatmul.mubr.f32.gmra.mrb[0].mxu0 %v4307
        %v4627 = vpop.f32.mrb[0].mxu0
        %v4628 = vadd.f32 %v4187, %v4627
        %v4629 = vpop.f32.mrb[0].mxu0
        %v4630 = vadd.f32 %v4191, %v4629
        %4631 = vmatprep.mubr.f32.mxu0 0.0
        %4632 = vmatmul.mubr.f32.gmra.mrb[0].mxu0 %v4310
        %v4633 = vpop.f32.mrb[0].mxu0
        %v4634 = vadd.f32 %v4187, %v4633
        %v4635 = vpop.f32.mrb[0].mxu0
        %v4636 = vadd.f32 %v4191, %v4635
        %4637 = vmatprep.mubr.f32.mxu0 0.0
        %4638 = vmatmul.mubr.f32.gmra.mrb[0].mxu0 %v4313
        %v4639 = vpop.f32.mrb[0].mxu0
        %v4640 = vadd.f32 %v4187, %v4639
        %v4641 = vpop.f32.mrb[0].mxu0
        %v4642 = vadd.f32 %v4191, %v4641
        %4643 = vmatprep.mubr.f32.mxu0 0.0
        %4644 = vmatmul.mubr.f32.gmra.mrb[0].mxu0 %v4316
        %v4645 = vpop.f32.mrb[0].mxu0
        %v4646 = vadd.f32 %v4187, %v4645
        %v4647 = vpop.f32.mrb[0].mxu0
        %v4648 = vadd.f32 %v4191, %v4647
        %4649 = vmatprep.mubr.f32.mxu0 0.0
        %4650 = vmatmul.mubr.f32.gmra.mrb[0].mxu0 %v4319
        %v4651 = vpop.f32.mrb[0].mxu0
        %v4652 = vadd.f32 %v4187, %v4651
        %v4653 = vpop.f32.mrb[0].mxu0
        %v4654 = vadd.f32 %v4191, %v4653
        %4655 = vmatprep.mubr.f32.mxu0 0.0
        %4656 = vmatmul.mubr.f32.gmra.mrb[0].mxu0 %v4322
        %v4657 = vpop.f32.mrb[0].mxu0
        %v4658 = vadd.f32 %v4187, %v4657
        %v4659 = vpop.f32.mrb[0].mxu0
        %v4660 = vadd.f32 %v4191, %v4659
        %4661 = vmatprep.mubr.f32.mxu0 0.0
        %4662 = vmatmul.mubr.f32.gmra.mrb[0].mxu0 %v4325
        %v4663 = vpop.f32.mrb[0].mxu0
        %v4664 = vadd.f32 %v4187, %v4663
        %v4665 = vpop.f32.mrb[0].mxu0
        %v4666 = vadd.f32 %v4191, %v4665
        %4667 = vmatprep.mubr.f32.mxu0 0.0
        %4668 = vmatmul.mubr.f32.gmra.mrb[0].mxu0 %v4328
        %v4669 = vpop.f32.mrb[0].mxu0
        %v4670 = vadd.f32 %v4187, %v4669
        %v4671 = vpop.f32.mrb[0].mxu0
        %v4672 = vadd.f32 %v4191, %v4671
        %4673 = vmatprep.mubr.f32.mxu0 0.0
        %4674 = vmatmul.mubr.f32.gmra.mrb[0].mxu0 %v4331
        %v4675 = vpop.f32.mrb[0].mxu0
        %v4676 = vadd.f32 %v4187, %v4675
        %v4677 = vpop.f32.mrb[0].mxu0
        %v4678 = vadd.f32 %v4191, %v4677
        %4679 = vmatprep.mubr.f32.mxu0 0.0
        %4680 = vmatmul.mubr.f32.gmra.mrb[0].mxu0 %v4334
        %v4681 = vpop.f32.mrb[0].mxu0
        %v4682 = vadd.f32 %v4187, %v4681
        %v4683 = vpop.f32.mrb[0].mxu0
        %v4684 = vadd.f32 %v4191, %v4683
        %4685 = vmatprep.mubr.f32.mxu0 0.0
        %4686 = vmatmul.mubr.f32.gmra.mrb[0].mxu0 %v4337
        %v4687 = vpop.f32.mrb[0].mxu0
        %v4688 = vadd.f32 %v4187, %v4687
        %v4689 = vpop.f32.mrb[0].mxu0
        %v4690 = vadd.f32 %v4191, %v4689
        %4691 = vdwg.mxu0
        %4692 = vst [vmem:[%s408] sm:$0xff] %v4406
        %4693 = vst [vmem:[%s408 + $0x8] sm:$0xff] %v4408
        %4694 = vst [vmem:[%s408 + $0x30] sm:$0xff] %v4412
        %4695 = vst [vmem:[%s408 + $0x38] sm:$0xff] %v4414
        %4696 = vst [vmem:[%s408 + $0x60] sm:$0xff] %v4418
        %4697 = vst [vmem:[%s408 + $0x68] sm:$0xff] %v4420
        %4698 = vst [vmem:[%s408 + $0x90] sm:$0xff] %v4424
        %4699 = vst [vmem:[%s408 + $0x98] sm:$0xff] %v4426
        %4700 = vst [vmem:[%s408 + $0xc0] sm:$0xff] %v4430
        %4701 = vst [vmem:[%s408 + $0xc8] sm:$0xff] %v4432
        %4702 = vst [vmem:[%s408 + $0xf0] sm:$0xff] %v4436
        %4703 = vst [vmem:[%s408 + $0xf8] sm:$0xff] %v4438
        %4704 = vst [vmem:[%s408 + $0x120] sm:$0xff] %v4442
        %4705 = vst [vmem:[%s408 + $0x128] sm:$0xff] %v4444
        %4706 = vst [vmem:[%s408 + $0x150] sm:$0xff] %v4448
        %4707 = vst [vmem:[%s408 + $0x158] sm:$0xff] %v4450
        %4708 = vst [vmem:[%s408 + $0x180] sm:$0xff] %v4454
        %4709 = vst [vmem:[%s408 + $0x188] sm:$0xff] %v4456
        %4710 = vst [vmem:[%s408 + $0x1b0] sm:$0xff] %v4460
        %4711 = vst [vmem:[%s408 + $0x1b8] sm:$0xff] %v4462
        %4712 = vst [vmem:[%s408 + $0x1e0] sm:$0xff] %v4466
        %4713 = vst [vmem:[%s408 + $0x1e8] sm:$0xff] %v4468
        %4714 = vst [vmem:[%s408 + $0x210] sm:$0xff] %v4472
        %4715 = vst [vmem:[%s408 + $0x218] sm:$0xff] %v4474
        %4716 = vst [vmem:[%s408 + $0x240] sm:$0xff] %v4478
        %4717 = vst [vmem:[%s408 + $0x248] sm:$0xff] %v4480
        %4718 = vst [vmem:[%s408 + $0x270] sm:$0xff] %v4484
        %4719 = vst [vmem:[%s408 + $0x278] sm:$0xff] %v4486
        %4720 = vst [vmem:[%s408 + $0x2a0] sm:$0xff] %v4490
        %4721 = vst [vmem:[%s408 + $0x2a8] sm:$0xff] %v4492
        %4722 = vst [vmem:[%s408 + $0x2d0] sm:$0xff] %v4496
        %4723 = vst [vmem:[%s408 + $0x2d8] sm:$0xff] %v4498
        %4724 = vst [vmem:[%s408 + $0x10] sm:$0xff] %v4502
        %4725 = vst [vmem:[%s408 + $0x18] sm:$0xff] %v4504
        %4726 = vst [vmem:[%s408 + $0x40] sm:$0xff] %v4508
        %4727 = vst [vmem:[%s408 + $0x48] sm:$0xff] %v4510
        %4728 = vst [vmem:[%s408 + $0x70] sm:$0xff] %v4514
        %4729 = vst [vmem:[%s408 + $0x78] sm:$0xff] %v4516
        %4730 = vst [vmem:[%s408 + $0xa0] sm:$0xff] %v4520
        %4731 = vst [vmem:[%s408 + $0xa8] sm:$0xff] %v4522
        %4732 = vst [vmem:[%s408 + $0xd0] sm:$0xff] %v4526
        %4733 = vst [vmem:[%s408 + $0xd8] sm:$0xff] %v4528
        %4734 = vst [vmem:[%s408 + $0x100] sm:$0xff] %v4532
        %4735 = vst [vmem:[%s408 + $0x108] sm:$0xff] %v4534
        %4736 = vst [vmem:[%s408 + $0x130] sm:$0xff] %v4538
        %4737 = vst [vmem:[%s408 + $0x138] sm:$0xff] %v4540
        %4738 = vst [vmem:[%s408 + $0x160] sm:$0xff] %v4544
        %4739 = vst [vmem:[%s408 + $0x168] sm:$0xff] %v4546
        %4740 = vst [vmem:[%s408 + $0x190] sm:$0xff] %v4550
        %4741 = vst [vmem:[%s408 + $0x198] sm:$0xff] %v4552
        %4742 = vst [vmem:[%s408 + $0x1c0] sm:$0xff] %v4556
        %4743 = vst [vmem:[%s408 + $0x1c8] sm:$0xff] %v4558
        %4744 = vst [vmem:[%s408 + $0x1f0] sm:$0xff] %v4562
        %4745 = vst [vmem:[%s408 + $0x1f8] sm:$0xff] %v4564
        %4746 = vst [vmem:[%s408 + $0x220] sm:$0xff] %v4568
        %4747 = vst [vmem:[%s408 + $0x228] sm:$0xff] %v4570
        %4748 = vst [vmem:[%s408 + $0x250] sm:$0xff] %v4574
        %4749 = vst [vmem:[%s408 + $0x258] sm:$0xff] %v4576
        %4750 = vst [vmem:[%s408 + $0x280] sm:$0xff] %v4580
        %4751 = vst [vmem:[%s408 + $0x288] sm:$0xff] %v4582
        %4752 = vst [vmem:[%s408 + $0x2b0] sm:$0xff] %v4586
        %4753 = vst [vmem:[%s408 + $0x2b8] sm:$0xff] %v4588
        %4754 = vst [vmem:[%s408 + $0x2e0] sm:$0xff] %v4592
        %4755 = vst [vmem:[%s408 + $0x2e8] sm:$0xff] %v4594
        %4756 = vst [vmem:[%s408 + $0x20] sm:$0xff] %v4598
        %4757 = vst [vmem:[%s408 + $0x28] sm:$0xff] %v4600
        %4758 = vst [vmem:[%s408 + $0x50] sm:$0xff] %v4604
        %4759 = vst [vmem:[%s408 + $0x58] sm:$0xff] %v4606
        %4760 = vst [vmem:[%s408 + $0x80] sm:$0xff] %v4610
        %4761 = vst [vmem:[%s408 + $0x88] sm:$0xff] %v4612
        %4762 = vst [vmem:[%s408 + $0xb0] sm:$0xff] %v4616
        %4763 = vst [vmem:[%s408 + $0xb8] sm:$0xff] %v4618
        %4764 = vst [vmem:[%s408 + $0xe0] sm:$0xff] %v4622
        %4765 = vst [vmem:[%s408 + $0xe8] sm:$0xff] %v4624
        %4766 = vst [vmem:[%s408 + $0x110] sm:$0xff] %v4628
        %4767 = vst [vmem:[%s408 + $0x118] sm:$0xff] %v4630
        %4768 = vst [vmem:[%s408 + $0x140] sm:$0xff] %v4634
        %4769 = vst [vmem:[%s408 + $0x148] sm:$0xff] %v4636
        %4770 = vst [vmem:[%s408 + $0x170] sm:$0xff] %v4640
        %4771 = vst [vmem:[%s408 + $0x178] sm:$0xff] %v4642
        %4772 = vst [vmem:[%s408 + $0x1a0] sm:$0xff] %v4646
        %4773 = vst [vmem:[%s408 + $0x1a8] sm:$0xff] %v4648
        %4774 = vst [vmem:[%s408 + $0x1d0] sm:$0xff] %v4652
        %4775 = vst [vmem:[%s408 + $0x1d8] sm:$0xff] %v4654
        %4776 = vst [vmem:[%s408 + $0x200] sm:$0xff] %v4658
        %4777 = vst [vmem:[%s408 + $0x208] sm:$0xff] %v4660
        %4778 = vst [vmem:[%s408 + $0x230] sm:$0xff] %v4664
        %4779 = vst [vmem:[%s408 + $0x238] sm:$0xff] %v4666
        %4780 = vst [vmem:[%s408 + $0x260] sm:$0xff] %v4670
        %4781 = vst [vmem:[%s408 + $0x268] sm:$0xff] %v4672
        %4782 = vst [vmem:[%s408 + $0x290] sm:$0xff] %v4676
        %4783 = vst [vmem:[%s408 + $0x298] sm:$0xff] %v4678
        %4784 = vst [vmem:[%s408 + $0x2c0] sm:$0xff] %v4682
        %4785 = vst [vmem:[%s408 + $0x2c8] sm:$0xff] %v4684
        %4786 = vst [vmem:[%s408 + $0x2f0] sm:$0xff] %v4688
        %4787 = vst [vmem:[%s408 + $0x2f8] sm:$0xff] %v4690
        %s4788 = sand.u32 %s198, 1
        %s4789 = scalar_lea.sflag [#allocation4], %s4788
        %s4790 = sand.u32 %s198, 1
        %s4791 = smul.addr %s4790, 768
        %s4792 = scalar_lea.vmem [#allocation11], %s4791
        %s4793 = sand.u32 %s224, 1
        %s4794 = scalar_lea.sflag [#allocation13], %s4793
        %s4795 = sand.u32 %s224, 1
        %s4796 = scalar_lea.vmem [#allocation12], %s4795
        // Predicated region
        $region69: #{tpu_custom_call.1} parent=47 // pred_check
          %p4797 = pneg %p208
        $region70: #{tpu_custom_call.1} parent=47 // pred_check_branch
          %4799 = sbr.rel (%p4797) target = $region72
        $region71: #{tpu_custom_call.1} parent=47 // pred_region
          %s4800 = smul.u32 16, %s33
          %s4802 = ssub.s32 12288, 12288
          %4803 = vsyncadd %s4789, %s4802
          %s4804 = smul.addr %s4800, 6
          %s4805 = smul.addr %s4804, 128
          %s4806 = scalar_lea.hbm %s7, %s4805
          %s4807 = sshll.u32 %s4792, 4
          %s4808 = int_to_ptr.vmem [resolvable:$true] %s4807
          %4813 = dma.vmem_to_hbm [thread:$0]  %s4808, 12288, %s4806, %s4789, 768, 768, 48
        $region72: #{tpu_custom_call.1} parent=47 // pred_fallthru
          _
        // Predicated region
        $region73: #{tpu_custom_call.1} parent=47 // pred_check
          %p4814 = pneg %p234
        $region74: #{tpu_custom_call.1} parent=47 // pred_check_branch
          %4816 = sbr.rel (%p4814) target = $region76
        $region75: #{tpu_custom_call.1} parent=47 // pred_region
          %s4818 = ssub.s32 16, 16
          %4819 = vsyncadd %s4794, %s4818
          %s4820 = smul.addr %s33, 16
          %s4821 = scalar_lea.hbm %s8, %s4820
          %s4823 = sshll.u32 %s4796, 4
          %s4824 = int_to_ptr.vmem [resolvable:$true] %s4823
          %4826 = dma.vmem_to_hbm [thread:$0]  %s4824, 16, %s4821, %s4794
        $region76: #{tpu_custom_call.1} parent=47 // pred_fallthru
          _
      $region48: #{tpu_custom_call.1} parent=5 // pred_fallthru
        _
      %p4827 = scmp.le.s32.totalorder 2, %s28
      // Predicated region
      $region77: #{tpu_custom_call.1} parent=5 // pred_check
        %p4828 = pneg %p4827
      $region78: #{tpu_custom_call.1} parent=5 // pred_check_branch
        %4830 = sbr.rel (%p4828) target = $region80
      $region79: #{tpu_custom_call.1} parent=5 // pred_region
        %s4831 = ssub.s32 %s28, 2
        // Predicated region
        $region81: #{tpu_custom_call.1} parent=79 // pred_check
          %p4832 = pneg %p214
        $region82: #{tpu_custom_call.1} parent=79 // pred_check_branch
          %4834 = sbr.rel (%p4832) target = $region84
        $region83: #{tpu_custom_call.1} parent=79 // pred_region
          %s4835 = sand.u32 %s199, 1
          %s4836 = scalar_lea.sflag [#allocation4], %s4835
          %s4837 = sand.u32 %s199, 1
          %s4838 = smul.addr %s4837, 768
          %s4839 = scalar_lea.vmem [#allocation11], %s4838
          %4840 = dma.done %s4836, 12288
        $region84: #{tpu_custom_call.1} parent=79 // pred_fallthru
          _
        // Predicated region
        $region85: #{tpu_custom_call.1} parent=79 // pred_check
          %p4841 = pneg %p240
        $region86: #{tpu_custom_call.1} parent=79 // pred_check_branch
          %4843 = sbr.rel (%p4841) target = $region88
        $region87: #{tpu_custom_call.1} parent=79 // pred_region
          %s4844 = sand.u32 %s225, 1
          %s4845 = scalar_lea.sflag [#allocation13], %s4844
          %s4846 = sand.u32 %s225, 1
          %s4847 = scalar_lea.vmem [#allocation12], %s4846
          %4848 = dma.done %s4845, 16
        $region88: #{tpu_custom_call.1} parent=79 // pred_fallthru
          _
      $region80: #{tpu_custom_call.1} parent=5 // pred_fallthru
        _
    $region6: #{tpu_custom_call.1} parent=1 // loop_footer
      %s32 = sadd.s32 1, %s28
    $region7: #{tpu_custom_call.1} parent=1 // loop_footer_branch
      %27 = sbr.rel target = $region3
    $region8: #{tpu_custom_call.1} parent=1 // loop_exit
      _
    %4849 = vsyncpa [#allocation3], 1
    %s4850 = scalar_lea.sflag [#allocation3], 1
    %4851 = vsyncpa %s4850, 1
    %4852 = vsyncpa [#allocation6], 1
    %s4853 = scalar_lea.sflag [#allocation6], 1
    %4854 = vsyncpa %s4853, 1
    %4855 = vsyncpa [#allocation9], 1
    %4856 = vsyncpa [#allocation4], 1
    %s4857 = scalar_lea.sflag [#allocation4], 1
    %4858 = vsyncpa %s4857, 1
    %4859 = vsyncpa [#allocation13], 1
    %s4860 = scalar_lea.sflag [#allocation13], 1
    %4861 = vsyncpa %s4860, 1

</llo_original>
